<compile_context>
chip_gen: v6e
topology: v6e:2x2x1
jax: 0.10.0
libtpu: 0.0.40
codegen_flags: <defaults>
</compile_context>

<pallas_src>
import functools

import jax
import jax.numpy as jnp
from jax import lax
from jax.experimental import pallas as pl
from jax.experimental.pallas import tpu as pltpu

EPSILON = 1e-8
MARGIN = 0.5


def _loss_kernel(lab_row_ref, lab_col_ref, img_ref, txt_ref, out_ref, *,
                 epsilon, margin, num_pairs):
  """CMPM + triplet loss over all `num_pairs` (img, txt) pairs, one shot."""
  lab_row = lab_row_ref[...]                      # (1, B) f32
  lab_col = lab_col_ref[...]                      # (B, 1) f32
  B = lab_row.shape[1]
  inv_b = 1.0 / B

  # ---------- pair-invariant label math (computed exactly once) ----------
  labels_mask = (lab_col == lab_row).astype(jnp.float32)             # (B, B)

  # torch quirk: labels_mask.float().norm(dim=1) has NO keepdim, so the
  # broadcast divides column j by the norm of ROW j. labels_mask is symmetric,
  # so row-j norm == column-j norm -> reduce along axis 0 to get it as (1, B).
  col_norm = jnp.sqrt(jnp.sum(labels_mask * labels_mask,
                              axis=0, keepdims=True))                # (1, B)
  mask_norm = labels_mask / col_norm                                  # (B, B)
  log_mask = jnp.log(mask_norm + epsilon)                             # (B, B)

  row_i = lax.broadcasted_iota(jnp.int32, (B, B), 0)
  col_i = lax.broadcasted_iota(jnp.int32, (B, B), 1)
  eye = (row_i == col_i).astype(jnp.float32)
  labels_eq = labels_mask - eye                                       # (B, B)
  neg_bias = labels_eq * 100000.0                                     # (B, B)

  def cmpm_term(logits):
    m = jnp.max(logits, axis=1, keepdims=True)
    e = jnp.exp(logits - m)
    s = jnp.sum(e, axis=1, keepdims=True)
    # softmax(dim=1): reciprocal on the EUP instead of a full (B,B) VALU divide.
    pred = e * pl.reciprocal(s, approx=True)
    log_sm = (logits - m) - jnp.log(s)             # log_softmax(dim=1)
    # mean over rows of row-sums == sum(all) / B
    return jnp.sum(pred * (log_sm - log_mask)) * inv_b

  total = jnp.zeros((1, 1), jnp.float32)

  # Statically unrolled pair loop: all pairs are already VMEM resident.
  for p in range(num_pairs):
    img = img_ref[p]                               # (B, D) f32
    txt = txt_ref[p]                               # (B, D) f32

    img_sq = jnp.sum(img * img, axis=1, keepdims=True)   # (B, 1)
    txt_sq = jnp.sum(txt * txt, axis=1, keepdims=True)   # (B, 1)
    inv_in = lax.rsqrt(img_sq)                     # 1/||img_i||  (EUP)
    inv_tn = lax.rsqrt(txt_sq)                     # 1/||txt_i||  (EUP)

    # Single MXU matmul per pair; everything else derived from the Gram matrix.
    gram = jnp.dot(img, txt.T, preferred_element_type=jnp.float32)   # (B, B)

    # ---------------- CMPM loss ----------------
    i2t = gram * inv_tn.T                          # img_i . txt_norm_j
    t2i = gram.T * inv_in.T                        # txt_i . img_norm_j
    cmpm_loss = cmpm_term(i2t) + cmpm_term(t2i)

    # ---------------- Triplet loss ----------------
    # Pairwise Euclidean distance via the same Gram matrix.
    dist_sq = img_sq + txt_sq.T - 2.0 * gram
    dist = jnp.sqrt(jnp.maximum(dist_sq, 0.0))                        # (B, B)

    positive_dist = jnp.max(dist * labels_eq, axis=1, keepdims=True)  # (B, 1)
    negative_dist = jnp.min(dist + neg_bias, axis=1, keepdims=True)   # (B, 1)
    triplet_loss = jnp.sum(
        jnp.maximum(positive_dist - negative_dist + margin, 0.0)) * inv_b

    total = total + cmpm_loss + triplet_loss

  out_ref[...] = total                             # single write, no RMW


def pallas_loss(img_stack, txt_stack, labels, *, epsilon=EPSILON,
                margin=MARGIN):
  """img_stack/txt_stack: (P, B, D) f32; labels: (B,) int32. Returns scalar."""
  P, B, D = img_stack.shape
  lab_f = labels.astype(jnp.float32)
  lab_row = lab_f.reshape(1, B)
  lab_col = lab_f.reshape(B, 1)

  kernel = functools.partial(_loss_kernel, epsilon=epsilon, margin=margin,
                             num_pairs=P)

  out = pl.pallas_call(
      kernel,
      out_shape=jax.ShapeDtypeStruct((1, 1), jnp.float32),
      grid_spec=pltpu.PrefetchScalarGridSpec(
          num_scalar_prefetch=0,
          grid=(1,),                                  # single invocation
          in_specs=[
              pl.BlockSpec((1, B), lambda i: (0, 0)),        # labels row
              pl.BlockSpec((B, 1), lambda i: (0, 0)),        # labels col
              pl.BlockSpec((P, B, D), lambda i: (0, 0, 0)),  # all image pairs
              pl.BlockSpec((P, B, D), lambda i: (0, 0, 0)),  # all text pairs
          ],
          out_specs=pl.BlockSpec((1, 1), lambda i: (0, 0)),
      ),
      compiler_params=pltpu.CompilerParams(
          dimension_semantics=("arbitrary",)),
  )(lab_row, lab_col, img_stack, txt_stack)
  return out[0, 0]


def reference_loss(img_stack, txt_stack, labels, *, epsilon=EPSILON,
                   margin=MARGIN):
  """Pure-JAX mirror of the PyTorch module (silent correctness check)."""
  total = jnp.float32(0.0)
  B = img_stack.shape[1]
  mask = (labels[:, None] == labels[None, :]).astype(jnp.float32)
  for img, txt in zip(img_stack, txt_stack):
    img_n = img / jnp.linalg.norm(img, axis=1, keepdims=True)
    txt_n = txt / jnp.linalg.norm(txt, axis=1, keepdims=True)
    i2t = img @ txt_n.T
    t2i = txt @ img_n.T
    mask_norm = mask / jnp.linalg.norm(mask, axis=1)  # broadcast over last dim
    i2t_l = jax.nn.softmax(i2t, 1) * (jax.nn.log_softmax(i2t, 1)
                                      - jnp.log(mask_norm + epsilon))
    t2i_l = jax.nn.softmax(t2i, 1) * (jax.nn.log_softmax(t2i, 1)
                                      - jnp.log(mask_norm + epsilon))
    cmpm = jnp.mean(jnp.sum(i2t_l, 1)) + jnp.mean(jnp.sum(t2i_l, 1))
    dist = jnp.linalg.norm(img[:, None] - txt[None, :], axis=2)
    eq = mask - jnp.eye(B, dtype=jnp.float32)
    pos = jnp.max(dist * eq, axis=1)
    neg = jnp.min(dist + eq * 100000.0, axis=1)
    trip = jnp.mean(jnp.maximum(pos - neg + margin, 0.0))
    total = total + cmpm + trip
  return total


if __name__ == "__main__":
  # 8 feature pairs (f3, f41..f46, f4), batch=8, hidden=32.
  P, B, D = 8, 8, 32
  key = jax.random.PRNGKey(0)
  k_img, k_txt, k_lab = jax.random.split(key, 3)
  img_stack = jax.random.normal(k_img, (P, B, D), dtype=jnp.float32)
  txt_stack = jax.random.normal(k_txt, (P, B, D), dtype=jnp.float32)
  labels = jax.random.randint(k_lab, (B,), 0, 4, dtype=jnp.int32)

  loss = jax.block_until_ready(pallas_loss(img_stack, txt_stack, labels))
  ref = jax.block_until_ready(reference_loss(img_stack, txt_stack, labels))
  assert jnp.isfinite(loss)
  # Tolerance allows for the EUP approximate reciprocal in the in-kernel
  # softmax (amplified through the log(epsilon) term); everything else is f32.
  assert jnp.allclose(loss, ref, rtol=2e-3, atol=2e-3), (loss, ref)
  print("KERNEL_OK")
</pallas_src>

<mosaic_0001>
module attributes {stable_mosaic.version = 11 : i64} {
  func.func @_loss_kernel(%arg0: i32, %arg1: memref<1x8xf32, #tpu.memory_space<vmem>>, %arg2: memref<8x1xf32, #tpu.memory_space<vmem>>, %arg3: memref<8x8x32xf32, #tpu.memory_space<vmem>>, %arg4: memref<8x8x32xf32, #tpu.memory_space<vmem>>, %arg5: memref<1x1xf32, #tpu.memory_space<vmem>>) attributes {dimension_semantics = [#tpu.dimension_semantics<arbitrary>], iteration_bounds = array<i64: 1>, scalar_prefetch = 0 : i64, scratch_operands = 0 : i64, tpu.core_type = #tpu.core_type<tc>, window_params = [{pipeline_mode = #tpu.pipeline_mode<synchronous>, transform_indices = @transform_0, window_bounds = array<i64: 1, 8>}, {pipeline_mode = #tpu.pipeline_mode<synchronous>, transform_indices = @transform_1, window_bounds = array<i64: 8, 1>}, {pipeline_mode = #tpu.pipeline_mode<synchronous>, transform_indices = @transform_2, window_bounds = array<i64: 8, 8, 32>}, {pipeline_mode = #tpu.pipeline_mode<synchronous>, transform_indices = @transform_3, window_bounds = array<i64: 8, 8, 32>}, {pipeline_mode = #tpu.pipeline_mode<synchronous>, transform_indices = @transform_4, window_bounds = array<i64: 1, 1>}]} {
    %c0 = arith.constant 0 : index
    %c0_0 = arith.constant 0 : index
    %0 = vector.load %arg1[%c0, %c0_0] : memref<1x8xf32, #tpu.memory_space<vmem>>, vector<1x8xf32>
    %c0_1 = arith.constant 0 : index
    %c0_2 = arith.constant 0 : index
    %1 = vector.load %arg2[%c0_1, %c0_2] : memref<8x1xf32, #tpu.memory_space<vmem>>, vector<8x1xf32>
    %2 = vector.broadcast %1 : vector<8x1xf32> to vector<8x8xf32>
    %3 = vector.broadcast %0 : vector<1x8xf32> to vector<8x8xf32>
    %4 = arith.cmpf oeq, %2, %3 : vector<8x8xf32>
    %5 = arith.extui %4 : vector<8x8xi1> to vector<8x8xi32>
    %6 = arith.sitofp %5 : vector<8x8xi32> to vector<8x8xf32>
    %7 = arith.mulf %6, %6 : vector<8x8xf32>
    %cst = arith.constant dense<0.000000e+00> : vector<8xf32>
    %8 = vector.multi_reduction <add>, %7, %cst [0] : vector<8x8xf32> to vector<8xf32>
    %9 = vector.shape_cast %8 : vector<8xf32> to vector<1x8xf32>
    %10 = math.sqrt %9 : vector<1x8xf32>
    %11 = vector.broadcast %10 : vector<1x8xf32> to vector<8x8xf32>
    %12 = arith.divf %6, %11 : vector<8x8xf32>
    %cst_3 = arith.constant 9.99999993E-9 : f32
    %13 = vector.broadcast %cst_3 : f32 to vector<8x8xf32>
    %14 = arith.addf %12, %13 : vector<8x8xf32>
    %15 = math.log %14 : vector<8x8xf32>
    %16 = tpu.iota {dimensions = array<i32: 0>} : vector<8x8xi32>
    %17 = tpu.iota {dimensions = array<i32: 1>} : vector<8x8xi32>
    %18 = arith.cmpi eq, %16, %17 : vector<8x8xi32>
    %19 = arith.extui %18 : vector<8x8xi1> to vector<8x8xi32>
    %20 = arith.sitofp %19 : vector<8x8xi32> to vector<8x8xf32>
    %21 = arith.subf %6, %20 : vector<8x8xf32>
    %cst_4 = arith.constant 1.000000e+05 : f32
    %22 = vector.broadcast %cst_4 : f32 to vector<8x8xf32>
    %23 = arith.mulf %21, %22 : vector<8x8xf32>
    %cst_5 = arith.constant 0.000000e+00 : f32
    %24 = vector.broadcast %cst_5 : f32 to vector<1x1xf32>
    %c0_6 = arith.constant 0 : index
    %c0_7 = arith.constant 0 : index
    %c0_8 = arith.constant 0 : index
    %25 = vector.load %arg3[%c0_6, %c0_7, %c0_8] : memref<8x8x32xf32, #tpu.memory_space<vmem>>, vector<1x8x32xf32>
    %26 = vector.shape_cast %25 : vector<1x8x32xf32> to vector<8x32xf32>
    %c0_9 = arith.constant 0 : index
    %c0_10 = arith.constant 0 : index
    %c0_11 = arith.constant 0 : index
    %27 = vector.load %arg4[%c0_9, %c0_10, %c0_11] : memref<8x8x32xf32, #tpu.memory_space<vmem>>, vector<1x8x32xf32>
    %28 = vector.shape_cast %27 : vector<1x8x32xf32> to vector<8x32xf32>
    %29 = arith.mulf %26, %26 : vector<8x32xf32>
    %cst_12 = arith.constant dense<0.000000e+00> : vector<8xf32>
    %30 = vector.multi_reduction <add>, %29, %cst_12 [1] : vector<8x32xf32> to vector<8xf32>
    %31 = vector.shape_cast %30 : vector<8xf32> to vector<8x1xf32>
    %32 = arith.mulf %28, %28 : vector<8x32xf32>
    %cst_13 = arith.constant dense<0.000000e+00> : vector<8xf32>
    %33 = vector.multi_reduction <add>, %32, %cst_13 [1] : vector<8x32xf32> to vector<8xf32>
    %34 = vector.shape_cast %33 : vector<8xf32> to vector<8x1xf32>
    %35 = math.rsqrt %31 : vector<8x1xf32>
    %36 = math.rsqrt %34 : vector<8x1xf32>
    %37 = tpu.transpose %28, [1, 0] : vector<8x32xf32> -> vector<32x8xf32>
    %cst_14 = arith.constant dense<0.000000e+00> : vector<8x8xf32>
    %38 = tpu.matmul %26, %37, %cst_14 {dimension_numbers = #tpu.dot_dimension_numbers<[1], [0], [0], [1], [0, 0, 1, 1], [], []>} : vector<8x32xf32>, vector<32x8xf32>, vector<8x8xf32> -> vector<8x8xf32>
    %39 = tpu.transpose %36, [1, 0] : vector<8x1xf32> -> vector<1x8xf32>
    %40 = vector.broadcast %39 : vector<1x8xf32> to vector<8x8xf32>
    %41 = arith.mulf %38, %40 : vector<8x8xf32>
    %42 = tpu.transpose %38, [1, 0] : vector<8x8xf32> -> vector<8x8xf32>
    %43 = tpu.transpose %35, [1, 0] : vector<8x1xf32> -> vector<1x8xf32>
    %44 = vector.broadcast %43 : vector<1x8xf32> to vector<8x8xf32>
    %45 = arith.mulf %42, %44 : vector<8x8xf32>
    %cst_15 = arith.constant dense<0xFF800000> : vector<8xf32>
    %46 = vector.multi_reduction <maximumf>, %41, %cst_15 [1] : vector<8x8xf32> to vector<8xf32>
    %47 = vector.shape_cast %46 : vector<8xf32> to vector<8x1xf32>
    %48 = vector.broadcast %47 : vector<8x1xf32> to vector<8x8xf32>
    %49 = arith.subf %41, %48 : vector<8x8xf32>
    %50 = math.exp %49 : vector<8x8xf32>
    %cst_16 = arith.constant dense<0.000000e+00> : vector<8xf32>
    %51 = vector.multi_reduction <add>, %50, %cst_16 [1] : vector<8x8xf32> to vector<8xf32>
    %52 = vector.shape_cast %51 : vector<8xf32> to vector<8x1xf32>
    %53 = tpu.reciprocal %52 {approx = true} : vector<8x1xf32> -> vector<8x1xf32>
    %54 = vector.broadcast %53 : vector<8x1xf32> to vector<8x8xf32>
    %55 = arith.mulf %50, %54 : vector<8x8xf32>
    %56 = vector.broadcast %47 : vector<8x1xf32> to vector<8x8xf32>
    %57 = arith.subf %41, %56 : vector<8x8xf32>
    %58 = math.log %52 : vector<8x1xf32>
    %59 = vector.broadcast %58 : vector<8x1xf32> to vector<8x8xf32>
    %60 = arith.subf %57, %59 : vector<8x8xf32>
    %61 = arith.subf %60, %15 : vector<8x8xf32>
    %62 = arith.mulf %55, %61 : vector<8x8xf32>
    %63 = vector.shape_cast %62 : vector<8x8xf32> to vector<1x8x8xf32>
    %cst_17 = arith.constant dense<0.000000e+00> : vector<1xf32>
    %64 = vector.multi_reduction <add>, %63, %cst_17 [1, 2] : vector<1x8x8xf32> to vector<1xf32>
    %65 = vector.shape_cast %64 : vector<1xf32> to vector<1x1x1xf32>
    %66 = vector.extract %65[0, 0, 0] : f32 from vector<1x1x1xf32>
    %cst_18 = arith.constant 1.250000e-01 : f32
    %67 = arith.mulf %66, %cst_18 : f32
    %cst_19 = arith.constant dense<0xFF800000> : vector<8xf32>
    %68 = vector.multi_reduction <maximumf>, %45, %cst_19 [1] : vector<8x8xf32> to vector<8xf32>
    %69 = vector.shape_cast %68 : vector<8xf32> to vector<8x1xf32>
    %70 = vector.broadcast %69 : vector<8x1xf32> to vector<8x8xf32>
    %71 = arith.subf %45, %70 : vector<8x8xf32>
    %72 = math.exp %71 : vector<8x8xf32>
    %cst_20 = arith.constant dense<0.000000e+00> : vector<8xf32>
    %73 = vector.multi_reduction <add>, %72, %cst_20 [1] : vector<8x8xf32> to vector<8xf32>
    %74 = vector.shape_cast %73 : vector<8xf32> to vector<8x1xf32>
    %75 = tpu.reciprocal %74 {approx = true} : vector<8x1xf32> -> vector<8x1xf32>
    %76 = vector.broadcast %75 : vector<8x1xf32> to vector<8x8xf32>
    %77 = arith.mulf %72, %76 : vector<8x8xf32>
    %78 = vector.broadcast %69 : vector<8x1xf32> to vector<8x8xf32>
    %79 = arith.subf %45, %78 : vector<8x8xf32>
    %80 = math.log %74 : vector<8x1xf32>
    %81 = vector.broadcast %80 : vector<8x1xf32> to vector<8x8xf32>
    %82 = arith.subf %79, %81 : vector<8x8xf32>
    %83 = arith.subf %82, %15 : vector<8x8xf32>
    %84 = arith.mulf %77, %83 : vector<8x8xf32>
    %85 = vector.shape_cast %84 : vector<8x8xf32> to vector<1x8x8xf32>
    %cst_21 = arith.constant dense<0.000000e+00> : vector<1xf32>
    %86 = vector.multi_reduction <add>, %85, %cst_21 [1, 2] : vector<1x8x8xf32> to vector<1xf32>
    %87 = vector.shape_cast %86 : vector<1xf32> to vector<1x1x1xf32>
    %88 = vector.extract %87[0, 0, 0] : f32 from vector<1x1x1xf32>
    %cst_22 = arith.constant 1.250000e-01 : f32
    %89 = arith.mulf %88, %cst_22 : f32
    %90 = arith.addf %67, %89 : f32
    %91 = tpu.transpose %34, [1, 0] : vector<8x1xf32> -> vector<1x8xf32>
    %92 = vector.broadcast %31 : vector<8x1xf32> to vector<8x8xf32>
    %93 = vector.broadcast %91 : vector<1x8xf32> to vector<8x8xf32>
    %94 = arith.addf %92, %93 : vector<8x8xf32>
    %cst_23 = arith.constant 2.000000e+00 : f32
    %95 = vector.broadcast %cst_23 : f32 to vector<8x8xf32>
    %96 = arith.mulf %95, %38 : vector<8x8xf32>
    %97 = arith.subf %94, %96 : vector<8x8xf32>
    %cst_24 = arith.constant 0.000000e+00 : f32
    %98 = vector.broadcast %cst_24 : f32 to vector<8x8xf32>
    %99 = arith.maximumf %97, %98 : vector<8x8xf32>
    %100 = math.sqrt %99 : vector<8x8xf32>
    %101 = arith.mulf %100, %21 : vector<8x8xf32>
    %cst_25 = arith.constant dense<0xFF800000> : vector<8xf32>
    %102 = vector.multi_reduction <maximumf>, %101, %cst_25 [1] : vector<8x8xf32> to vector<8xf32>
    %103 = vector.shape_cast %102 : vector<8xf32> to vector<8x1xf32>
    %104 = arith.addf %100, %23 : vector<8x8xf32>
    %cst_26 = arith.constant dense<0x7F800000> : vector<8xf32>
    %105 = vector.multi_reduction <minimumf>, %104, %cst_26 [1] : vector<8x8xf32> to vector<8xf32>
    %106 = vector.shape_cast %105 : vector<8xf32> to vector<8x1xf32>
    %107 = arith.subf %103, %106 : vector<8x1xf32>
    %cst_27 = arith.constant 5.000000e-01 : f32
    %108 = vector.broadcast %cst_27 : f32 to vector<8x1xf32>
    %109 = arith.addf %107, %108 : vector<8x1xf32>
    %cst_28 = arith.constant 0.000000e+00 : f32
    %110 = vector.broadcast %cst_28 : f32 to vector<8x1xf32>
    %111 = arith.maximumf %109, %110 : vector<8x1xf32>
    %112 = vector.shape_cast %111 : vector<8x1xf32> to vector<1x8x1xf32>
    %cst_29 = arith.constant dense<0.000000e+00> : vector<1xf32>
    %113 = vector.multi_reduction <add>, %112, %cst_29 [1, 2] : vector<1x8x1xf32> to vector<1xf32>
    %114 = vector.shape_cast %113 : vector<1xf32> to vector<1x1x1xf32>
    %115 = vector.extract %114[0, 0, 0] : f32 from vector<1x1x1xf32>
    %cst_30 = arith.constant 1.250000e-01 : f32
    %116 = arith.mulf %115, %cst_30 : f32
    %117 = vector.broadcast %90 : f32 to vector<1x1xf32>
    %118 = arith.addf %24, %117 : vector<1x1xf32>
    %119 = vector.broadcast %116 : f32 to vector<1x1xf32>
    %120 = arith.addf %118, %119 : vector<1x1xf32>
    %c1 = arith.constant 1 : index
    %c0_31 = arith.constant 0 : index
    %c0_32 = arith.constant 0 : index
    %121 = vector.load %arg3[%c1, %c0_31, %c0_32] : memref<8x8x32xf32, #tpu.memory_space<vmem>>, vector<1x8x32xf32>
    %122 = vector.shape_cast %121 : vector<1x8x32xf32> to vector<8x32xf32>
    %c1_33 = arith.constant 1 : index
    %c0_34 = arith.constant 0 : index
    %c0_35 = arith.constant 0 : index
    %123 = vector.load %arg4[%c1_33, %c0_34, %c0_35] : memref<8x8x32xf32, #tpu.memory_space<vmem>>, vector<1x8x32xf32>
    %124 = vector.shape_cast %123 : vector<1x8x32xf32> to vector<8x32xf32>
    %125 = arith.mulf %122, %122 : vector<8x32xf32>
    %cst_36 = arith.constant dense<0.000000e+00> : vector<8xf32>
    %126 = vector.multi_reduction <add>, %125, %cst_36 [1] : vector<8x32xf32> to vector<8xf32>
    %127 = vector.shape_cast %126 : vector<8xf32> to vector<8x1xf32>
    %128 = arith.mulf %124, %124 : vector<8x32xf32>
    %cst_37 = arith.constant dense<0.000000e+00> : vector<8xf32>
    %129 = vector.multi_reduction <add>, %128, %cst_37 [1] : vector<8x32xf32> to vector<8xf32>
    %130 = vector.shape_cast %129 : vector<8xf32> to vector<8x1xf32>
    %131 = math.rsqrt %127 : vector<8x1xf32>
    %132 = math.rsqrt %130 : vector<8x1xf32>
    %133 = tpu.transpose %124, [1, 0] : vector<8x32xf32> -> vector<32x8xf32>
    %cst_38 = arith.constant dense<0.000000e+00> : vector<8x8xf32>
    %134 = tpu.matmul %122, %133, %cst_38 {dimension_numbers = #tpu.dot_dimension_numbers<[1], [0], [0], [1], [0, 0, 1, 1], [], []>} : vector<8x32xf32>, vector<32x8xf32>, vector<8x8xf32> -> vector<8x8xf32>
    %135 = tpu.transpose %132, [1, 0] : vector<8x1xf32> -> vector<1x8xf32>
    %136 = vector.broadcast %135 : vector<1x8xf32> to vector<8x8xf32>
    %137 = arith.mulf %134, %136 : vector<8x8xf32>
    %138 = tpu.transpose %134, [1, 0] : vector<8x8xf32> -> vector<8x8xf32>
    %139 = tpu.transpose %131, [1, 0] : vector<8x1xf32> -> vector<1x8xf32>
    %140 = vector.broadcast %139 : vector<1x8xf32> to vector<8x8xf32>
    %141 = arith.mulf %138, %140 : vector<8x8xf32>
    %cst_39 = arith.constant dense<0xFF800000> : vector<8xf32>
    %142 = vector.multi_reduction <maximumf>, %137, %cst_39 [1] : vector<8x8xf32> to vector<8xf32>
    %143 = vector.shape_cast %142 : vector<8xf32> to vector<8x1xf32>
    %144 = vector.broadcast %143 : vector<8x1xf32> to vector<8x8xf32>
    %145 = arith.subf %137, %144 : vector<8x8xf32>
    %146 = math.exp %145 : vector<8x8xf32>
    %cst_40 = arith.constant dense<0.000000e+00> : vector<8xf32>
    %147 = vector.multi_reduction <add>, %146, %cst_40 [1] : vector<8x8xf32> to vector<8xf32>
    %148 = vector.shape_cast %147 : vector<8xf32> to vector<8x1xf32>
    %149 = tpu.reciprocal %148 {approx = true} : vector<8x1xf32> -> vector<8x1xf32>
    %150 = vector.broadcast %149 : vector<8x1xf32> to vector<8x8xf32>
    %151 = arith.mulf %146, %150 : vector<8x8xf32>
    %152 = vector.broadcast %143 : vector<8x1xf32> to vector<8x8xf32>
    %153 = arith.subf %137, %152 : vector<8x8xf32>
    %154 = math.log %148 : vector<8x1xf32>
    %155 = vector.broadcast %154 : vector<8x1xf32> to vector<8x8xf32>
    %156 = arith.subf %153, %155 : vector<8x8xf32>
    %157 = arith.subf %156, %15 : vector<8x8xf32>
    %158 = arith.mulf %151, %157 : vector<8x8xf32>
    %159 = vector.shape_cast %158 : vector<8x8xf32> to vector<1x8x8xf32>
    %cst_41 = arith.constant dense<0.000000e+00> : vector<1xf32>
    %160 = vector.multi_reduction <add>, %159, %cst_41 [1, 2] : vector<1x8x8xf32> to vector<1xf32>
    %161 = vector.shape_cast %160 : vector<1xf32> to vector<1x1x1xf32>
    %162 = vector.extract %161[0, 0, 0] : f32 from vector<1x1x1xf32>
    %cst_42 = arith.constant 1.250000e-01 : f32
    %163 = arith.mulf %162, %cst_42 : f32
    %cst_43 = arith.constant dense<0xFF800000> : vector<8xf32>
    %164 = vector.multi_reduction <maximumf>, %141, %cst_43 [1] : vector<8x8xf32> to vector<8xf32>
    %165 = vector.shape_cast %164 : vector<8xf32> to vector<8x1xf32>
    %166 = vector.broadcast %165 : vector<8x1xf32> to vector<8x8xf32>
    %167 = arith.subf %141, %166 : vector<8x8xf32>
    %168 = math.exp %167 : vector<8x8xf32>
    %cst_44 = arith.constant dense<0.000000e+00> : vector<8xf32>
    %169 = vector.multi_reduction <add>, %168, %cst_44 [1] : vector<8x8xf32> to vector<8xf32>
    %170 = vector.shape_cast %169 : vector<8xf32> to vector<8x1xf32>
    %171 = tpu.reciprocal %170 {approx = true} : vector<8x1xf32> -> vector<8x1xf32>
    %172 = vector.broadcast %171 : vector<8x1xf32> to vector<8x8xf32>
    %173 = arith.mulf %168, %172 : vector<8x8xf32>
    %174 = vector.broadcast %165 : vector<8x1xf32> to vector<8x8xf32>
    %175 = arith.subf %141, %174 : vector<8x8xf32>
    %176 = math.log %170 : vector<8x1xf32>
    %177 = vector.broadcast %176 : vector<8x1xf32> to vector<8x8xf32>
    %178 = arith.subf %175, %177 : vector<8x8xf32>
    %179 = arith.subf %178, %15 : vector<8x8xf32>
    %180 = arith.mulf %173, %179 : vector<8x8xf32>
    %181 = vector.shape_cast %180 : vector<8x8xf32> to vector<1x8x8xf32>
    %cst_45 = arith.constant dense<0.000000e+00> : vector<1xf32>
    %182 = vector.multi_reduction <add>, %181, %cst_45 [1, 2] : vector<1x8x8xf32> to vector<1xf32>
    %183 = vector.shape_cast %182 : vector<1xf32> to vector<1x1x1xf32>
    %184 = vector.extract %183[0, 0, 0] : f32 from vector<1x1x1xf32>
    %cst_46 = arith.constant 1.250000e-01 : f32
    %185 = arith.mulf %184, %cst_46 : f32
    %186 = arith.addf %163, %185 : f32
    %187 = tpu.transpose %130, [1, 0] : vector<8x1xf32> -> vector<1x8xf32>
    %188 = vector.broadcast %127 : vector<8x1xf32> to vector<8x8xf32>
    %189 = vector.broadcast %187 : vector<1x8xf32> to vector<8x8xf32>
    %190 = arith.addf %188, %189 : vector<8x8xf32>
    %cst_47 = arith.constant 2.000000e+00 : f32
    %191 = vector.broadcast %cst_47 : f32 to vector<8x8xf32>
    %192 = arith.mulf %191, %134 : vector<8x8xf32>
    %193 = arith.subf %190, %192 : vector<8x8xf32>
    %cst_48 = arith.constant 0.000000e+00 : f32
    %194 = vector.broadcast %cst_48 : f32 to vector<8x8xf32>
    %195 = arith.maximumf %193, %194 : vector<8x8xf32>
    %196 = math.sqrt %195 : vector<8x8xf32>
    %197 = arith.mulf %196, %21 : vector<8x8xf32>
    %cst_49 = arith.constant dense<0xFF800000> : vector<8xf32>
    %198 = vector.multi_reduction <maximumf>, %197, %cst_49 [1] : vector<8x8xf32> to vector<8xf32>
    %199 = vector.shape_cast %198 : vector<8xf32> to vector<8x1xf32>
    %200 = arith.addf %196, %23 : vector<8x8xf32>
    %cst_50 = arith.constant dense<0x7F800000> : vector<8xf32>
    %201 = vector.multi_reduction <minimumf>, %200, %cst_50 [1] : vector<8x8xf32> to vector<8xf32>
    %202 = vector.shape_cast %201 : vector<8xf32> to vector<8x1xf32>
    %203 = arith.subf %199, %202 : vector<8x1xf32>
    %cst_51 = arith.constant 5.000000e-01 : f32
    %204 = vector.broadcast %cst_51 : f32 to vector<8x1xf32>
    %205 = arith.addf %203, %204 : vector<8x1xf32>
    %cst_52 = arith.constant 0.000000e+00 : f32
    %206 = vector.broadcast %cst_52 : f32 to vector<8x1xf32>
    %207 = arith.maximumf %205, %206 : vector<8x1xf32>
    %208 = vector.shape_cast %207 : vector<8x1xf32> to vector<1x8x1xf32>
    %cst_53 = arith.constant dense<0.000000e+00> : vector<1xf32>
    %209 = vector.multi_reduction <add>, %208, %cst_53 [1, 2] : vector<1x8x1xf32> to vector<1xf32>
    %210 = vector.shape_cast %209 : vector<1xf32> to vector<1x1x1xf32>
    %211 = vector.extract %210[0, 0, 0] : f32 from vector<1x1x1xf32>
    %cst_54 = arith.constant 1.250000e-01 : f32
    %212 = arith.mulf %211, %cst_54 : f32
    %213 = vector.broadcast %186 : f32 to vector<1x1xf32>
    %214 = arith.addf %120, %213 : vector<1x1xf32>
    %215 = vector.broadcast %212 : f32 to vector<1x1xf32>
    %216 = arith.addf %214, %215 : vector<1x1xf32>
    %c2 = arith.constant 2 : index
    %c0_55 = arith.constant 0 : index
    %c0_56 = arith.constant 0 : index
    %217 = vector.load %arg3[%c2, %c0_55, %c0_56] : memref<8x8x32xf32, #tpu.memory_space<vmem>>, vector<1x8x32xf32>
    %218 = vector.shape_cast %217 : vector<1x8x32xf32> to vector<8x32xf32>
    %c2_57 = arith.constant 2 : index
    %c0_58 = arith.constant 0 : index
    %c0_59 = arith.constant 0 : index
    %219 = vector.load %arg4[%c2_57, %c0_58, %c0_59] : memref<8x8x32xf32, #tpu.memory_space<vmem>>, vector<1x8x32xf32>
    %220 = vector.shape_cast %219 : vector<1x8x32xf32> to vector<8x32xf32>
    %221 = arith.mulf %218, %218 : vector<8x32xf32>
    %cst_60 = arith.constant dense<0.000000e+00> : vector<8xf32>
    %222 = vector.multi_reduction <add>, %221, %cst_60 [1] : vector<8x32xf32> to vector<8xf32>
    %223 = vector.shape_cast %222 : vector<8xf32> to vector<8x1xf32>
    %224 = arith.mulf %220, %220 : vector<8x32xf32>
    %cst_61 = arith.constant dense<0.000000e+00> : vector<8xf32>
    %225 = vector.multi_reduction <add>, %224, %cst_61 [1] : vector<8x32xf32> to vector<8xf32>
    %226 = vector.shape_cast %225 : vector<8xf32> to vector<8x1xf32>
    %227 = math.rsqrt %223 : vector<8x1xf32>
    %228 = math.rsqrt %226 : vector<8x1xf32>
    %229 = tpu.transpose %220, [1, 0] : vector<8x32xf32> -> vector<32x8xf32>
    %cst_62 = arith.constant dense<0.000000e+00> : vector<8x8xf32>
    %230 = tpu.matmul %218, %229, %cst_62 {dimension_numbers = #tpu.dot_dimension_numbers<[1], [0], [0], [1], [0, 0, 1, 1], [], []>} : vector<8x32xf32>, vector<32x8xf32>, vector<8x8xf32> -> vector<8x8xf32>
    %231 = tpu.transpose %228, [1, 0] : vector<8x1xf32> -> vector<1x8xf32>
    %232 = vector.broadcast %231 : vector<1x8xf32> to vector<8x8xf32>
    %233 = arith.mulf %230, %232 : vector<8x8xf32>
    %234 = tpu.transpose %230, [1, 0] : vector<8x8xf32> -> vector<8x8xf32>
    %235 = tpu.transpose %227, [1, 0] : vector<8x1xf32> -> vector<1x8xf32>
    %236 = vector.broadcast %235 : vector<1x8xf32> to vector<8x8xf32>
    %237 = arith.mulf %234, %236 : vector<8x8xf32>
    %cst_63 = arith.constant dense<0xFF800000> : vector<8xf32>
    %238 = vector.multi_reduction <maximumf>, %233, %cst_63 [1] : vector<8x8xf32> to vector<8xf32>
    %239 = vector.shape_cast %238 : vector<8xf32> to vector<8x1xf32>
    %240 = vector.broadcast %239 : vector<8x1xf32> to vector<8x8xf32>
    %241 = arith.subf %233, %240 : vector<8x8xf32>
    %242 = math.exp %241 : vector<8x8xf32>
    %cst_64 = arith.constant dense<0.000000e+00> : vector<8xf32>
    %243 = vector.multi_reduction <add>, %242, %cst_64 [1] : vector<8x8xf32> to vector<8xf32>
    %244 = vector.shape_cast %243 : vector<8xf32> to vector<8x1xf32>
    %245 = tpu.reciprocal %244 {approx = true} : vector<8x1xf32> -> vector<8x1xf32>
    %246 = vector.broadcast %245 : vector<8x1xf32> to vector<8x8xf32>
    %247 = arith.mulf %242, %246 : vector<8x8xf32>
    %248 = vector.broadcast %239 : vector<8x1xf32> to vector<8x8xf32>
    %249 = arith.subf %233, %248 : vector<8x8xf32>
    %250 = math.log %244 : vector<8x1xf32>
    %251 = vector.broadcast %250 : vector<8x1xf32> to vector<8x8xf32>
    %252 = arith.subf %249, %251 : vector<8x8xf32>
    %253 = arith.subf %252, %15 : vector<8x8xf32>
    %254 = arith.mulf %247, %253 : vector<8x8xf32>
    %255 = vector.shape_cast %254 : vector<8x8xf32> to vector<1x8x8xf32>
    %cst_65 = arith.constant dense<0.000000e+00> : vector<1xf32>
    %256 = vector.multi_reduction <add>, %255, %cst_65 [1, 2] : vector<1x8x8xf32> to vector<1xf32>
    %257 = vector.shape_cast %256 : vector<1xf32> to vector<1x1x1xf32>
    %258 = vector.extract %257[0, 0, 0] : f32 from vector<1x1x1xf32>
    %cst_66 = arith.constant 1.250000e-01 : f32
    %259 = arith.mulf %258, %cst_66 : f32
    %cst_67 = arith.constant dense<0xFF800000> : vector<8xf32>
    %260 = vector.multi_reduction <maximumf>, %237, %cst_67 [1] : vector<8x8xf32> to vector<8xf32>
    %261 = vector.shape_cast %260 : vector<8xf32> to vector<8x1xf32>
    %262 = vector.broadcast %261 : vector<8x1xf32> to vector<8x8xf32>
    %263 = arith.subf %237, %262 : vector<8x8xf32>
    %264 = math.exp %263 : vector<8x8xf32>
    %cst_68 = arith.constant dense<0.000000e+00> : vector<8xf32>
    %265 = vector.multi_reduction <add>, %264, %cst_68 [1] : vector<8x8xf32> to vector<8xf32>
    %266 = vector.shape_cast %265 : vector<8xf32> to vector<8x1xf32>
    %267 = tpu.reciprocal %266 {approx = true} : vector<8x1xf32> -> vector<8x1xf32>
    %268 = vector.broadcast %267 : vector<8x1xf32> to vector<8x8xf32>
    %269 = arith.mulf %264, %268 : vector<8x8xf32>
    %270 = vector.broadcast %261 : vector<8x1xf32> to vector<8x8xf32>
    %271 = arith.subf %237, %270 : vector<8x8xf32>
    %272 = math.log %266 : vector<8x1xf32>
    %273 = vector.broadcast %272 : vector<8x1xf32> to vector<8x8xf32>
    %274 = arith.subf %271, %273 : vector<8x8xf32>
    %275 = arith.subf %274, %15 : vector<8x8xf32>
    %276 = arith.mulf %269, %275 : vector<8x8xf32>
    %277 = vector.shape_cast %276 : vector<8x8xf32> to vector<1x8x8xf32>
    %cst_69 = arith.constant dense<0.000000e+00> : vector<1xf32>
    %278 = vector.multi_reduction <add>, %277, %cst_69 [1, 2] : vector<1x8x8xf32> to vector<1xf32>
    %279 = vector.shape_cast %278 : vector<1xf32> to vector<1x1x1xf32>
    %280 = vector.extract %279[0, 0, 0] : f32 from vector<1x1x1xf32>
    %cst_70 = arith.constant 1.250000e-01 : f32
    %281 = arith.mulf %280, %cst_70 : f32
    %282 = arith.addf %259, %281 : f32
    %283 = tpu.transpose %226, [1, 0] : vector<8x1xf32> -> vector<1x8xf32>
    %284 = vector.broadcast %223 : vector<8x1xf32> to vector<8x8xf32>
    %285 = vector.broadcast %283 : vector<1x8xf32> to vector<8x8xf32>
    %286 = arith.addf %284, %285 : vector<8x8xf32>
    %cst_71 = arith.constant 2.000000e+00 : f32
    %287 = vector.broadcast %cst_71 : f32 to vector<8x8xf32>
    %288 = arith.mulf %287, %230 : vector<8x8xf32>
    %289 = arith.subf %286, %288 : vector<8x8xf32>
    %cst_72 = arith.constant 0.000000e+00 : f32
    %290 = vector.broadcast %cst_72 : f32 to vector<8x8xf32>
    %291 = arith.maximumf %289, %290 : vector<8x8xf32>
    %292 = math.sqrt %291 : vector<8x8xf32>
    %293 = arith.mulf %292, %21 : vector<8x8xf32>
    %cst_73 = arith.constant dense<0xFF800000> : vector<8xf32>
    %294 = vector.multi_reduction <maximumf>, %293, %cst_73 [1] : vector<8x8xf32> to vector<8xf32>
    %295 = vector.shape_cast %294 : vector<8xf32> to vector<8x1xf32>
    %296 = arith.addf %292, %23 : vector<8x8xf32>
    %cst_74 = arith.constant dense<0x7F800000> : vector<8xf32>
    %297 = vector.multi_reduction <minimumf>, %296, %cst_74 [1] : vector<8x8xf32> to vector<8xf32>
    %298 = vector.shape_cast %297 : vector<8xf32> to vector<8x1xf32>
    %299 = arith.subf %295, %298 : vector<8x1xf32>
    %cst_75 = arith.constant 5.000000e-01 : f32
    %300 = vector.broadcast %cst_75 : f32 to vector<8x1xf32>
    %301 = arith.addf %299, %300 : vector<8x1xf32>
    %cst_76 = arith.constant 0.000000e+00 : f32
    %302 = vector.broadcast %cst_76 : f32 to vector<8x1xf32>
    %303 = arith.maximumf %301, %302 : vector<8x1xf32>
    %304 = vector.shape_cast %303 : vector<8x1xf32> to vector<1x8x1xf32>
    %cst_77 = arith.constant dense<0.000000e+00> : vector<1xf32>
    %305 = vector.multi_reduction <add>, %304, %cst_77 [1, 2] : vector<1x8x1xf32> to vector<1xf32>
    %306 = vector.shape_cast %305 : vector<1xf32> to vector<1x1x1xf32>
    %307 = vector.extract %306[0, 0, 0] : f32 from vector<1x1x1xf32>
    %cst_78 = arith.constant 1.250000e-01 : f32
    %308 = arith.mulf %307, %cst_78 : f32
    %309 = vector.broadcast %282 : f32 to vector<1x1xf32>
    %310 = arith.addf %216, %309 : vector<1x1xf32>
    %311 = vector.broadcast %308 : f32 to vector<1x1xf32>
    %312 = arith.addf %310, %311 : vector<1x1xf32>
    %c3 = arith.constant 3 : index
    %c0_79 = arith.constant 0 : index
    %c0_80 = arith.constant 0 : index
    %313 = vector.load %arg3[%c3, %c0_79, %c0_80] : memref<8x8x32xf32, #tpu.memory_space<vmem>>, vector<1x8x32xf32>
    %314 = vector.shape_cast %313 : vector<1x8x32xf32> to vector<8x32xf32>
    %c3_81 = arith.constant 3 : index
    %c0_82 = arith.constant 0 : index
    %c0_83 = arith.constant 0 : index
    %315 = vector.load %arg4[%c3_81, %c0_82, %c0_83] : memref<8x8x32xf32, #tpu.memory_space<vmem>>, vector<1x8x32xf32>
    %316 = vector.shape_cast %315 : vector<1x8x32xf32> to vector<8x32xf32>
    %317 = arith.mulf %314, %314 : vector<8x32xf32>
    %cst_84 = arith.constant dense<0.000000e+00> : vector<8xf32>
    %318 = vector.multi_reduction <add>, %317, %cst_84 [1] : vector<8x32xf32> to vector<8xf32>
    %319 = vector.shape_cast %318 : vector<8xf32> to vector<8x1xf32>
    %320 = arith.mulf %316, %316 : vector<8x32xf32>
    %cst_85 = arith.constant dense<0.000000e+00> : vector<8xf32>
    %321 = vector.multi_reduction <add>, %320, %cst_85 [1] : vector<8x32xf32> to vector<8xf32>
    %322 = vector.shape_cast %321 : vector<8xf32> to vector<8x1xf32>
    %323 = math.rsqrt %319 : vector<8x1xf32>
    %324 = math.rsqrt %322 : vector<8x1xf32>
    %325 = tpu.transpose %316, [1, 0] : vector<8x32xf32> -> vector<32x8xf32>
    %cst_86 = arith.constant dense<0.000000e+00> : vector<8x8xf32>
    %326 = tpu.matmul %314, %325, %cst_86 {dimension_numbers = #tpu.dot_dimension_numbers<[1], [0], [0], [1], [0, 0, 1, 1], [], []>} : vector<8x32xf32>, vector<32x8xf32>, vector<8x8xf32> -> vector<8x8xf32>
    %327 = tpu.transpose %324, [1, 0] : vector<8x1xf32> -> vector<1x8xf32>
    %328 = vector.broadcast %327 : vector<1x8xf32> to vector<8x8xf32>
    %329 = arith.mulf %326, %328 : vector<8x8xf32>
    %330 = tpu.transpose %326, [1, 0] : vector<8x8xf32> -> vector<8x8xf32>
    %331 = tpu.transpose %323, [1, 0] : vector<8x1xf32> -> vector<1x8xf32>
    %332 = vector.broadcast %331 : vector<1x8xf32> to vector<8x8xf32>
    %333 = arith.mulf %330, %332 : vector<8x8xf32>
    %cst_87 = arith.constant dense<0xFF800000> : vector<8xf32>
    %334 = vector.multi_reduction <maximumf>, %329, %cst_87 [1] : vector<8x8xf32> to vector<8xf32>
    %335 = vector.shape_cast %334 : vector<8xf32> to vector<8x1xf32>
    %336 = vector.broadcast %335 : vector<8x1xf32> to vector<8x8xf32>
    %337 = arith.subf %329, %336 : vector<8x8xf32>
    %338 = math.exp %337 : vector<8x8xf32>
    %cst_88 = arith.constant dense<0.000000e+00> : vector<8xf32>
    %339 = vector.multi_reduction <add>, %338, %cst_88 [1] : vector<8x8xf32> to vector<8xf32>
    %340 = vector.shape_cast %339 : vector<8xf32> to vector<8x1xf32>
    %341 = tpu.reciprocal %340 {approx = true} : vector<8x1xf32> -> vector<8x1xf32>
    %342 = vector.broadcast %341 : vector<8x1xf32> to vector<8x8xf32>
    %343 = arith.mulf %338, %342 : vector<8x8xf32>
    %344 = vector.broadcast %335 : vector<8x1xf32> to vector<8x8xf32>
    %345 = arith.subf %329, %344 : vector<8x8xf32>
    %346 = math.log %340 : vector<8x1xf32>
    %347 = vector.broadcast %346 : vector<8x1xf32> to vector<8x8xf32>
    %348 = arith.subf %345, %347 : vector<8x8xf32>
    %349 = arith.subf %348, %15 : vector<8x8xf32>
    %350 = arith.mulf %343, %349 : vector<8x8xf32>
    %351 = vector.shape_cast %350 : vector<8x8xf32> to vector<1x8x8xf32>
    %cst_89 = arith.constant dense<0.000000e+00> : vector<1xf32>
    %352 = vector.multi_reduction <add>, %351, %cst_89 [1, 2] : vector<1x8x8xf32> to vector<1xf32>
    %353 = vector.shape_cast %352 : vector<1xf32> to vector<1x1x1xf32>
    %354 = vector.extract %353[0, 0, 0] : f32 from vector<1x1x1xf32>
    %cst_90 = arith.constant 1.250000e-01 : f32
    %355 = arith.mulf %354, %cst_90 : f32
    %cst_91 = arith.constant dense<0xFF800000> : vector<8xf32>
    %356 = vector.multi_reduction <maximumf>, %333, %cst_91 [1] : vector<8x8xf32> to vector<8xf32>
    %357 = vector.shape_cast %356 : vector<8xf32> to vector<8x1xf32>
    %358 = vector.broadcast %357 : vector<8x1xf32> to vector<8x8xf32>
    %359 = arith.subf %333, %358 : vector<8x8xf32>
    %360 = math.exp %359 : vector<8x8xf32>
    %cst_92 = arith.constant dense<0.000000e+00> : vector<8xf32>
    %361 = vector.multi_reduction <add>, %360, %cst_92 [1] : vector<8x8xf32> to vector<8xf32>
    %362 = vector.shape_cast %361 : vector<8xf32> to vector<8x1xf32>
    %363 = tpu.reciprocal %362 {approx = true} : vector<8x1xf32> -> vector<8x1xf32>
    %364 = vector.broadcast %363 : vector<8x1xf32> to vector<8x8xf32>
    %365 = arith.mulf %360, %364 : vector<8x8xf32>
    %366 = vector.broadcast %357 : vector<8x1xf32> to vector<8x8xf32>
    %367 = arith.subf %333, %366 : vector<8x8xf32>
    %368 = math.log %362 : vector<8x1xf32>
    %369 = vector.broadcast %368 : vector<8x1xf32> to vector<8x8xf32>
    %370 = arith.subf %367, %369 : vector<8x8xf32>
    %371 = arith.subf %370, %15 : vector<8x8xf32>
    %372 = arith.mulf %365, %371 : vector<8x8xf32>
    %373 = vector.shape_cast %372 : vector<8x8xf32> to vector<1x8x8xf32>
    %cst_93 = arith.constant dense<0.000000e+00> : vector<1xf32>
    %374 = vector.multi_reduction <add>, %373, %cst_93 [1, 2] : vector<1x8x8xf32> to vector<1xf32>
    %375 = vector.shape_cast %374 : vector<1xf32> to vector<1x1x1xf32>
    %376 = vector.extract %375[0, 0, 0] : f32 from vector<1x1x1xf32>
    %cst_94 = arith.constant 1.250000e-01 : f32
    %377 = arith.mulf %376, %cst_94 : f32
    %378 = arith.addf %355, %377 : f32
    %379 = tpu.transpose %322, [1, 0] : vector<8x1xf32> -> vector<1x8xf32>
    %380 = vector.broadcast %319 : vector<8x1xf32> to vector<8x8xf32>
    %381 = vector.broadcast %379 : vector<1x8xf32> to vector<8x8xf32>
    %382 = arith.addf %380, %381 : vector<8x8xf32>
    %cst_95 = arith.constant 2.000000e+00 : f32
    %383 = vector.broadcast %cst_95 : f32 to vector<8x8xf32>
    %384 = arith.mulf %383, %326 : vector<8x8xf32>
    %385 = arith.subf %382, %384 : vector<8x8xf32>
    %cst_96 = arith.constant 0.000000e+00 : f32
    %386 = vector.broadcast %cst_96 : f32 to vector<8x8xf32>
    %387 = arith.maximumf %385, %386 : vector<8x8xf32>
    %388 = math.sqrt %387 : vector<8x8xf32>
    %389 = arith.mulf %388, %21 : vector<8x8xf32>
    %cst_97 = arith.constant dense<0xFF800000> : vector<8xf32>
    %390 = vector.multi_reduction <maximumf>, %389, %cst_97 [1] : vector<8x8xf32> to vector<8xf32>
    %391 = vector.shape_cast %390 : vector<8xf32> to vector<8x1xf32>
    %392 = arith.addf %388, %23 : vector<8x8xf32>
    %cst_98 = arith.constant dense<0x7F800000> : vector<8xf32>
    %393 = vector.multi_reduction <minimumf>, %392, %cst_98 [1] : vector<8x8xf32> to vector<8xf32>
    %394 = vector.shape_cast %393 : vector<8xf32> to vector<8x1xf32>
    %395 = arith.subf %391, %394 : vector<8x1xf32>
    %cst_99 = arith.constant 5.000000e-01 : f32
    %396 = vector.broadcast %cst_99 : f32 to vector<8x1xf32>
    %397 = arith.addf %395, %396 : vector<8x1xf32>
    %cst_100 = arith.constant 0.000000e+00 : f32
    %398 = vector.broadcast %cst_100 : f32 to vector<8x1xf32>
    %399 = arith.maximumf %397, %398 : vector<8x1xf32>
    %400 = vector.shape_cast %399 : vector<8x1xf32> to vector<1x8x1xf32>
    %cst_101 = arith.constant dense<0.000000e+00> : vector<1xf32>
    %401 = vector.multi_reduction <add>, %400, %cst_101 [1, 2] : vector<1x8x1xf32> to vector<1xf32>
    %402 = vector.shape_cast %401 : vector<1xf32> to vector<1x1x1xf32>
    %403 = vector.extract %402[0, 0, 0] : f32 from vector<1x1x1xf32>
    %cst_102 = arith.constant 1.250000e-01 : f32
    %404 = arith.mulf %403, %cst_102 : f32
    %405 = vector.broadcast %378 : f32 to vector<1x1xf32>
    %406 = arith.addf %312, %405 : vector<1x1xf32>
    %407 = vector.broadcast %404 : f32 to vector<1x1xf32>
    %408 = arith.addf %406, %407 : vector<1x1xf32>
    %c4 = arith.constant 4 : index
    %c0_103 = arith.constant 0 : index
    %c0_104 = arith.constant 0 : index
    %409 = vector.load %arg3[%c4, %c0_103, %c0_104] : memref<8x8x32xf32, #tpu.memory_space<vmem>>, vector<1x8x32xf32>
    %410 = vector.shape_cast %409 : vector<1x8x32xf32> to vector<8x32xf32>
    %c4_105 = arith.constant 4 : index
    %c0_106 = arith.constant 0 : index
    %c0_107 = arith.constant 0 : index
    %411 = vector.load %arg4[%c4_105, %c0_106, %c0_107] : memref<8x8x32xf32, #tpu.memory_space<vmem>>, vector<1x8x32xf32>
    %412 = vector.shape_cast %411 : vector<1x8x32xf32> to vector<8x32xf32>
    %413 = arith.mulf %410, %410 : vector<8x32xf32>
    %cst_108 = arith.constant dense<0.000000e+00> : vector<8xf32>
    %414 = vector.multi_reduction <add>, %413, %cst_108 [1] : vector<8x32xf32> to vector<8xf32>
    %415 = vector.shape_cast %414 : vector<8xf32> to vector<8x1xf32>
    %416 = arith.mulf %412, %412 : vector<8x32xf32>
    %cst_109 = arith.constant dense<0.000000e+00> : vector<8xf32>
    %417 = vector.multi_reduction <add>, %416, %cst_109 [1] : vector<8x32xf32> to vector<8xf32>
    %418 = vector.shape_cast %417 : vector<8xf32> to vector<8x1xf32>
    %419 = math.rsqrt %415 : vector<8x1xf32>
    %420 = math.rsqrt %418 : vector<8x1xf32>
    %421 = tpu.transpose %412, [1, 0] : vector<8x32xf32> -> vector<32x8xf32>
    %cst_110 = arith.constant dense<0.000000e+00> : vector<8x8xf32>
    %422 = tpu.matmul %410, %421, %cst_110 {dimension_numbers = #tpu.dot_dimension_numbers<[1], [0], [0], [1], [0, 0, 1, 1], [], []>} : vector<8x32xf32>, vector<32x8xf32>, vector<8x8xf32> -> vector<8x8xf32>
    %423 = tpu.transpose %420, [1, 0] : vector<8x1xf32> -> vector<1x8xf32>
    %424 = vector.broadcast %423 : vector<1x8xf32> to vector<8x8xf32>
    %425 = arith.mulf %422, %424 : vector<8x8xf32>
    %426 = tpu.transpose %422, [1, 0] : vector<8x8xf32> -> vector<8x8xf32>
    %427 = tpu.transpose %419, [1, 0] : vector<8x1xf32> -> vector<1x8xf32>
    %428 = vector.broadcast %427 : vector<1x8xf32> to vector<8x8xf32>
    %429 = arith.mulf %426, %428 : vector<8x8xf32>
    %cst_111 = arith.constant dense<0xFF800000> : vector<8xf32>
    %430 = vector.multi_reduction <maximumf>, %425, %cst_111 [1] : vector<8x8xf32> to vector<8xf32>
    %431 = vector.shape_cast %430 : vector<8xf32> to vector<8x1xf32>
    %432 = vector.broadcast %431 : vector<8x1xf32> to vector<8x8xf32>
    %433 = arith.subf %425, %432 : vector<8x8xf32>
    %434 = math.exp %433 : vector<8x8xf32>
    %cst_112 = arith.constant dense<0.000000e+00> : vector<8xf32>
    %435 = vector.multi_reduction <add>, %434, %cst_112 [1] : vector<8x8xf32> to vector<8xf32>
    %436 = vector.shape_cast %435 : vector<8xf32> to vector<8x1xf32>
    %437 = tpu.reciprocal %436 {approx = true} : vector<8x1xf32> -> vector<8x1xf32>
    %438 = vector.broadcast %437 : vector<8x1xf32> to vector<8x8xf32>
    %439 = arith.mulf %434, %438 : vector<8x8xf32>
    %440 = vector.broadcast %431 : vector<8x1xf32> to vector<8x8xf32>
    %441 = arith.subf %425, %440 : vector<8x8xf32>
    %442 = math.log %436 : vector<8x1xf32>
    %443 = vector.broadcast %442 : vector<8x1xf32> to vector<8x8xf32>
    %444 = arith.subf %441, %443 : vector<8x8xf32>
    %445 = arith.subf %444, %15 : vector<8x8xf32>
    %446 = arith.mulf %439, %445 : vector<8x8xf32>
    %447 = vector.shape_cast %446 : vector<8x8xf32> to vector<1x8x8xf32>
    %cst_113 = arith.constant dense<0.000000e+00> : vector<1xf32>
    %448 = vector.multi_reduction <add>, %447, %cst_113 [1, 2] : vector<1x8x8xf32> to vector<1xf32>
    %449 = vector.shape_cast %448 : vector<1xf32> to vector<1x1x1xf32>
    %450 = vector.extract %449[0, 0, 0] : f32 from vector<1x1x1xf32>
    %cst_114 = arith.constant 1.250000e-01 : f32
    %451 = arith.mulf %450, %cst_114 : f32
    %cst_115 = arith.constant dense<0xFF800000> : vector<8xf32>
    %452 = vector.multi_reduction <maximumf>, %429, %cst_115 [1] : vector<8x8xf32> to vector<8xf32>
    %453 = vector.shape_cast %452 : vector<8xf32> to vector<8x1xf32>
    %454 = vector.broadcast %453 : vector<8x1xf32> to vector<8x8xf32>
    %455 = arith.subf %429, %454 : vector<8x8xf32>
    %456 = math.exp %455 : vector<8x8xf32>
    %cst_116 = arith.constant dense<0.000000e+00> : vector<8xf32>
    %457 = vector.multi_reduction <add>, %456, %cst_116 [1] : vector<8x8xf32> to vector<8xf32>
    %458 = vector.shape_cast %457 : vector<8xf32> to vector<8x1xf32>
    %459 = tpu.reciprocal %458 {approx = true} : vector<8x1xf32> -> vector<8x1xf32>
    %460 = vector.broadcast %459 : vector<8x1xf32> to vector<8x8xf32>
    %461 = arith.mulf %456, %460 : vector<8x8xf32>
    %462 = vector.broadcast %453 : vector<8x1xf32> to vector<8x8xf32>
    %463 = arith.subf %429, %462 : vector<8x8xf32>
    %464 = math.log %458 : vector<8x1xf32>
    %465 = vector.broadcast %464 : vector<8x1xf32> to vector<8x8xf32>
    %466 = arith.subf %463, %465 : vector<8x8xf32>
    %467 = arith.subf %466, %15 : vector<8x8xf32>
    %468 = arith.mulf %461, %467 : vector<8x8xf32>
    %469 = vector.shape_cast %468 : vector<8x8xf32> to vector<1x8x8xf32>
    %cst_117 = arith.constant dense<0.000000e+00> : vector<1xf32>
    %470 = vector.multi_reduction <add>, %469, %cst_117 [1, 2] : vector<1x8x8xf32> to vector<1xf32>
    %471 = vector.shape_cast %470 : vector<1xf32> to vector<1x1x1xf32>
    %472 = vector.extract %471[0, 0, 0] : f32 from vector<1x1x1xf32>
    %cst_118 = arith.constant 1.250000e-01 : f32
    %473 = arith.mulf %472, %cst_118 : f32
    %474 = arith.addf %451, %473 : f32
    %475 = tpu.transpose %418, [1, 0] : vector<8x1xf32> -> vector<1x8xf32>
    %476 = vector.broadcast %415 : vector<8x1xf32> to vector<8x8xf32>
    %477 = vector.broadcast %475 : vector<1x8xf32> to vector<8x8xf32>
    %478 = arith.addf %476, %477 : vector<8x8xf32>
    %cst_119 = arith.constant 2.000000e+00 : f32
    %479 = vector.broadcast %cst_119 : f32 to vector<8x8xf32>
    %480 = arith.mulf %479, %422 : vector<8x8xf32>
    %481 = arith.subf %478, %480 : vector<8x8xf32>
    %cst_120 = arith.constant 0.000000e+00 : f32
    %482 = vector.broadcast %cst_120 : f32 to vector<8x8xf32>
    %483 = arith.maximumf %481, %482 : vector<8x8xf32>
    %484 = math.sqrt %483 : vector<8x8xf32>
    %485 = arith.mulf %484, %21 : vector<8x8xf32>
    %cst_121 = arith.constant dense<0xFF800000> : vector<8xf32>
    %486 = vector.multi_reduction <maximumf>, %485, %cst_121 [1] : vector<8x8xf32> to vector<8xf32>
    %487 = vector.shape_cast %486 : vector<8xf32> to vector<8x1xf32>
    %488 = arith.addf %484, %23 : vector<8x8xf32>
    %cst_122 = arith.constant dense<0x7F800000> : vector<8xf32>
    %489 = vector.multi_reduction <minimumf>, %488, %cst_122 [1] : vector<8x8xf32> to vector<8xf32>
    %490 = vector.shape_cast %489 : vector<8xf32> to vector<8x1xf32>
    %491 = arith.subf %487, %490 : vector<8x1xf32>
    %cst_123 = arith.constant 5.000000e-01 : f32
    %492 = vector.broadcast %cst_123 : f32 to vector<8x1xf32>
    %493 = arith.addf %491, %492 : vector<8x1xf32>
    %cst_124 = arith.constant 0.000000e+00 : f32
    %494 = vector.broadcast %cst_124 : f32 to vector<8x1xf32>
    %495 = arith.maximumf %493, %494 : vector<8x1xf32>
    %496 = vector.shape_cast %495 : vector<8x1xf32> to vector<1x8x1xf32>
    %cst_125 = arith.constant dense<0.000000e+00> : vector<1xf32>
    %497 = vector.multi_reduction <add>, %496, %cst_125 [1, 2] : vector<1x8x1xf32> to vector<1xf32>
    %498 = vector.shape_cast %497 : vector<1xf32> to vector<1x1x1xf32>
    %499 = vector.extract %498[0, 0, 0] : f32 from vector<1x1x1xf32>
    %cst_126 = arith.constant 1.250000e-01 : f32
    %500 = arith.mulf %499, %cst_126 : f32
    %501 = vector.broadcast %474 : f32 to vector<1x1xf32>
    %502 = arith.addf %408, %501 : vector<1x1xf32>
    %503 = vector.broadcast %500 : f32 to vector<1x1xf32>
    %504 = arith.addf %502, %503 : vector<1x1xf32>
    %c5 = arith.constant 5 : index
    %c0_127 = arith.constant 0 : index
    %c0_128 = arith.constant 0 : index
    %505 = vector.load %arg3[%c5, %c0_127, %c0_128] : memref<8x8x32xf32, #tpu.memory_space<vmem>>, vector<1x8x32xf32>
    %506 = vector.shape_cast %505 : vector<1x8x32xf32> to vector<8x32xf32>
    %c5_129 = arith.constant 5 : index
    %c0_130 = arith.constant 0 : index
    %c0_131 = arith.constant 0 : index
    %507 = vector.load %arg4[%c5_129, %c0_130, %c0_131] : memref<8x8x32xf32, #tpu.memory_space<vmem>>, vector<1x8x32xf32>
    %508 = vector.shape_cast %507 : vector<1x8x32xf32> to vector<8x32xf32>
    %509 = arith.mulf %506, %506 : vector<8x32xf32>
    %cst_132 = arith.constant dense<0.000000e+00> : vector<8xf32>
    %510 = vector.multi_reduction <add>, %509, %cst_132 [1] : vector<8x32xf32> to vector<8xf32>
    %511 = vector.shape_cast %510 : vector<8xf32> to vector<8x1xf32>
    %512 = arith.mulf %508, %508 : vector<8x32xf32>
    %cst_133 = arith.constant dense<0.000000e+00> : vector<8xf32>
    %513 = vector.multi_reduction <add>, %512, %cst_133 [1] : vector<8x32xf32> to vector<8xf32>
    %514 = vector.shape_cast %513 : vector<8xf32> to vector<8x1xf32>
    %515 = math.rsqrt %511 : vector<8x1xf32>
    %516 = math.rsqrt %514 : vector<8x1xf32>
    %517 = tpu.transpose %508, [1, 0] : vector<8x32xf32> -> vector<32x8xf32>
    %cst_134 = arith.constant dense<0.000000e+00> : vector<8x8xf32>
    %518 = tpu.matmul %506, %517, %cst_134 {dimension_numbers = #tpu.dot_dimension_numbers<[1], [0], [0], [1], [0, 0, 1, 1], [], []>} : vector<8x32xf32>, vector<32x8xf32>, vector<8x8xf32> -> vector<8x8xf32>
    %519 = tpu.transpose %516, [1, 0] : vector<8x1xf32> -> vector<1x8xf32>
    %520 = vector.broadcast %519 : vector<1x8xf32> to vector<8x8xf32>
    %521 = arith.mulf %518, %520 : vector<8x8xf32>
    %522 = tpu.transpose %518, [1, 0] : vector<8x8xf32> -> vector<8x8xf32>
    %523 = tpu.transpose %515, [1, 0] : vector<8x1xf32> -> vector<1x8xf32>
    %524 = vector.broadcast %523 : vector<1x8xf32> to vector<8x8xf32>
    %525 = arith.mulf %522, %524 : vector<8x8xf32>
    %cst_135 = arith.constant dense<0xFF800000> : vector<8xf32>
    %526 = vector.multi_reduction <maximumf>, %521, %cst_135 [1] : vector<8x8xf32> to vector<8xf32>
    %527 = vector.shape_cast %526 : vector<8xf32> to vector<8x1xf32>
    %528 = vector.broadcast %527 : vector<8x1xf32> to vector<8x8xf32>
    %529 = arith.subf %521, %528 : vector<8x8xf32>
    %530 = math.exp %529 : vector<8x8xf32>
    %cst_136 = arith.constant dense<0.000000e+00> : vector<8xf32>
    %531 = vector.multi_reduction <add>, %530, %cst_136 [1] : vector<8x8xf32> to vector<8xf32>
    %532 = vector.shape_cast %531 : vector<8xf32> to vector<8x1xf32>
    %533 = tpu.reciprocal %532 {approx = true} : vector<8x1xf32> -> vector<8x1xf32>
    %534 = vector.broadcast %533 : vector<8x1xf32> to vector<8x8xf32>
    %535 = arith.mulf %530, %534 : vector<8x8xf32>
    %536 = vector.broadcast %527 : vector<8x1xf32> to vector<8x8xf32>
    %537 = arith.subf %521, %536 : vector<8x8xf32>
    %538 = math.log %532 : vector<8x1xf32>
    %539 = vector.broadcast %538 : vector<8x1xf32> to vector<8x8xf32>
    %540 = arith.subf %537, %539 : vector<8x8xf32>
    %541 = arith.subf %540, %15 : vector<8x8xf32>
    %542 = arith.mulf %535, %541 : vector<8x8xf32>
    %543 = vector.shape_cast %542 : vector<8x8xf32> to vector<1x8x8xf32>
    %cst_137 = arith.constant dense<0.000000e+00> : vector<1xf32>
    %544 = vector.multi_reduction <add>, %543, %cst_137 [1, 2] : vector<1x8x8xf32> to vector<1xf32>
    %545 = vector.shape_cast %544 : vector<1xf32> to vector<1x1x1xf32>
    %546 = vector.extract %545[0, 0, 0] : f32 from vector<1x1x1xf32>
    %cst_138 = arith.constant 1.250000e-01 : f32
    %547 = arith.mulf %546, %cst_138 : f32
    %cst_139 = arith.constant dense<0xFF800000> : vector<8xf32>
    %548 = vector.multi_reduction <maximumf>, %525, %cst_139 [1] : vector<8x8xf32> to vector<8xf32>
    %549 = vector.shape_cast %548 : vector<8xf32> to vector<8x1xf32>
    %550 = vector.broadcast %549 : vector<8x1xf32> to vector<8x8xf32>
    %551 = arith.subf %525, %550 : vector<8x8xf32>
    %552 = math.exp %551 : vector<8x8xf32>
    %cst_140 = arith.constant dense<0.000000e+00> : vector<8xf32>
    %553 = vector.multi_reduction <add>, %552, %cst_140 [1] : vector<8x8xf32> to vector<8xf32>
    %554 = vector.shape_cast %553 : vector<8xf32> to vector<8x1xf32>
    %555 = tpu.reciprocal %554 {approx = true} : vector<8x1xf32> -> vector<8x1xf32>
    %556 = vector.broadcast %555 : vector<8x1xf32> to vector<8x8xf32>
    %557 = arith.mulf %552, %556 : vector<8x8xf32>
    %558 = vector.broadcast %549 : vector<8x1xf32> to vector<8x8xf32>
    %559 = arith.subf %525, %558 : vector<8x8xf32>
    %560 = math.log %554 : vector<8x1xf32>
    %561 = vector.broadcast %560 : vector<8x1xf32> to vector<8x8xf32>
    %562 = arith.subf %559, %561 : vector<8x8xf32>
    %563 = arith.subf %562, %15 : vector<8x8xf32>
    %564 = arith.mulf %557, %563 : vector<8x8xf32>
    %565 = vector.shape_cast %564 : vector<8x8xf32> to vector<1x8x8xf32>
    %cst_141 = arith.constant dense<0.000000e+00> : vector<1xf32>
    %566 = vector.multi_reduction <add>, %565, %cst_141 [1, 2] : vector<1x8x8xf32> to vector<1xf32>
    %567 = vector.shape_cast %566 : vector<1xf32> to vector<1x1x1xf32>
    %568 = vector.extract %567[0, 0, 0] : f32 from vector<1x1x1xf32>
    %cst_142 = arith.constant 1.250000e-01 : f32
    %569 = arith.mulf %568, %cst_142 : f32
    %570 = arith.addf %547, %569 : f32
    %571 = tpu.transpose %514, [1, 0] : vector<8x1xf32> -> vector<1x8xf32>
    %572 = vector.broadcast %511 : vector<8x1xf32> to vector<8x8xf32>
    %573 = vector.broadcast %571 : vector<1x8xf32> to vector<8x8xf32>
    %574 = arith.addf %572, %573 : vector<8x8xf32>
    %cst_143 = arith.constant 2.000000e+00 : f32
    %575 = vector.broadcast %cst_143 : f32 to vector<8x8xf32>
    %576 = arith.mulf %575, %518 : vector<8x8xf32>
    %577 = arith.subf %574, %576 : vector<8x8xf32>
    %cst_144 = arith.constant 0.000000e+00 : f32
    %578 = vector.broadcast %cst_144 : f32 to vector<8x8xf32>
    %579 = arith.maximumf %577, %578 : vector<8x8xf32>
    %580 = math.sqrt %579 : vector<8x8xf32>
    %581 = arith.mulf %580, %21 : vector<8x8xf32>
    %cst_145 = arith.constant dense<0xFF800000> : vector<8xf32>
    %582 = vector.multi_reduction <maximumf>, %581, %cst_145 [1] : vector<8x8xf32> to vector<8xf32>
    %583 = vector.shape_cast %582 : vector<8xf32> to vector<8x1xf32>
    %584 = arith.addf %580, %23 : vector<8x8xf32>
    %cst_146 = arith.constant dense<0x7F800000> : vector<8xf32>
    %585 = vector.multi_reduction <minimumf>, %584, %cst_146 [1] : vector<8x8xf32> to vector<8xf32>
    %586 = vector.shape_cast %585 : vector<8xf32> to vector<8x1xf32>
    %587 = arith.subf %583, %586 : vector<8x1xf32>
    %cst_147 = arith.constant 5.000000e-01 : f32
    %588 = vector.broadcast %cst_147 : f32 to vector<8x1xf32>
    %589 = arith.addf %587, %588 : vector<8x1xf32>
    %cst_148 = arith.constant 0.000000e+00 : f32
    %590 = vector.broadcast %cst_148 : f32 to vector<8x1xf32>
    %591 = arith.maximumf %589, %590 : vector<8x1xf32>
    %592 = vector.shape_cast %591 : vector<8x1xf32> to vector<1x8x1xf32>
    %cst_149 = arith.constant dense<0.000000e+00> : vector<1xf32>
    %593 = vector.multi_reduction <add>, %592, %cst_149 [1, 2] : vector<1x8x1xf32> to vector<1xf32>
    %594 = vector.shape_cast %593 : vector<1xf32> to vector<1x1x1xf32>
    %595 = vector.extract %594[0, 0, 0] : f32 from vector<1x1x1xf32>
    %cst_150 = arith.constant 1.250000e-01 : f32
    %596 = arith.mulf %595, %cst_150 : f32
    %597 = vector.broadcast %570 : f32 to vector<1x1xf32>
    %598 = arith.addf %504, %597 : vector<1x1xf32>
    %599 = vector.broadcast %596 : f32 to vector<1x1xf32>
    %600 = arith.addf %598, %599 : vector<1x1xf32>
    %c6 = arith.constant 6 : index
    %c0_151 = arith.constant 0 : index
    %c0_152 = arith.constant 0 : index
    %601 = vector.load %arg3[%c6, %c0_151, %c0_152] : memref<8x8x32xf32, #tpu.memory_space<vmem>>, vector<1x8x32xf32>
    %602 = vector.shape_cast %601 : vector<1x8x32xf32> to vector<8x32xf32>
    %c6_153 = arith.constant 6 : index
    %c0_154 = arith.constant 0 : index
    %c0_155 = arith.constant 0 : index
    %603 = vector.load %arg4[%c6_153, %c0_154, %c0_155] : memref<8x8x32xf32, #tpu.memory_space<vmem>>, vector<1x8x32xf32>
    %604 = vector.shape_cast %603 : vector<1x8x32xf32> to vector<8x32xf32>
    %605 = arith.mulf %602, %602 : vector<8x32xf32>
    %cst_156 = arith.constant dense<0.000000e+00> : vector<8xf32>
    %606 = vector.multi_reduction <add>, %605, %cst_156 [1] : vector<8x32xf32> to vector<8xf32>
    %607 = vector.shape_cast %606 : vector<8xf32> to vector<8x1xf32>
    %608 = arith.mulf %604, %604 : vector<8x32xf32>
    %cst_157 = arith.constant dense<0.000000e+00> : vector<8xf32>
    %609 = vector.multi_reduction <add>, %608, %cst_157 [1] : vector<8x32xf32> to vector<8xf32>
    %610 = vector.shape_cast %609 : vector<8xf32> to vector<8x1xf32>
    %611 = math.rsqrt %607 : vector<8x1xf32>
    %612 = math.rsqrt %610 : vector<8x1xf32>
    %613 = tpu.transpose %604, [1, 0] : vector<8x32xf32> -> vector<32x8xf32>
    %cst_158 = arith.constant dense<0.000000e+00> : vector<8x8xf32>
    %614 = tpu.matmul %602, %613, %cst_158 {dimension_numbers = #tpu.dot_dimension_numbers<[1], [0], [0], [1], [0, 0, 1, 1], [], []>} : vector<8x32xf32>, vector<32x8xf32>, vector<8x8xf32> -> vector<8x8xf32>
    %615 = tpu.transpose %612, [1, 0] : vector<8x1xf32> -> vector<1x8xf32>
    %616 = vector.broadcast %615 : vector<1x8xf32> to vector<8x8xf32>
    %617 = arith.mulf %614, %616 : vector<8x8xf32>
    %618 = tpu.transpose %614, [1, 0] : vector<8x8xf32> -> vector<8x8xf32>
    %619 = tpu.transpose %611, [1, 0] : vector<8x1xf32> -> vector<1x8xf32>
    %620 = vector.broadcast %619 : vector<1x8xf32> to vector<8x8xf32>
    %621 = arith.mulf %618, %620 : vector<8x8xf32>
    %cst_159 = arith.constant dense<0xFF800000> : vector<8xf32>
    %622 = vector.multi_reduction <maximumf>, %617, %cst_159 [1] : vector<8x8xf32> to vector<8xf32>
    %623 = vector.shape_cast %622 : vector<8xf32> to vector<8x1xf32>
    %624 = vector.broadcast %623 : vector<8x1xf32> to vector<8x8xf32>
    %625 = arith.subf %617, %624 : vector<8x8xf32>
    %626 = math.exp %625 : vector<8x8xf32>
    %cst_160 = arith.constant dense<0.000000e+00> : vector<8xf32>
    %627 = vector.multi_reduction <add>, %626, %cst_160 [1] : vector<8x8xf32> to vector<8xf32>
    %628 = vector.shape_cast %627 : vector<8xf32> to vector<8x1xf32>
    %629 = tpu.reciprocal %628 {approx = true} : vector<8x1xf32> -> vector<8x1xf32>
    %630 = vector.broadcast %629 : vector<8x1xf32> to vector<8x8xf32>
    %631 = arith.mulf %626, %630 : vector<8x8xf32>
    %632 = vector.broadcast %623 : vector<8x1xf32> to vector<8x8xf32>
    %633 = arith.subf %617, %632 : vector<8x8xf32>
    %634 = math.log %628 : vector<8x1xf32>
    %635 = vector.broadcast %634 : vector<8x1xf32> to vector<8x8xf32>
    %636 = arith.subf %633, %635 : vector<8x8xf32>
    %637 = arith.subf %636, %15 : vector<8x8xf32>
    %638 = arith.mulf %631, %637 : vector<8x8xf32>
    %639 = vector.shape_cast %638 : vector<8x8xf32> to vector<1x8x8xf32>
    %cst_161 = arith.constant dense<0.000000e+00> : vector<1xf32>
    %640 = vector.multi_reduction <add>, %639, %cst_161 [1, 2] : vector<1x8x8xf32> to vector<1xf32>
    %641 = vector.shape_cast %640 : vector<1xf32> to vector<1x1x1xf32>
    %642 = vector.extract %641[0, 0, 0] : f32 from vector<1x1x1xf32>
    %cst_162 = arith.constant 1.250000e-01 : f32
    %643 = arith.mulf %642, %cst_162 : f32
    %cst_163 = arith.constant dense<0xFF800000> : vector<8xf32>
    %644 = vector.multi_reduction <maximumf>, %621, %cst_163 [1] : vector<8x8xf32> to vector<8xf32>
    %645 = vector.shape_cast %644 : vector<8xf32> to vector<8x1xf32>
    %646 = vector.broadcast %645 : vector<8x1xf32> to vector<8x8xf32>
    %647 = arith.subf %621, %646 : vector<8x8xf32>
    %648 = math.exp %647 : vector<8x8xf32>
    %cst_164 = arith.constant dense<0.000000e+00> : vector<8xf32>
    %649 = vector.multi_reduction <add>, %648, %cst_164 [1] : vector<8x8xf32> to vector<8xf32>
    %650 = vector.shape_cast %649 : vector<8xf32> to vector<8x1xf32>
    %651 = tpu.reciprocal %650 {approx = true} : vector<8x1xf32> -> vector<8x1xf32>
    %652 = vector.broadcast %651 : vector<8x1xf32> to vector<8x8xf32>
    %653 = arith.mulf %648, %652 : vector<8x8xf32>
    %654 = vector.broadcast %645 : vector<8x1xf32> to vector<8x8xf32>
    %655 = arith.subf %621, %654 : vector<8x8xf32>
    %656 = math.log %650 : vector<8x1xf32>
    %657 = vector.broadcast %656 : vector<8x1xf32> to vector<8x8xf32>
    %658 = arith.subf %655, %657 : vector<8x8xf32>
    %659 = arith.subf %658, %15 : vector<8x8xf32>
    %660 = arith.mulf %653, %659 : vector<8x8xf32>
    %661 = vector.shape_cast %660 : vector<8x8xf32> to vector<1x8x8xf32>
    %cst_165 = arith.constant dense<0.000000e+00> : vector<1xf32>
    %662 = vector.multi_reduction <add>, %661, %cst_165 [1, 2] : vector<1x8x8xf32> to vector<1xf32>
    %663 = vector.shape_cast %662 : vector<1xf32> to vector<1x1x1xf32>
    %664 = vector.extract %663[0, 0, 0] : f32 from vector<1x1x1xf32>
    %cst_166 = arith.constant 1.250000e-01 : f32
    %665 = arith.mulf %664, %cst_166 : f32
    %666 = arith.addf %643, %665 : f32
    %667 = tpu.transpose %610, [1, 0] : vector<8x1xf32> -> vector<1x8xf32>
    %668 = vector.broadcast %607 : vector<8x1xf32> to vector<8x8xf32>
    %669 = vector.broadcast %667 : vector<1x8xf32> to vector<8x8xf32>
    %670 = arith.addf %668, %669 : vector<8x8xf32>
    %cst_167 = arith.constant 2.000000e+00 : f32
    %671 = vector.broadcast %cst_167 : f32 to vector<8x8xf32>
    %672 = arith.mulf %671, %614 : vector<8x8xf32>
    %673 = arith.subf %670, %672 : vector<8x8xf32>
    %cst_168 = arith.constant 0.000000e+00 : f32
    %674 = vector.broadcast %cst_168 : f32 to vector<8x8xf32>
    %675 = arith.maximumf %673, %674 : vector<8x8xf32>
    %676 = math.sqrt %675 : vector<8x8xf32>
    %677 = arith.mulf %676, %21 : vector<8x8xf32>
    %cst_169 = arith.constant dense<0xFF800000> : vector<8xf32>
    %678 = vector.multi_reduction <maximumf>, %677, %cst_169 [1] : vector<8x8xf32> to vector<8xf32>
    %679 = vector.shape_cast %678 : vector<8xf32> to vector<8x1xf32>
    %680 = arith.addf %676, %23 : vector<8x8xf32>
    %cst_170 = arith.constant dense<0x7F800000> : vector<8xf32>
    %681 = vector.multi_reduction <minimumf>, %680, %cst_170 [1] : vector<8x8xf32> to vector<8xf32>
    %682 = vector.shape_cast %681 : vector<8xf32> to vector<8x1xf32>
    %683 = arith.subf %679, %682 : vector<8x1xf32>
    %cst_171 = arith.constant 5.000000e-01 : f32
    %684 = vector.broadcast %cst_171 : f32 to vector<8x1xf32>
    %685 = arith.addf %683, %684 : vector<8x1xf32>
    %cst_172 = arith.constant 0.000000e+00 : f32
    %686 = vector.broadcast %cst_172 : f32 to vector<8x1xf32>
    %687 = arith.maximumf %685, %686 : vector<8x1xf32>
    %688 = vector.shape_cast %687 : vector<8x1xf32> to vector<1x8x1xf32>
    %cst_173 = arith.constant dense<0.000000e+00> : vector<1xf32>
    %689 = vector.multi_reduction <add>, %688, %cst_173 [1, 2] : vector<1x8x1xf32> to vector<1xf32>
    %690 = vector.shape_cast %689 : vector<1xf32> to vector<1x1x1xf32>
    %691 = vector.extract %690[0, 0, 0] : f32 from vector<1x1x1xf32>
    %cst_174 = arith.constant 1.250000e-01 : f32
    %692 = arith.mulf %691, %cst_174 : f32
    %693 = vector.broadcast %666 : f32 to vector<1x1xf32>
    %694 = arith.addf %600, %693 : vector<1x1xf32>
    %695 = vector.broadcast %692 : f32 to vector<1x1xf32>
    %696 = arith.addf %694, %695 : vector<1x1xf32>
    %c7 = arith.constant 7 : index
    %c0_175 = arith.constant 0 : index
    %c0_176 = arith.constant 0 : index
    %697 = vector.load %arg3[%c7, %c0_175, %c0_176] : memref<8x8x32xf32, #tpu.memory_space<vmem>>, vector<1x8x32xf32>
    %698 = vector.shape_cast %697 : vector<1x8x32xf32> to vector<8x32xf32>
    %c7_177 = arith.constant 7 : index
    %c0_178 = arith.constant 0 : index
    %c0_179 = arith.constant 0 : index
    %699 = vector.load %arg4[%c7_177, %c0_178, %c0_179] : memref<8x8x32xf32, #tpu.memory_space<vmem>>, vector<1x8x32xf32>
    %700 = vector.shape_cast %699 : vector<1x8x32xf32> to vector<8x32xf32>
    %701 = arith.mulf %698, %698 : vector<8x32xf32>
    %cst_180 = arith.constant dense<0.000000e+00> : vector<8xf32>
    %702 = vector.multi_reduction <add>, %701, %cst_180 [1] : vector<8x32xf32> to vector<8xf32>
    %703 = vector.shape_cast %702 : vector<8xf32> to vector<8x1xf32>
    %704 = arith.mulf %700, %700 : vector<8x32xf32>
    %cst_181 = arith.constant dense<0.000000e+00> : vector<8xf32>
    %705 = vector.multi_reduction <add>, %704, %cst_181 [1] : vector<8x32xf32> to vector<8xf32>
    %706 = vector.shape_cast %705 : vector<8xf32> to vector<8x1xf32>
    %707 = math.rsqrt %703 : vector<8x1xf32>
    %708 = math.rsqrt %706 : vector<8x1xf32>
    %709 = tpu.transpose %700, [1, 0] : vector<8x32xf32> -> vector<32x8xf32>
    %cst_182 = arith.constant dense<0.000000e+00> : vector<8x8xf32>
    %710 = tpu.matmul %698, %709, %cst_182 {dimension_numbers = #tpu.dot_dimension_numbers<[1], [0], [0], [1], [0, 0, 1, 1], [], []>} : vector<8x32xf32>, vector<32x8xf32>, vector<8x8xf32> -> vector<8x8xf32>
    %711 = tpu.transpose %708, [1, 0] : vector<8x1xf32> -> vector<1x8xf32>
    %712 = vector.broadcast %711 : vector<1x8xf32> to vector<8x8xf32>
    %713 = arith.mulf %710, %712 : vector<8x8xf32>
    %714 = tpu.transpose %710, [1, 0] : vector<8x8xf32> -> vector<8x8xf32>
    %715 = tpu.transpose %707, [1, 0] : vector<8x1xf32> -> vector<1x8xf32>
    %716 = vector.broadcast %715 : vector<1x8xf32> to vector<8x8xf32>
    %717 = arith.mulf %714, %716 : vector<8x8xf32>
    %cst_183 = arith.constant dense<0xFF800000> : vector<8xf32>
    %718 = vector.multi_reduction <maximumf>, %713, %cst_183 [1] : vector<8x8xf32> to vector<8xf32>
    %719 = vector.shape_cast %718 : vector<8xf32> to vector<8x1xf32>
    %720 = vector.broadcast %719 : vector<8x1xf32> to vector<8x8xf32>
    %721 = arith.subf %713, %720 : vector<8x8xf32>
    %722 = math.exp %721 : vector<8x8xf32>
    %cst_184 = arith.constant dense<0.000000e+00> : vector<8xf32>
    %723 = vector.multi_reduction <add>, %722, %cst_184 [1] : vector<8x8xf32> to vector<8xf32>
    %724 = vector.shape_cast %723 : vector<8xf32> to vector<8x1xf32>
    %725 = tpu.reciprocal %724 {approx = true} : vector<8x1xf32> -> vector<8x1xf32>
    %726 = vector.broadcast %725 : vector<8x1xf32> to vector<8x8xf32>
    %727 = arith.mulf %722, %726 : vector<8x8xf32>
    %728 = vector.broadcast %719 : vector<8x1xf32> to vector<8x8xf32>
    %729 = arith.subf %713, %728 : vector<8x8xf32>
    %730 = math.log %724 : vector<8x1xf32>
    %731 = vector.broadcast %730 : vector<8x1xf32> to vector<8x8xf32>
    %732 = arith.subf %729, %731 : vector<8x8xf32>
    %733 = arith.subf %732, %15 : vector<8x8xf32>
    %734 = arith.mulf %727, %733 : vector<8x8xf32>
    %735 = vector.shape_cast %734 : vector<8x8xf32> to vector<1x8x8xf32>
    %cst_185 = arith.constant dense<0.000000e+00> : vector<1xf32>
    %736 = vector.multi_reduction <add>, %735, %cst_185 [1, 2] : vector<1x8x8xf32> to vector<1xf32>
    %737 = vector.shape_cast %736 : vector<1xf32> to vector<1x1x1xf32>
    %738 = vector.extract %737[0, 0, 0] : f32 from vector<1x1x1xf32>
    %cst_186 = arith.constant 1.250000e-01 : f32
    %739 = arith.mulf %738, %cst_186 : f32
    %cst_187 = arith.constant dense<0xFF800000> : vector<8xf32>
    %740 = vector.multi_reduction <maximumf>, %717, %cst_187 [1] : vector<8x8xf32> to vector<8xf32>
    %741 = vector.shape_cast %740 : vector<8xf32> to vector<8x1xf32>
    %742 = vector.broadcast %741 : vector<8x1xf32> to vector<8x8xf32>
    %743 = arith.subf %717, %742 : vector<8x8xf32>
    %744 = math.exp %743 : vector<8x8xf32>
    %cst_188 = arith.constant dense<0.000000e+00> : vector<8xf32>
    %745 = vector.multi_reduction <add>, %744, %cst_188 [1] : vector<8x8xf32> to vector<8xf32>
    %746 = vector.shape_cast %745 : vector<8xf32> to vector<8x1xf32>
    %747 = tpu.reciprocal %746 {approx = true} : vector<8x1xf32> -> vector<8x1xf32>
    %748 = vector.broadcast %747 : vector<8x1xf32> to vector<8x8xf32>
    %749 = arith.mulf %744, %748 : vector<8x8xf32>
    %750 = vector.broadcast %741 : vector<8x1xf32> to vector<8x8xf32>
    %751 = arith.subf %717, %750 : vector<8x8xf32>
    %752 = math.log %746 : vector<8x1xf32>
    %753 = vector.broadcast %752 : vector<8x1xf32> to vector<8x8xf32>
    %754 = arith.subf %751, %753 : vector<8x8xf32>
    %755 = arith.subf %754, %15 : vector<8x8xf32>
    %756 = arith.mulf %749, %755 : vector<8x8xf32>
    %757 = vector.shape_cast %756 : vector<8x8xf32> to vector<1x8x8xf32>
    %cst_189 = arith.constant dense<0.000000e+00> : vector<1xf32>
    %758 = vector.multi_reduction <add>, %757, %cst_189 [1, 2] : vector<1x8x8xf32> to vector<1xf32>
    %759 = vector.shape_cast %758 : vector<1xf32> to vector<1x1x1xf32>
    %760 = vector.extract %759[0, 0, 0] : f32 from vector<1x1x1xf32>
    %cst_190 = arith.constant 1.250000e-01 : f32
    %761 = arith.mulf %760, %cst_190 : f32
    %762 = arith.addf %739, %761 : f32
    %763 = tpu.transpose %706, [1, 0] : vector<8x1xf32> -> vector<1x8xf32>
    %764 = vector.broadcast %703 : vector<8x1xf32> to vector<8x8xf32>
    %765 = vector.broadcast %763 : vector<1x8xf32> to vector<8x8xf32>
    %766 = arith.addf %764, %765 : vector<8x8xf32>
    %cst_191 = arith.constant 2.000000e+00 : f32
    %767 = vector.broadcast %cst_191 : f32 to vector<8x8xf32>
    %768 = arith.mulf %767, %710 : vector<8x8xf32>
    %769 = arith.subf %766, %768 : vector<8x8xf32>
    %cst_192 = arith.constant 0.000000e+00 : f32
    %770 = vector.broadcast %cst_192 : f32 to vector<8x8xf32>
    %771 = arith.maximumf %769, %770 : vector<8x8xf32>
    %772 = math.sqrt %771 : vector<8x8xf32>
    %773 = arith.mulf %772, %21 : vector<8x8xf32>
    %cst_193 = arith.constant dense<0xFF800000> : vector<8xf32>
    %774 = vector.multi_reduction <maximumf>, %773, %cst_193 [1] : vector<8x8xf32> to vector<8xf32>
    %775 = vector.shape_cast %774 : vector<8xf32> to vector<8x1xf32>
    %776 = arith.addf %772, %23 : vector<8x8xf32>
    %cst_194 = arith.constant dense<0x7F800000> : vector<8xf32>
    %777 = vector.multi_reduction <minimumf>, %776, %cst_194 [1] : vector<8x8xf32> to vector<8xf32>
    %778 = vector.shape_cast %777 : vector<8xf32> to vector<8x1xf32>
    %779 = arith.subf %775, %778 : vector<8x1xf32>
    %cst_195 = arith.constant 5.000000e-01 : f32
    %780 = vector.broadcast %cst_195 : f32 to vector<8x1xf32>
    %781 = arith.addf %779, %780 : vector<8x1xf32>
    %cst_196 = arith.constant 0.000000e+00 : f32
    %782 = vector.broadcast %cst_196 : f32 to vector<8x1xf32>
    %783 = arith.maximumf %781, %782 : vector<8x1xf32>
    %784 = vector.shape_cast %783 : vector<8x1xf32> to vector<1x8x1xf32>
    %cst_197 = arith.constant dense<0.000000e+00> : vector<1xf32>
    %785 = vector.multi_reduction <add>, %784, %cst_197 [1, 2] : vector<1x8x1xf32> to vector<1xf32>
    %786 = vector.shape_cast %785 : vector<1xf32> to vector<1x1x1xf32>
    %787 = vector.extract %786[0, 0, 0] : f32 from vector<1x1x1xf32>
    %cst_198 = arith.constant 1.250000e-01 : f32
    %788 = arith.mulf %787, %cst_198 : f32
    %789 = vector.broadcast %762 : f32 to vector<1x1xf32>
    %790 = arith.addf %696, %789 : vector<1x1xf32>
    %791 = vector.broadcast %788 : f32 to vector<1x1xf32>
    %792 = arith.addf %790, %791 : vector<1x1xf32>
    %c0_199 = arith.constant 0 : index
    %c0_200 = arith.constant 0 : index
    %793 = vector.load %arg5[%c0_199, %c0_200] : memref<1x1xf32, #tpu.memory_space<vmem>>, vector<1x1xf32>
    tpu.vector_store %arg5[%c0_199, %c0_200], %792 {strides = array<i32>} : memref<1x1xf32, #tpu.memory_space<vmem>>, vector<1x1xf32>,
    return
  }
  func.func @transform_0(%arg0: i32) -> (i32, i32) {
    %c0_i32 = arith.constant 0 : i32
    %c0_i32_0 = arith.constant 0 : i32
    %c0_i32_1 = arith.constant 0 : i32
    return %c0_i32, %c0_i32_0 : i32, i32
  }
  func.func @transform_1(%arg0: i32) -> (i32, i32) {
    %c0_i32 = arith.constant 0 : i32
    %c0_i32_0 = arith.constant 0 : i32
    %c0_i32_1 = arith.constant 0 : i32
    return %c0_i32, %c0_i32_0 : i32, i32
  }
  func.func @transform_2(%arg0: i32) -> (i32, i32, i32) {
    %c0_i32 = arith.constant 0 : i32
    %c0_i32_0 = arith.constant 0 : i32
    %c0_i32_1 = arith.constant 0 : i32
    %c0_i32_2 = arith.constant 0 : i32
    return %c0_i32, %c0_i32_0, %c0_i32_1 : i32, i32, i32
  }
  func.func @transform_3(%arg0: i32) -> (i32, i32, i32) {
    %c0_i32 = arith.constant 0 : i32
    %c0_i32_0 = arith.constant 0 : i32
    %c0_i32_1 = arith.constant 0 : i32
    %c0_i32_2 = arith.constant 0 : i32
    return %c0_i32, %c0_i32_0, %c0_i32_1 : i32, i32, i32
  }
  func.func @transform_4(%arg0: i32) -> (i32, i32) {
    %c0_i32 = arith.constant 0 : i32
    %c0_i32_0 = arith.constant 0 : i32
    %c0_i32_1 = arith.constant 0 : i32
    return %c0_i32, %c0_i32_0 : i32, i32
  }
}

</mosaic_0001>

<llo_original>
// kernel: tpu_custom_call.1
$region0: #{tpu_custom_call.1}
  #allocation0 [shape = 'u32[]', space=smem, size = 0x4, offset = 0x4, fixed_abs, tag = 'smem constant byte address 0x4 - core index']
  #allocation1 [shape = 'u32[144,128]{1,0:T(1,128)}', space=vmem, size = 0x12000, scoped, tag = 'internal scratch']
  %s0 = inlined_call_operand.vmem [shape: f32[1,8], index: 0, kind: input, shape index: {}]
  %s1 = inlined_call_operand.vmem [shape: f32[8,1], index: 1, kind: input, shape index: {}]
  %s2 = inlined_call_operand.hbm [shape: f32[8,8,32], index: 2, kind: input, shape index: {}]
  %s3 = inlined_call_operand.hbm [shape: f32[8,8,32], index: 3, kind: input, shape index: {}]
  %s4 = inlined_call_operand.hbm [shape: f32[1,1], index: 4, kind: output, shape index: {}]
  %s5 = sld [smem:[#allocation0]]
  $region34: #{tpu_custom_call.1} parent=0
    _
  %s7 = ssub.s32 1, %s5
  %s8 = scalar_select 0, %s7, %s5
  $region1: #{tpu_custom_call.1} parent=0
    #allocation2 [shape = 'u8[32768]{0}', space=vmem, size = 0x8000, scoped, tag = 'input window, operand 2, single buffered']
    #allocation3 [shape = 's32[1]{0}', space=sflag, size = 0x4, scoped, tag = 'scoped memory for tpu_custom_call.1']
    #allocation4 [shape = 's32[1]{0}', space=sflag, size = 0x4, scoped, tag = 'scoped memory for tpu_custom_call.1']
    #allocation5 [shape = 'u8[32768]{0}', space=vmem, size = 0x8000, scoped, tag = 'input window, operand 3, single buffered']
    #allocation6 [shape = 's32[1]{0}', space=sflag, size = 0x4, scoped, tag = 'scoped memory for tpu_custom_call.1']
    #allocation7 [shape = 'u8[512]{0}', space=vmem, size = 0x400, scoped, tag = 'output window, operand 0, single buffered']
    %9 = vsyncpa [#allocation3], 0
    %10 = vsyncpa [#allocation6], 0
    %11 = vsyncpa [#allocation4], 0
    // Predicated region
    $region2: #{tpu_custom_call.1} parent=1 // pred_check
      _
    $region3: #{tpu_custom_call.1} parent=1 // pred_check_branch
      %13 = sbr.rel (0) target = $region5
    $region4: #{tpu_custom_call.1} parent=1 // pred_region
      _
    $region5: #{tpu_custom_call.1} parent=1 // pred_fallthru
      _
    // Predicated region
    $region6: #{tpu_custom_call.1} parent=1 // pred_check
      _
    $region7: #{tpu_custom_call.1} parent=1 // pred_check_branch
      %15 = sbr.rel (0) target = $region9
    $region8: #{tpu_custom_call.1} parent=1 // pred_region
      _
    $region9: #{tpu_custom_call.1} parent=1 // pred_fallthru
      _
    // Predicated region
    $region10: #{tpu_custom_call.1} parent=1 // pred_check
      _
    $region11: #{tpu_custom_call.1} parent=1 // pred_check_branch
      %17 = sbr.rel (0) target = $region13
    $region12: #{tpu_custom_call.1} parent=1 // pred_region
      %s19 = ssub.s32 1024, 1024
      %20 = vsyncadd [#allocation3], %s19
      %s21 = sshll.u32 [#allocation2], 4
      %s22 = int_to_ptr.vmem [resolvable:$true] %s21
      %27 = dma.hbm_to_vmem [thread:$0]  %s2, 1024, %s22, [#allocation3], 128, 128, 8
    $region13: #{tpu_custom_call.1} parent=1 // pred_fallthru
      _
    // Predicated region
    $region14: #{tpu_custom_call.1} parent=1 // pred_check
      _
    $region15: #{tpu_custom_call.1} parent=1 // pred_check_branch
      %29 = sbr.rel (0) target = $region17
    $region16: #{tpu_custom_call.1} parent=1 // pred_region
      %s31 = ssub.s32 1024, 1024
      %32 = vsyncadd [#allocation6], %s31
      %s33 = sshll.u32 [#allocation5], 4
      %s34 = int_to_ptr.vmem [resolvable:$true] %s33
      %39 = dma.hbm_to_vmem [thread:$0]  %s3, 1024, %s34, [#allocation6], 128, 128, 8
    $region17: #{tpu_custom_call.1} parent=1 // pred_fallthru
      _
    // Predicated region
    $region18: #{tpu_custom_call.1} parent=1 // pred_check
      _
    $region19: #{tpu_custom_call.1} parent=1 // pred_check_branch
      %41 = sbr.rel (0) target = $region21
    $region20: #{tpu_custom_call.1} parent=1 // pred_region
      %42 = dma.done [#allocation3], 1024
    $region21: #{tpu_custom_call.1} parent=1 // pred_fallthru
      _
    // Predicated region
    $region22: #{tpu_custom_call.1} parent=1 // pred_check
      _
    $region23: #{tpu_custom_call.1} parent=1 // pred_check_branch
      %44 = sbr.rel (0) target = $region25
    $region24: #{tpu_custom_call.1} parent=1 // pred_region
      %45 = dma.done [#allocation6], 1024
    $region25: #{tpu_custom_call.1} parent=1 // pred_fallthru
      _
    %v46 = vld [vmem:[%s0] sm:$0x1]
    %v47 = vld [vmem:[%s1] sm:$0xff]
    %49 = vset.pattern.permute.xlu0 0
    %50 = vperm.xlu0 %49, %v47
    %v51 = vpop.permute.xlu0 %50
    %v54 = vlaneseq
    %v55 = vshrl.u32 %v54, 7
    %v56 = vsub.s32 0, %v55
    %v57 = vrot.slane %v46, %v56
    %vm59 = vcmp.eq.f32.partialorder %v51, %v57
    %v60 = vsel %vm59, 1, 0
    %v61 = vcvt.s32.f32 %v60
    %v62 = vmul.f32 %v61, %v61
    %vm63 = vcmask 64512
    %v64 = vsel %vm63, %v62, 0.0
    %v65 = vrot.slane %v64, 4
    %v66 = vadd.f32 %v64, %v65
    %v67 = vrot.slane %v66, 2
    %v68 = vadd.f32 %v66, %v67
    %v69 = vrot.slane %v68, 1
    %v70 = vadd.f32 %v68, %v69
    %v71 = vrsqrt.pop %v70
    %v72 = vmul.f32 %v70, %v71
    %vm73 = vcmp.eq.f32.partialorder %v70, inf
    %v74 = vsel %vm73, %v70, %v72
    %vm75 = vcmp.eq.f32.partialorder %v70, 0.0
    %v76 = vand.u32 %v70, 2147483648
    %v77 = vsel %vm75, %v76, %v74
    %v78 = vrcp.pop %v77
    %v79 = vmul.f32 %v61, %v78
    %v80 = vadd.f32 %v79, 1e-08
    %v81 = vlog2.pop %v80
    %v82 = vmul.f32 %v81, 0.6931472
    %v83 = vlaneseq
    %v84 = vshrl.u32 %v83, 7
    %v85 = vlaneseq
    %v86 = vand.u32 %v85, 127
    %vm87 = vcmp.eq.s32.totalorder %v84, %v86
    %v88 = vsel %vm87, 1, 0
    %v89 = vcvt.s32.f32 %v88
    %v90 = vsub.f32 %v61, %v89
    %v91 = vmul.f32 %v90, 100000.0
    %v92 = vld [vmem:[#allocation2] sm:$0xff]
    %v93 = vld [vmem:[#allocation5] sm:$0xff]
    %v94 = vmul.f32 %v92, %v92
    %vm95 = vcmask 261120
    %v96 = vsel %vm95, %v94, 0.0
    %97 = vadd.xlane.f32.xlu0 %v96
    %v98 = vpop.xlane.xlu0 %97
    %v99 = vmul.f32 %v93, %v93
    %v100 = vsel %vm95, %v99, 0.0
    %101 = vadd.xlane.f32.xlu0 %v100
    %v102 = vpop.xlane.xlu0 %101
    %v103 = vrsqrt.pop %v98
    %v104 = vrsqrt.pop %v102
    %v106 = vsel %vm95, %v92, 0
    %v109 = vsel %vm95, %v93, 0
    %111 = vmatprep.subr.mxu0 0.0
    %112 = vmatpush1.xpose.msra.mxu0 0.0
    %113 = vmatprep.subr.mxu0 0.0
    %114 = vmatpush1.xpose.msra.mxu0 0.0
    %115 = vmatprep.subr.mxu0 0.0
    %116 = vmatpush1.xpose.msra.mxu0 0.0
    %117 = vmatprep.subr.mxu0 0.0
    %118 = vmatpush1.xpose.msra.mxu0 0.0
    %119 = vmatprep.subr.mxu0 0.0
    %120 = vmatpush1.xpose.msra.mxu0 0.0
    %121 = vmatprep.subr.mxu0 0.0
    %122 = vmatpush1.xpose.msra.mxu0 0.0
    %123 = vmatprep.subr.mxu0 0.0
    %124 = vmatpush1.xpose.msra.mxu0 0.0
    %125 = vmatprep.subr.mxu0 0.0
    %126 = vmatpush1.xpose.msra.mxu0 0.0
    %127 = vmatprep.subr.mxu0 0.0
    %128 = vmatpush1.xpose.msra.mxu0 0.0
    %129 = vmatprep.subr.mxu0 0.0
    %130 = vmatpush1.xpose.msra.mxu0 0.0
    %131 = vmatprep.subr.mxu0 0.0
    %132 = vmatpush1.xpose.msra.mxu0 0.0
    %133 = vmatprep.subr.mxu0 0.0
    %134 = vmatpush1.xpose.msra.mxu0 0.0
    %135 = vmatprep.subr.mxu0 0.0
    %136 = vmatpush1.xpose.msra.mxu0 0.0
    %137 = vmatprep.subr.mxu0 0.0
    %138 = vmatpush1.xpose.msra.mxu0 0.0
    %139 = vmatprep.subr.mxu0 0.0
    %140 = vmatpush1.xpose.msra.mxu0 0.0
    %141 = vmatprep.subr.mxu0 0.0
    %142 = vmatpush1.xpose.msra.mxu0 %v109
    %143 = vmatprep.subr.mxu0 0.0
    %144 = vmatpush2.xpose.msra.mxu0 0.0
    %145 = vmatprep.subr.mxu0 0.0
    %146 = vmatpush2.xpose.msra.mxu0 0.0
    %147 = vmatprep.subr.mxu0 0.0
    %148 = vmatpush2.xpose.msra.mxu0 0.0
    %149 = vmatprep.subr.mxu0 0.0
    %150 = vmatpush2.xpose.msra.mxu0 0.0
    %151 = vmatprep.subr.mxu0 0.0
    %152 = vmatpush2.xpose.msra.mxu0 0.0
    %153 = vmatprep.subr.mxu0 0.0
    %154 = vmatpush2.xpose.msra.mxu0 0.0
    %155 = vmatprep.subr.mxu0 0.0
    %156 = vmatpush2.xpose.msra.mxu0 0.0
    %157 = vmatprep.subr.mxu0 0.0
    %158 = vmatpush2.xpose.msra.mxu0 0.0
    %159 = vmatprep.subr.mxu0 0.0
    %160 = vmatpush2.xpose.msra.mxu0 0.0
    %161 = vmatprep.subr.mxu0 0.0
    %162 = vmatpush2.xpose.msra.mxu0 0.0
    %163 = vmatprep.subr.mxu0 0.0
    %164 = vmatpush2.xpose.msra.mxu0 0.0
    %165 = vmatprep.subr.mxu0 0.0
    %166 = vmatpush2.xpose.msra.mxu0 0.0
    %167 = vmatprep.subr.mxu0 0.0
    %168 = vmatpush2.xpose.msra.mxu0 0.0
    %169 = vmatprep.subr.mxu0 0.0
    %170 = vmatpush2.xpose.msra.mxu0 0.0
    %171 = vmatprep.subr.mxu0 0.0
    %172 = vmatpush2.xpose.msra.mxu0 0.0
    %173 = vmatprep.subr.mxu0 0.0
    %174 = vmatpush2.xpose.msra.mxu0 0.0
    %175 = vmatprep.mubr.f32.mxu0 0.0
    %176 = vmatmul.mubr.f32.gmra.mxu0 %v106
    %v177 = vpop.f32.mrf.mxu0
    %v178 = vadd.f32 0.0, %v177
    %v179 = vpop.f32.mrf.mxu0
    %180 = vdwg.mxu0
    %181 = vxpose.xlu0.b32.start [1/16] %v104, 128
    %182 = vxpose.xlu0.b32.cont [2/16] 0.0, 128
    %183 = vxpose.xlu0.b32.cont [3/16] 0.0, 128
    %184 = vxpose.xlu0.b32.cont [4/16] 0.0, 128
    %185 = vxpose.xlu0.b32.cont [5/16] 0.0, 128
    %186 = vxpose.xlu0.b32.cont [6/16] 0.0, 128
    %187 = vxpose.xlu0.b32.cont [7/16] 0.0, 128
    %188 = vxpose.xlu0.b32.cont [8/16] 0.0, 128
    %189 = vxpose.xlu0.b32.cont [9/16] 0.0, 128
    %190 = vxpose.xlu0.b32.cont [10/16] 0.0, 128
    %191 = vxpose.xlu0.b32.cont [11/16] 0.0, 128
    %192 = vxpose.xlu0.b32.cont [12/16] 0.0, 128
    %193 = vxpose.xlu0.b32.cont [13/16] 0.0, 128
    %194 = vxpose.xlu0.b32.cont [14/16] 0.0, 128
    %195 = vxpose.xlu0.b32.cont [15/16] 0.0, 128
    %196 = vxpose.xlu0.b32.end [16/16] 0.0, 128
    %v197 = vpop.trf.xlu0
    %v198 = vpop.trf.xlu0
    %v199 = vpop.trf.xlu0
    %v200 = vpop.trf.xlu0
    %v201 = vpop.trf.xlu0
    %v202 = vpop.trf.xlu0
    %v203 = vpop.trf.xlu0
    %v204 = vpop.trf.xlu0
    %v205 = vpop.trf.xlu0
    %v206 = vpop.trf.xlu0
    %v207 = vpop.trf.xlu0
    %v208 = vpop.trf.xlu0
    %v209 = vpop.trf.xlu0
    %v210 = vpop.trf.xlu0
    %v211 = vpop.trf.xlu0
    %v212 = vpop.trf.xlu0
    %v213 = vlaneseq
    %v214 = vshrl.u32 %v213, 7
    %v215 = vsub.s32 0, %v214
    %v216 = vrot.slane %v197, %v215
    %v217 = vmul.f32 %v178, %v216
    %218 = vxpose.xlu0.b32.start [1/16] %v178, 128
    %219 = vxpose.xlu0.b32.cont [2/16] 0.0, 128
    %220 = vxpose.xlu0.b32.cont [3/16] 0.0, 128
    %221 = vxpose.xlu0.b32.cont [4/16] 0.0, 128
    %222 = vxpose.xlu0.b32.cont [5/16] 0.0, 128
    %223 = vxpose.xlu0.b32.cont [6/16] 0.0, 128
    %224 = vxpose.xlu0.b32.cont [7/16] 0.0, 128
    %225 = vxpose.xlu0.b32.cont [8/16] 0.0, 128
    %226 = vxpose.xlu0.b32.cont [9/16] 0.0, 128
    %227 = vxpose.xlu0.b32.cont [10/16] 0.0, 128
    %228 = vxpose.xlu0.b32.cont [11/16] 0.0, 128
    %229 = vxpose.xlu0.b32.cont [12/16] 0.0, 128
    %230 = vxpose.xlu0.b32.cont [13/16] 0.0, 128
    %231 = vxpose.xlu0.b32.cont [14/16] 0.0, 128
    %232 = vxpose.xlu0.b32.cont [15/16] 0.0, 128
    %233 = vxpose.xlu0.b32.end [16/16] 0.0, 128
    %v234 = vpop.trf.xlu0
    %v235 = vpop.trf.xlu0
    %v236 = vpop.trf.xlu0
    %v237 = vpop.trf.xlu0
    %v238 = vpop.trf.xlu0
    %v239 = vpop.trf.xlu0
    %v240 = vpop.trf.xlu0
    %v241 = vpop.trf.xlu0
    %v242 = vpop.trf.xlu0
    %v243 = vpop.trf.xlu0
    %v244 = vpop.trf.xlu0
    %v245 = vpop.trf.xlu0
    %v246 = vpop.trf.xlu0
    %v247 = vpop.trf.xlu0
    %v248 = vpop.trf.xlu0
    %v249 = vpop.trf.xlu0
    %250 = vxpose.xlu0.b32.start [1/16] %v103, 128
    %251 = vxpose.xlu0.b32.cont [2/16] 0.0, 128
    %252 = vxpose.xlu0.b32.cont [3/16] 0.0, 128
    %253 = vxpose.xlu0.b32.cont [4/16] 0.0, 128
    %254 = vxpose.xlu0.b32.cont [5/16] 0.0, 128
    %255 = vxpose.xlu0.b32.cont [6/16] 0.0, 128
    %256 = vxpose.xlu0.b32.cont [7/16] 0.0, 128
    %257 = vxpose.xlu0.b32.cont [8/16] 0.0, 128
    %258 = vxpose.xlu0.b32.cont [9/16] 0.0, 128
    %259 = vxpose.xlu0.b32.cont [10/16] 0.0, 128
    %260 = vxpose.xlu0.b32.cont [11/16] 0.0, 128
    %261 = vxpose.xlu0.b32.cont [12/16] 0.0, 128
    %262 = vxpose.xlu0.b32.cont [13/16] 0.0, 128
    %263 = vxpose.xlu0.b32.cont [14/16] 0.0, 128
    %264 = vxpose.xlu0.b32.cont [15/16] 0.0, 128
    %265 = vxpose.xlu0.b32.end [16/16] 0.0, 128
    %v266 = vpop.trf.xlu0
    %v267 = vpop.trf.xlu0
    %v268 = vpop.trf.xlu0
    %v269 = vpop.trf.xlu0
    %v270 = vpop.trf.xlu0
    %v271 = vpop.trf.xlu0
    %v272 = vpop.trf.xlu0
    %v273 = vpop.trf.xlu0
    %v274 = vpop.trf.xlu0
    %v275 = vpop.trf.xlu0
    %v276 = vpop.trf.xlu0
    %v277 = vpop.trf.xlu0
    %v278 = vpop.trf.xlu0
    %v279 = vpop.trf.xlu0
    %v280 = vpop.trf.xlu0
    %v281 = vpop.trf.xlu0
    %v282 = vlaneseq
    %v283 = vshrl.u32 %v282, 7
    %v284 = vsub.s32 0, %v283
    %v285 = vrot.slane %v266, %v284
    %v286 = vmul.f32 %v234, %v285
    %v287 = vsel %vm63, %v217, -inf
    %288 = vmax.xlane.f32.xlu0 %v287
    %v289 = vpop.xlane.xlu0 %288
    %v290 = vsub.f32 %v217, %v289
    %v291 = vmul.f32 %v290, 1.442695
    %v292 = vpow.pop %v291
    %v293 = vsel %vm63, %v292, 0.0
    %294 = vadd.xlane.f32.xlu0 %v293
    %v295 = vpop.xlane.xlu0 %294
    %v296 = vrcp.pop %v295
    %v297 = vmul.f32 %v292, %v296
    %v298 = vlog2.pop %v295
    %v299 = vmul.f32 %v298, 0.6931472
    %v300 = vsub.f32 %v290, %v299
    %v301 = vsub.f32 %v300, %v82
    %v302 = vmul.f32 %v297, %v301
    %v303 = vsel %vm63, %v302, 0.0
    %304 = vadd.xlane.f32.xlu0 %v303
    %v305 = vpop.xlane.xlu0 %304
    %v306 = vrot.slane %v305, 4
    %v307 = vadd.f32 %v305, %v306
    %v308 = vrot.slane %v307, 2
    %v309 = vadd.f32 %v307, %v308
    %v310 = vrot.slane %v309, 1
    %v311 = vadd.f32 %v309, %v310
    %s312 = vtos %v311
    %s313 = smul.f32 %s312, 0.125
    %v314 = vsel %vm63, %v286, -inf
    %315 = vmax.xlane.f32.xlu0 %v314
    %v316 = vpop.xlane.xlu0 %315
    %v317 = vsub.f32 %v286, %v316
    %v318 = vmul.f32 %v317, 1.442695
    %v319 = vpow.pop %v318
    %v320 = vsel %vm63, %v319, 0.0
    %321 = vadd.xlane.f32.xlu0 %v320
    %v322 = vpop.xlane.xlu0 %321
    %v323 = vrcp.pop %v322
    %v324 = vmul.f32 %v319, %v323
    %v325 = vlog2.pop %v322
    %v326 = vmul.f32 %v325, 0.6931472
    %v327 = vsub.f32 %v317, %v326
    %v328 = vsub.f32 %v327, %v82
    %v329 = vmul.f32 %v324, %v328
    %v330 = vsel %vm63, %v329, 0.0
    %331 = vadd.xlane.f32.xlu0 %v330
    %v332 = vpop.xlane.xlu0 %331
    %v333 = vrot.slane %v332, 4
    %v334 = vadd.f32 %v332, %v333
    %v335 = vrot.slane %v334, 2
    %v336 = vadd.f32 %v334, %v335
    %v337 = vrot.slane %v336, 1
    %v338 = vadd.f32 %v336, %v337
    %s339 = vtos %v338
    %s340 = smul.f32 %s339, 0.125
    %s341 = sadd.f32 %s313, %s340
    %342 = vxpose.xlu0.b32.start [1/16] %v102, 128
    %343 = vxpose.xlu0.b32.cont [2/16] 0.0, 128
    %344 = vxpose.xlu0.b32.cont [3/16] 0.0, 128
    %345 = vxpose.xlu0.b32.cont [4/16] 0.0, 128
    %346 = vxpose.xlu0.b32.cont [5/16] 0.0, 128
    %347 = vxpose.xlu0.b32.cont [6/16] 0.0, 128
    %348 = vxpose.xlu0.b32.cont [7/16] 0.0, 128
    %349 = vxpose.xlu0.b32.cont [8/16] 0.0, 128
    %350 = vxpose.xlu0.b32.cont [9/16] 0.0, 128
    %351 = vxpose.xlu0.b32.cont [10/16] 0.0, 128
    %352 = vxpose.xlu0.b32.cont [11/16] 0.0, 128
    %353 = vxpose.xlu0.b32.cont [12/16] 0.0, 128
    %354 = vxpose.xlu0.b32.cont [13/16] 0.0, 128
    %355 = vxpose.xlu0.b32.cont [14/16] 0.0, 128
    %356 = vxpose.xlu0.b32.cont [15/16] 0.0, 128
    %357 = vxpose.xlu0.b32.end [16/16] 0.0, 128
    %v358 = vpop.trf.xlu0
    %v359 = vpop.trf.xlu0
    %v360 = vpop.trf.xlu0
    %v361 = vpop.trf.xlu0
    %v362 = vpop.trf.xlu0
    %v363 = vpop.trf.xlu0
    %v364 = vpop.trf.xlu0
    %v365 = vpop.trf.xlu0
    %v366 = vpop.trf.xlu0
    %v367 = vpop.trf.xlu0
    %v368 = vpop.trf.xlu0
    %v369 = vpop.trf.xlu0
    %v370 = vpop.trf.xlu0
    %v371 = vpop.trf.xlu0
    %v372 = vpop.trf.xlu0
    %v373 = vpop.trf.xlu0
    %v374 = vlaneseq
    %v375 = vshrl.u32 %v374, 7
    %v376 = vsub.s32 0, %v375
    %v377 = vrot.slane %v358, %v376
    %v378 = vadd.f32 %v98, %v377
    %v379 = vmul.f32 %v178, 2.0
    %v380 = vsub.f32 %v378, %v379
    %v381 = vmax.f32 %v380, 0.0
    %v382 = vrsqrt.pop %v381
    %v383 = vmul.f32 %v381, %v382
    %vm384 = vcmp.eq.f32.partialorder %v381, inf
    %v385 = vsel %vm384, %v381, %v383
    %vm386 = vcmp.eq.f32.partialorder %v381, 0.0
    %v387 = vand.u32 %v381, 2147483648
    %v388 = vsel %vm386, %v387, %v385
    %v389 = vmul.f32 %v388, %v90
    %v390 = vsel %vm63, %v389, -inf
    %391 = vmax.xlane.f32.xlu0 %v390
    %v392 = vpop.xlane.xlu0 %391
    %v393 = vadd.f32 %v388, %v91
    %v394 = vsel %vm63, %v393, inf
    %395 = vmin.xlane.f32.xlu0 %v394
    %v396 = vpop.xlane.xlu0 %395
    %v397 = vsub.f32 %v392, %v396
    %v398 = vadd.f32 %v397, 0.5
    %v399 = vmax.f32 %v398, 0.0
    %vm400 = vcmask 7168
    %v401 = vsel %vm400, %v399, 0.0
    %402 = vadd.xlane.f32.xlu0 %v401
    %v403 = vpop.xlane.xlu0 %402
    %v404 = vrot.slane %v403, 4
    %v405 = vadd.f32 %v403, %v404
    %v406 = vrot.slane %v405, 2
    %v407 = vadd.f32 %v405, %v406
    %v408 = vrot.slane %v407, 1
    %v409 = vadd.f32 %v407, %v408
    %s410 = vtos %v409
    %s411 = smul.f32 %s410, 0.125
    %v412 = vstv %s341
    %v413 = vadd.f32 %v412, 0.0
    %v414 = vstv %s411
    %v415 = vadd.f32 %v413, %v414
    %s416 = scalar_lea.vmem [#allocation2], 8
    %v417 = vld [vmem:[%s416] sm:$0xff]
    %s418 = scalar_lea.vmem [#allocation5], 8
    %v419 = vld [vmem:[%s418] sm:$0xff]
    %v420 = vmul.f32 %v417, %v417
    %v421 = vsel %vm95, %v420, 0.0
    %422 = vadd.xlane.f32.xlu0 %v421
    %v423 = vpop.xlane.xlu0 %422
    %v424 = vmul.f32 %v419, %v419
    %v425 = vsel %vm95, %v424, 0.0
    %426 = vadd.xlane.f32.xlu0 %v425
    %v427 = vpop.xlane.xlu0 %426
    %v428 = vrsqrt.pop %v423
    %v429 = vrsqrt.pop %v427
    %v431 = vsel %vm95, %v417, 0
    %v434 = vsel %vm95, %v419, 0
    %436 = vmatprep.subr.mxu0 0.0
    %437 = vmatpush1.xpose.msra.mxu0 0.0
    %438 = vmatprep.subr.mxu0 0.0
    %439 = vmatpush1.xpose.msra.mxu0 0.0
    %440 = vmatprep.subr.mxu0 0.0
    %441 = vmatpush1.xpose.msra.mxu0 0.0
    %442 = vmatprep.subr.mxu0 0.0
    %443 = vmatpush1.xpose.msra.mxu0 0.0
    %444 = vmatprep.subr.mxu0 0.0
    %445 = vmatpush1.xpose.msra.mxu0 0.0
    %446 = vmatprep.subr.mxu0 0.0
    %447 = vmatpush1.xpose.msra.mxu0 0.0
    %448 = vmatprep.subr.mxu0 0.0
    %449 = vmatpush1.xpose.msra.mxu0 0.0
    %450 = vmatprep.subr.mxu0 0.0
    %451 = vmatpush1.xpose.msra.mxu0 0.0
    %452 = vmatprep.subr.mxu0 0.0
    %453 = vmatpush1.xpose.msra.mxu0 0.0
    %454 = vmatprep.subr.mxu0 0.0
    %455 = vmatpush1.xpose.msra.mxu0 0.0
    %456 = vmatprep.subr.mxu0 0.0
    %457 = vmatpush1.xpose.msra.mxu0 0.0
    %458 = vmatprep.subr.mxu0 0.0
    %459 = vmatpush1.xpose.msra.mxu0 0.0
    %460 = vmatprep.subr.mxu0 0.0
    %461 = vmatpush1.xpose.msra.mxu0 0.0
    %462 = vmatprep.subr.mxu0 0.0
    %463 = vmatpush1.xpose.msra.mxu0 0.0
    %464 = vmatprep.subr.mxu0 0.0
    %465 = vmatpush1.xpose.msra.mxu0 0.0
    %466 = vmatprep.subr.mxu0 0.0
    %467 = vmatpush1.xpose.msra.mxu0 %v434
    %468 = vmatprep.subr.mxu0 0.0
    %469 = vmatpush2.xpose.msra.mxu0 0.0
    %470 = vmatprep.subr.mxu0 0.0
    %471 = vmatpush2.xpose.msra.mxu0 0.0
    %472 = vmatprep.subr.mxu0 0.0
    %473 = vmatpush2.xpose.msra.mxu0 0.0
    %474 = vmatprep.subr.mxu0 0.0
    %475 = vmatpush2.xpose.msra.mxu0 0.0
    %476 = vmatprep.subr.mxu0 0.0
    %477 = vmatpush2.xpose.msra.mxu0 0.0
    %478 = vmatprep.subr.mxu0 0.0
    %479 = vmatpush2.xpose.msra.mxu0 0.0
    %480 = vmatprep.subr.mxu0 0.0
    %481 = vmatpush2.xpose.msra.mxu0 0.0
    %482 = vmatprep.subr.mxu0 0.0
    %483 = vmatpush2.xpose.msra.mxu0 0.0
    %484 = vmatprep.subr.mxu0 0.0
    %485 = vmatpush2.xpose.msra.mxu0 0.0
    %486 = vmatprep.subr.mxu0 0.0
    %487 = vmatpush2.xpose.msra.mxu0 0.0
    %488 = vmatprep.subr.mxu0 0.0
    %489 = vmatpush2.xpose.msra.mxu0 0.0
    %490 = vmatprep.subr.mxu0 0.0
    %491 = vmatpush2.xpose.msra.mxu0 0.0
    %492 = vmatprep.subr.mxu0 0.0
    %493 = vmatpush2.xpose.msra.mxu0 0.0
    %494 = vmatprep.subr.mxu0 0.0
    %495 = vmatpush2.xpose.msra.mxu0 0.0
    %496 = vmatprep.subr.mxu0 0.0
    %497 = vmatpush2.xpose.msra.mxu0 0.0
    %498 = vmatprep.subr.mxu0 0.0
    %499 = vmatpush2.xpose.msra.mxu0 0.0
    %500 = vmatprep.mubr.f32.mxu0 0.0
    %501 = vmatmul.mubr.f32.gmra.mxu0 %v431
    %v502 = vpop.f32.mrf.mxu0
    %v503 = vadd.f32 0.0, %v502
    %v504 = vpop.f32.mrf.mxu0
    %505 = vdwg.mxu0
    %506 = vxpose.xlu0.b32.start [1/16] %v429, 128
    %507 = vxpose.xlu0.b32.cont [2/16] 0.0, 128
    %508 = vxpose.xlu0.b32.cont [3/16] 0.0, 128
    %509 = vxpose.xlu0.b32.cont [4/16] 0.0, 128
    %510 = vxpose.xlu0.b32.cont [5/16] 0.0, 128
    %511 = vxpose.xlu0.b32.cont [6/16] 0.0, 128
    %512 = vxpose.xlu0.b32.cont [7/16] 0.0, 128
    %513 = vxpose.xlu0.b32.cont [8/16] 0.0, 128
    %514 = vxpose.xlu0.b32.cont [9/16] 0.0, 128
    %515 = vxpose.xlu0.b32.cont [10/16] 0.0, 128
    %516 = vxpose.xlu0.b32.cont [11/16] 0.0, 128
    %517 = vxpose.xlu0.b32.cont [12/16] 0.0, 128
    %518 = vxpose.xlu0.b32.cont [13/16] 0.0, 128
    %519 = vxpose.xlu0.b32.cont [14/16] 0.0, 128
    %520 = vxpose.xlu0.b32.cont [15/16] 0.0, 128
    %521 = vxpose.xlu0.b32.end [16/16] 0.0, 128
    %v522 = vpop.trf.xlu0
    %v523 = vpop.trf.xlu0
    %v524 = vpop.trf.xlu0
    %v525 = vpop.trf.xlu0
    %v526 = vpop.trf.xlu0
    %v527 = vpop.trf.xlu0
    %v528 = vpop.trf.xlu0
    %v529 = vpop.trf.xlu0
    %v530 = vpop.trf.xlu0
    %v531 = vpop.trf.xlu0
    %v532 = vpop.trf.xlu0
    %v533 = vpop.trf.xlu0
    %v534 = vpop.trf.xlu0
    %v535 = vpop.trf.xlu0
    %v536 = vpop.trf.xlu0
    %v537 = vpop.trf.xlu0
    %v538 = vlaneseq
    %v539 = vshrl.u32 %v538, 7
    %v540 = vsub.s32 0, %v539
    %v541 = vrot.slane %v522, %v540
    %v542 = vmul.f32 %v503, %v541
    %543 = vxpose.xlu0.b32.start [1/16] %v503, 128
    %544 = vxpose.xlu0.b32.cont [2/16] 0.0, 128
    %545 = vxpose.xlu0.b32.cont [3/16] 0.0, 128
    %546 = vxpose.xlu0.b32.cont [4/16] 0.0, 128
    %547 = vxpose.xlu0.b32.cont [5/16] 0.0, 128
    %548 = vxpose.xlu0.b32.cont [6/16] 0.0, 128
    %549 = vxpose.xlu0.b32.cont [7/16] 0.0, 128
    %550 = vxpose.xlu0.b32.cont [8/16] 0.0, 128
    %551 = vxpose.xlu0.b32.cont [9/16] 0.0, 128
    %552 = vxpose.xlu0.b32.cont [10/16] 0.0, 128
    %553 = vxpose.xlu0.b32.cont [11/16] 0.0, 128
    %554 = vxpose.xlu0.b32.cont [12/16] 0.0, 128
    %555 = vxpose.xlu0.b32.cont [13/16] 0.0, 128
    %556 = vxpose.xlu0.b32.cont [14/16] 0.0, 128
    %557 = vxpose.xlu0.b32.cont [15/16] 0.0, 128
    %558 = vxpose.xlu0.b32.end [16/16] 0.0, 128
    %v559 = vpop.trf.xlu0
    %v560 = vpop.trf.xlu0
    %v561 = vpop.trf.xlu0
    %v562 = vpop.trf.xlu0
    %v563 = vpop.trf.xlu0
    %v564 = vpop.trf.xlu0
    %v565 = vpop.trf.xlu0
    %v566 = vpop.trf.xlu0
    %v567 = vpop.trf.xlu0
    %v568 = vpop.trf.xlu0
    %v569 = vpop.trf.xlu0
    %v570 = vpop.trf.xlu0
    %v571 = vpop.trf.xlu0
    %v572 = vpop.trf.xlu0
    %v573 = vpop.trf.xlu0
    %v574 = vpop.trf.xlu0
    %575 = vxpose.xlu0.b32.start [1/16] %v428, 128
    %576 = vxpose.xlu0.b32.cont [2/16] 0.0, 128
    %577 = vxpose.xlu0.b32.cont [3/16] 0.0, 128
    %578 = vxpose.xlu0.b32.cont [4/16] 0.0, 128
    %579 = vxpose.xlu0.b32.cont [5/16] 0.0, 128
    %580 = vxpose.xlu0.b32.cont [6/16] 0.0, 128
    %581 = vxpose.xlu0.b32.cont [7/16] 0.0, 128
    %582 = vxpose.xlu0.b32.cont [8/16] 0.0, 128
    %583 = vxpose.xlu0.b32.cont [9/16] 0.0, 128
    %584 = vxpose.xlu0.b32.cont [10/16] 0.0, 128
    %585 = vxpose.xlu0.b32.cont [11/16] 0.0, 128
    %586 = vxpose.xlu0.b32.cont [12/16] 0.0, 128
    %587 = vxpose.xlu0.b32.cont [13/16] 0.0, 128
    %588 = vxpose.xlu0.b32.cont [14/16] 0.0, 128
    %589 = vxpose.xlu0.b32.cont [15/16] 0.0, 128
    %590 = vxpose.xlu0.b32.end [16/16] 0.0, 128
    %v591 = vpop.trf.xlu0
    %v592 = vpop.trf.xlu0
    %v593 = vpop.trf.xlu0
    %v594 = vpop.trf.xlu0
    %v595 = vpop.trf.xlu0
    %v596 = vpop.trf.xlu0
    %v597 = vpop.trf.xlu0
    %v598 = vpop.trf.xlu0
    %v599 = vpop.trf.xlu0
    %v600 = vpop.trf.xlu0
    %v601 = vpop.trf.xlu0
    %v602 = vpop.trf.xlu0
    %v603 = vpop.trf.xlu0
    %v604 = vpop.trf.xlu0
    %v605 = vpop.trf.xlu0
    %v606 = vpop.trf.xlu0
    %v607 = vlaneseq
    %v608 = vshrl.u32 %v607, 7
    %v609 = vsub.s32 0, %v608
    %v610 = vrot.slane %v591, %v609
    %v611 = vmul.f32 %v559, %v610
    %v612 = vsel %vm63, %v542, -inf
    %613 = vmax.xlane.f32.xlu0 %v612
    %v614 = vpop.xlane.xlu0 %613
    %v615 = vsub.f32 %v542, %v614
    %v616 = vmul.f32 %v615, 1.442695
    %v617 = vpow.pop %v616
    %v618 = vsel %vm63, %v617, 0.0
    %619 = vadd.xlane.f32.xlu0 %v618
    %v620 = vpop.xlane.xlu0 %619
    %v621 = vrcp.pop %v620
    %v622 = vmul.f32 %v617, %v621
    %v623 = vlog2.pop %v620
    %v624 = vmul.f32 %v623, 0.6931472
    %v625 = vsub.f32 %v615, %v624
    %v626 = vsub.f32 %v625, %v82
    %v627 = vmul.f32 %v622, %v626
    %v628 = vsel %vm63, %v627, 0.0
    %629 = vadd.xlane.f32.xlu0 %v628
    %v630 = vpop.xlane.xlu0 %629
    %v631 = vrot.slane %v630, 4
    %v632 = vadd.f32 %v630, %v631
    %v633 = vrot.slane %v632, 2
    %v634 = vadd.f32 %v632, %v633
    %v635 = vrot.slane %v634, 1
    %v636 = vadd.f32 %v634, %v635
    %s637 = vtos %v636
    %s638 = smul.f32 %s637, 0.125
    %v639 = vsel %vm63, %v611, -inf
    %640 = vmax.xlane.f32.xlu0 %v639
    %v641 = vpop.xlane.xlu0 %640
    %v642 = vsub.f32 %v611, %v641
    %v643 = vmul.f32 %v642, 1.442695
    %v644 = vpow.pop %v643
    %v645 = vsel %vm63, %v644, 0.0
    %646 = vadd.xlane.f32.xlu0 %v645
    %v647 = vpop.xlane.xlu0 %646
    %v648 = vrcp.pop %v647
    %v649 = vmul.f32 %v644, %v648
    %v650 = vlog2.pop %v647
    %v651 = vmul.f32 %v650, 0.6931472
    %v652 = vsub.f32 %v642, %v651
    %v653 = vsub.f32 %v652, %v82
    %v654 = vmul.f32 %v649, %v653
    %v655 = vsel %vm63, %v654, 0.0
    %656 = vadd.xlane.f32.xlu0 %v655
    %v657 = vpop.xlane.xlu0 %656
    %v658 = vrot.slane %v657, 4
    %v659 = vadd.f32 %v657, %v658
    %v660 = vrot.slane %v659, 2
    %v661 = vadd.f32 %v659, %v660
    %v662 = vrot.slane %v661, 1
    %v663 = vadd.f32 %v661, %v662
    %s664 = vtos %v663
    %s665 = smul.f32 %s664, 0.125
    %s666 = sadd.f32 %s638, %s665
    %667 = vxpose.xlu0.b32.start [1/16] %v427, 128
    %668 = vxpose.xlu0.b32.cont [2/16] 0.0, 128
    %669 = vxpose.xlu0.b32.cont [3/16] 0.0, 128
    %670 = vxpose.xlu0.b32.cont [4/16] 0.0, 128
    %671 = vxpose.xlu0.b32.cont [5/16] 0.0, 128
    %672 = vxpose.xlu0.b32.cont [6/16] 0.0, 128
    %673 = vxpose.xlu0.b32.cont [7/16] 0.0, 128
    %674 = vxpose.xlu0.b32.cont [8/16] 0.0, 128
    %675 = vxpose.xlu0.b32.cont [9/16] 0.0, 128
    %676 = vxpose.xlu0.b32.cont [10/16] 0.0, 128
    %677 = vxpose.xlu0.b32.cont [11/16] 0.0, 128
    %678 = vxpose.xlu0.b32.cont [12/16] 0.0, 128
    %679 = vxpose.xlu0.b32.cont [13/16] 0.0, 128
    %680 = vxpose.xlu0.b32.cont [14/16] 0.0, 128
    %681 = vxpose.xlu0.b32.cont [15/16] 0.0, 128
    %682 = vxpose.xlu0.b32.end [16/16] 0.0, 128
    %v683 = vpop.trf.xlu0
    %v684 = vpop.trf.xlu0
    %v685 = vpop.trf.xlu0
    %v686 = vpop.trf.xlu0
    %v687 = vpop.trf.xlu0
    %v688 = vpop.trf.xlu0
    %v689 = vpop.trf.xlu0
    %v690 = vpop.trf.xlu0
    %v691 = vpop.trf.xlu0
    %v692 = vpop.trf.xlu0
    %v693 = vpop.trf.xlu0
    %v694 = vpop.trf.xlu0
    %v695 = vpop.trf.xlu0
    %v696 = vpop.trf.xlu0
    %v697 = vpop.trf.xlu0
    %v698 = vpop.trf.xlu0
    %v699 = vlaneseq
    %v700 = vshrl.u32 %v699, 7
    %v701 = vsub.s32 0, %v700
    %v702 = vrot.slane %v683, %v701
    %v703 = vadd.f32 %v423, %v702
    %v704 = vmul.f32 %v503, 2.0
    %v705 = vsub.f32 %v703, %v704
    %v706 = vmax.f32 %v705, 0.0
    %v707 = vrsqrt.pop %v706
    %v708 = vmul.f32 %v706, %v707
    %vm709 = vcmp.eq.f32.partialorder %v706, inf
    %v710 = vsel %vm709, %v706, %v708
    %vm711 = vcmp.eq.f32.partialorder %v706, 0.0
    %v712 = vand.u32 %v706, 2147483648
    %v713 = vsel %vm711, %v712, %v710
    %v714 = vmul.f32 %v713, %v90
    %v715 = vsel %vm63, %v714, -inf
    %716 = vmax.xlane.f32.xlu0 %v715
    %v717 = vpop.xlane.xlu0 %716
    %v718 = vadd.f32 %v713, %v91
    %v719 = vsel %vm63, %v718, inf
    %720 = vmin.xlane.f32.xlu0 %v719
    %v721 = vpop.xlane.xlu0 %720
    %v722 = vsub.f32 %v717, %v721
    %v723 = vadd.f32 %v722, 0.5
    %v724 = vmax.f32 %v723, 0.0
    %v725 = vsel %vm400, %v724, 0.0
    %726 = vadd.xlane.f32.xlu0 %v725
    %v727 = vpop.xlane.xlu0 %726
    %v728 = vrot.slane %v727, 4
    %v729 = vadd.f32 %v727, %v728
    %v730 = vrot.slane %v729, 2
    %v731 = vadd.f32 %v729, %v730
    %v732 = vrot.slane %v731, 1
    %v733 = vadd.f32 %v731, %v732
    %s734 = vtos %v733
    %s735 = smul.f32 %s734, 0.125
    %v736 = vstv %s666
    %v737 = vadd.f32 %v415, %v736
    %v738 = vstv %s735
    %v739 = vadd.f32 %v737, %v738
    %s740 = scalar_lea.vmem [#allocation2], 16
    %v741 = vld [vmem:[%s740] sm:$0xff]
    %s742 = scalar_lea.vmem [#allocation5], 16
    %v743 = vld [vmem:[%s742] sm:$0xff]
    %v744 = vmul.f32 %v741, %v741
    %v745 = vsel %vm95, %v744, 0.0
    %746 = vadd.xlane.f32.xlu0 %v745
    %v747 = vpop.xlane.xlu0 %746
    %v748 = vmul.f32 %v743, %v743
    %v749 = vsel %vm95, %v748, 0.0
    %750 = vadd.xlane.f32.xlu0 %v749
    %v751 = vpop.xlane.xlu0 %750
    %v752 = vrsqrt.pop %v747
    %v753 = vrsqrt.pop %v751
    %v755 = vsel %vm95, %v741, 0
    %v758 = vsel %vm95, %v743, 0
    %760 = vmatprep.subr.mxu0 0.0
    %761 = vmatpush1.xpose.msra.mxu0 0.0
    %762 = vmatprep.subr.mxu0 0.0
    %763 = vmatpush1.xpose.msra.mxu0 0.0
    %764 = vmatprep.subr.mxu0 0.0
    %765 = vmatpush1.xpose.msra.mxu0 0.0
    %766 = vmatprep.subr.mxu0 0.0
    %767 = vmatpush1.xpose.msra.mxu0 0.0
    %768 = vmatprep.subr.mxu0 0.0
    %769 = vmatpush1.xpose.msra.mxu0 0.0
    %770 = vmatprep.subr.mxu0 0.0
    %771 = vmatpush1.xpose.msra.mxu0 0.0
    %772 = vmatprep.subr.mxu0 0.0
    %773 = vmatpush1.xpose.msra.mxu0 0.0
    %774 = vmatprep.subr.mxu0 0.0
    %775 = vmatpush1.xpose.msra.mxu0 0.0
    %776 = vmatprep.subr.mxu0 0.0
    %777 = vmatpush1.xpose.msra.mxu0 0.0
    %778 = vmatprep.subr.mxu0 0.0
    %779 = vmatpush1.xpose.msra.mxu0 0.0
    %780 = vmatprep.subr.mxu0 0.0
    %781 = vmatpush1.xpose.msra.mxu0 0.0
    %782 = vmatprep.subr.mxu0 0.0
    %783 = vmatpush1.xpose.msra.mxu0 0.0
    %784 = vmatprep.subr.mxu0 0.0
    %785 = vmatpush1.xpose.msra.mxu0 0.0
    %786 = vmatprep.subr.mxu0 0.0
    %787 = vmatpush1.xpose.msra.mxu0 0.0
    %788 = vmatprep.subr.mxu0 0.0
    %789 = vmatpush1.xpose.msra.mxu0 0.0
    %790 = vmatprep.subr.mxu0 0.0
    %791 = vmatpush1.xpose.msra.mxu0 %v758
    %792 = vmatprep.subr.mxu0 0.0
    %793 = vmatpush2.xpose.msra.mxu0 0.0
    %794 = vmatprep.subr.mxu0 0.0
    %795 = vmatpush2.xpose.msra.mxu0 0.0
    %796 = vmatprep.subr.mxu0 0.0
    %797 = vmatpush2.xpose.msra.mxu0 0.0
    %798 = vmatprep.subr.mxu0 0.0
    %799 = vmatpush2.xpose.msra.mxu0 0.0
    %800 = vmatprep.subr.mxu0 0.0
    %801 = vmatpush2.xpose.msra.mxu0 0.0
    %802 = vmatprep.subr.mxu0 0.0
    %803 = vmatpush2.xpose.msra.mxu0 0.0
    %804 = vmatprep.subr.mxu0 0.0
    %805 = vmatpush2.xpose.msra.mxu0 0.0
    %806 = vmatprep.subr.mxu0 0.0
    %807 = vmatpush2.xpose.msra.mxu0 0.0
    %808 = vmatprep.subr.mxu0 0.0
    %809 = vmatpush2.xpose.msra.mxu0 0.0
    %810 = vmatprep.subr.mxu0 0.0
    %811 = vmatpush2.xpose.msra.mxu0 0.0
    %812 = vmatprep.subr.mxu0 0.0
    %813 = vmatpush2.xpose.msra.mxu0 0.0
    %814 = vmatprep.subr.mxu0 0.0
    %815 = vmatpush2.xpose.msra.mxu0 0.0
    %816 = vmatprep.subr.mxu0 0.0
    %817 = vmatpush2.xpose.msra.mxu0 0.0
    %818 = vmatprep.subr.mxu0 0.0
    %819 = vmatpush2.xpose.msra.mxu0 0.0
    %820 = vmatprep.subr.mxu0 0.0
    %821 = vmatpush2.xpose.msra.mxu0 0.0
    %822 = vmatprep.subr.mxu0 0.0
    %823 = vmatpush2.xpose.msra.mxu0 0.0
    %824 = vmatprep.mubr.f32.mxu0 0.0
    %825 = vmatmul.mubr.f32.gmra.mxu0 %v755
    %v826 = vpop.f32.mrf.mxu0
    %v827 = vadd.f32 0.0, %v826
    %v828 = vpop.f32.mrf.mxu0
    %829 = vdwg.mxu0
    %830 = vxpose.xlu0.b32.start [1/16] %v753, 128
    %831 = vxpose.xlu0.b32.cont [2/16] 0.0, 128
    %832 = vxpose.xlu0.b32.cont [3/16] 0.0, 128
    %833 = vxpose.xlu0.b32.cont [4/16] 0.0, 128
    %834 = vxpose.xlu0.b32.cont [5/16] 0.0, 128
    %835 = vxpose.xlu0.b32.cont [6/16] 0.0, 128
    %836 = vxpose.xlu0.b32.cont [7/16] 0.0, 128
    %837 = vxpose.xlu0.b32.cont [8/16] 0.0, 128
    %838 = vxpose.xlu0.b32.cont [9/16] 0.0, 128
    %839 = vxpose.xlu0.b32.cont [10/16] 0.0, 128
    %840 = vxpose.xlu0.b32.cont [11/16] 0.0, 128
    %841 = vxpose.xlu0.b32.cont [12/16] 0.0, 128
    %842 = vxpose.xlu0.b32.cont [13/16] 0.0, 128
    %843 = vxpose.xlu0.b32.cont [14/16] 0.0, 128
    %844 = vxpose.xlu0.b32.cont [15/16] 0.0, 128
    %845 = vxpose.xlu0.b32.end [16/16] 0.0, 128
    %v846 = vpop.trf.xlu0
    %v847 = vpop.trf.xlu0
    %v848 = vpop.trf.xlu0
    %v849 = vpop.trf.xlu0
    %v850 = vpop.trf.xlu0
    %v851 = vpop.trf.xlu0
    %v852 = vpop.trf.xlu0
    %v853 = vpop.trf.xlu0
    %v854 = vpop.trf.xlu0
    %v855 = vpop.trf.xlu0
    %v856 = vpop.trf.xlu0
    %v857 = vpop.trf.xlu0
    %v858 = vpop.trf.xlu0
    %v859 = vpop.trf.xlu0
    %v860 = vpop.trf.xlu0
    %v861 = vpop.trf.xlu0
    %v862 = vlaneseq
    %v863 = vshrl.u32 %v862, 7
    %v864 = vsub.s32 0, %v863
    %v865 = vrot.slane %v846, %v864
    %v866 = vmul.f32 %v827, %v865
    %867 = vxpose.xlu0.b32.start [1/16] %v827, 128
    %868 = vxpose.xlu0.b32.cont [2/16] 0.0, 128
    %869 = vxpose.xlu0.b32.cont [3/16] 0.0, 128
    %870 = vxpose.xlu0.b32.cont [4/16] 0.0, 128
    %871 = vxpose.xlu0.b32.cont [5/16] 0.0, 128
    %872 = vxpose.xlu0.b32.cont [6/16] 0.0, 128
    %873 = vxpose.xlu0.b32.cont [7/16] 0.0, 128
    %874 = vxpose.xlu0.b32.cont [8/16] 0.0, 128
    %875 = vxpose.xlu0.b32.cont [9/16] 0.0, 128
    %876 = vxpose.xlu0.b32.cont [10/16] 0.0, 128
    %877 = vxpose.xlu0.b32.cont [11/16] 0.0, 128
    %878 = vxpose.xlu0.b32.cont [12/16] 0.0, 128
    %879 = vxpose.xlu0.b32.cont [13/16] 0.0, 128
    %880 = vxpose.xlu0.b32.cont [14/16] 0.0, 128
    %881 = vxpose.xlu0.b32.cont [15/16] 0.0, 128
    %882 = vxpose.xlu0.b32.end [16/16] 0.0, 128
    %v883 = vpop.trf.xlu0
    %v884 = vpop.trf.xlu0
    %v885 = vpop.trf.xlu0
    %v886 = vpop.trf.xlu0
    %v887 = vpop.trf.xlu0
    %v888 = vpop.trf.xlu0
    %v889 = vpop.trf.xlu0
    %v890 = vpop.trf.xlu0
    %v891 = vpop.trf.xlu0
    %v892 = vpop.trf.xlu0
    %v893 = vpop.trf.xlu0
    %v894 = vpop.trf.xlu0
    %v895 = vpop.trf.xlu0
    %v896 = vpop.trf.xlu0
    %v897 = vpop.trf.xlu0
    %v898 = vpop.trf.xlu0
    %899 = vxpose.xlu0.b32.start [1/16] %v752, 128
    %900 = vxpose.xlu0.b32.cont [2/16] 0.0, 128
    %901 = vxpose.xlu0.b32.cont [3/16] 0.0, 128
    %902 = vxpose.xlu0.b32.cont [4/16] 0.0, 128
    %903 = vxpose.xlu0.b32.cont [5/16] 0.0, 128
    %904 = vxpose.xlu0.b32.cont [6/16] 0.0, 128
    %905 = vxpose.xlu0.b32.cont [7/16] 0.0, 128
    %906 = vxpose.xlu0.b32.cont [8/16] 0.0, 128
    %907 = vxpose.xlu0.b32.cont [9/16] 0.0, 128
    %908 = vxpose.xlu0.b32.cont [10/16] 0.0, 128
    %909 = vxpose.xlu0.b32.cont [11/16] 0.0, 128
    %910 = vxpose.xlu0.b32.cont [12/16] 0.0, 128
    %911 = vxpose.xlu0.b32.cont [13/16] 0.0, 128
    %912 = vxpose.xlu0.b32.cont [14/16] 0.0, 128
    %913 = vxpose.xlu0.b32.cont [15/16] 0.0, 128
    %914 = vxpose.xlu0.b32.end [16/16] 0.0, 128
    %v915 = vpop.trf.xlu0
    %v916 = vpop.trf.xlu0
    %v917 = vpop.trf.xlu0
    %v918 = vpop.trf.xlu0
    %v919 = vpop.trf.xlu0
    %v920 = vpop.trf.xlu0
    %v921 = vpop.trf.xlu0
    %v922 = vpop.trf.xlu0
    %v923 = vpop.trf.xlu0
    %v924 = vpop.trf.xlu0
    %v925 = vpop.trf.xlu0
    %v926 = vpop.trf.xlu0
    %v927 = vpop.trf.xlu0
    %v928 = vpop.trf.xlu0
    %v929 = vpop.trf.xlu0
    %v930 = vpop.trf.xlu0
    %v931 = vlaneseq
    %v932 = vshrl.u32 %v931, 7
    %v933 = vsub.s32 0, %v932
    %v934 = vrot.slane %v915, %v933
    %v935 = vmul.f32 %v883, %v934
    %v936 = vsel %vm63, %v866, -inf
    %937 = vmax.xlane.f32.xlu0 %v936
    %v938 = vpop.xlane.xlu0 %937
    %v939 = vsub.f32 %v866, %v938
    %v940 = vmul.f32 %v939, 1.442695
    %v941 = vpow.pop %v940
    %v942 = vsel %vm63, %v941, 0.0
    %943 = vadd.xlane.f32.xlu0 %v942
    %v944 = vpop.xlane.xlu0 %943
    %v945 = vrcp.pop %v944
    %v946 = vmul.f32 %v941, %v945
    %v947 = vlog2.pop %v944
    %v948 = vmul.f32 %v947, 0.6931472
    %v949 = vsub.f32 %v939, %v948
    %v950 = vsub.f32 %v949, %v82
    %v951 = vmul.f32 %v946, %v950
    %v952 = vsel %vm63, %v951, 0.0
    %953 = vadd.xlane.f32.xlu0 %v952
    %v954 = vpop.xlane.xlu0 %953
    %v955 = vrot.slane %v954, 4
    %v956 = vadd.f32 %v954, %v955
    %v957 = vrot.slane %v956, 2
    %v958 = vadd.f32 %v956, %v957
    %v959 = vrot.slane %v958, 1
    %v960 = vadd.f32 %v958, %v959
    %s961 = vtos %v960
    %s962 = smul.f32 %s961, 0.125
    %v963 = vsel %vm63, %v935, -inf
    %964 = vmax.xlane.f32.xlu0 %v963
    %v965 = vpop.xlane.xlu0 %964
    %v966 = vsub.f32 %v935, %v965
    %v967 = vmul.f32 %v966, 1.442695
    %v968 = vpow.pop %v967
    %v969 = vsel %vm63, %v968, 0.0
    %970 = vadd.xlane.f32.xlu0 %v969
    %v971 = vpop.xlane.xlu0 %970
    %v972 = vrcp.pop %v971
    %v973 = vmul.f32 %v968, %v972
    %v974 = vlog2.pop %v971
    %v975 = vmul.f32 %v974, 0.6931472
    %v976 = vsub.f32 %v966, %v975
    %v977 = vsub.f32 %v976, %v82
    %v978 = vmul.f32 %v973, %v977
    %v979 = vsel %vm63, %v978, 0.0
    %980 = vadd.xlane.f32.xlu0 %v979
    %v981 = vpop.xlane.xlu0 %980
    %v982 = vrot.slane %v981, 4
    %v983 = vadd.f32 %v981, %v982
    %v984 = vrot.slane %v983, 2
    %v985 = vadd.f32 %v983, %v984
    %v986 = vrot.slane %v985, 1
    %v987 = vadd.f32 %v985, %v986
    %s988 = vtos %v987
    %s989 = smul.f32 %s988, 0.125
    %s990 = sadd.f32 %s962, %s989
    %991 = vxpose.xlu0.b32.start [1/16] %v751, 128
    %992 = vxpose.xlu0.b32.cont [2/16] 0.0, 128
    %993 = vxpose.xlu0.b32.cont [3/16] 0.0, 128
    %994 = vxpose.xlu0.b32.cont [4/16] 0.0, 128
    %995 = vxpose.xlu0.b32.cont [5/16] 0.0, 128
    %996 = vxpose.xlu0.b32.cont [6/16] 0.0, 128
    %997 = vxpose.xlu0.b32.cont [7/16] 0.0, 128
    %998 = vxpose.xlu0.b32.cont [8/16] 0.0, 128
    %999 = vxpose.xlu0.b32.cont [9/16] 0.0, 128
    %1000 = vxpose.xlu0.b32.cont [10/16] 0.0, 128
    %1001 = vxpose.xlu0.b32.cont [11/16] 0.0, 128
    %1002 = vxpose.xlu0.b32.cont [12/16] 0.0, 128
    %1003 = vxpose.xlu0.b32.cont [13/16] 0.0, 128
    %1004 = vxpose.xlu0.b32.cont [14/16] 0.0, 128
    %1005 = vxpose.xlu0.b32.cont [15/16] 0.0, 128
    %1006 = vxpose.xlu0.b32.end [16/16] 0.0, 128
    %v1007 = vpop.trf.xlu0
    %v1008 = vpop.trf.xlu0
    %v1009 = vpop.trf.xlu0
    %v1010 = vpop.trf.xlu0
    %v1011 = vpop.trf.xlu0
    %v1012 = vpop.trf.xlu0
    %v1013 = vpop.trf.xlu0
    %v1014 = vpop.trf.xlu0
    %v1015 = vpop.trf.xlu0
    %v1016 = vpop.trf.xlu0
    %v1017 = vpop.trf.xlu0
    %v1018 = vpop.trf.xlu0
    %v1019 = vpop.trf.xlu0
    %v1020 = vpop.trf.xlu0
    %v1021 = vpop.trf.xlu0
    %v1022 = vpop.trf.xlu0
    %v1023 = vlaneseq
    %v1024 = vshrl.u32 %v1023, 7
    %v1025 = vsub.s32 0, %v1024
    %v1026 = vrot.slane %v1007, %v1025
    %v1027 = vadd.f32 %v747, %v1026
    %v1028 = vmul.f32 %v827, 2.0
    %v1029 = vsub.f32 %v1027, %v1028
    %v1030 = vmax.f32 %v1029, 0.0
    %v1031 = vrsqrt.pop %v1030
    %v1032 = vmul.f32 %v1030, %v1031
    %vm1033 = vcmp.eq.f32.partialorder %v1030, inf
    %v1034 = vsel %vm1033, %v1030, %v1032
    %vm1035 = vcmp.eq.f32.partialorder %v1030, 0.0
    %v1036 = vand.u32 %v1030, 2147483648
    %v1037 = vsel %vm1035, %v1036, %v1034
    %v1038 = vmul.f32 %v1037, %v90
    %v1039 = vsel %vm63, %v1038, -inf
    %1040 = vmax.xlane.f32.xlu0 %v1039
    %v1041 = vpop.xlane.xlu0 %1040
    %v1042 = vadd.f32 %v1037, %v91
    %v1043 = vsel %vm63, %v1042, inf
    %1044 = vmin.xlane.f32.xlu0 %v1043
    %v1045 = vpop.xlane.xlu0 %1044
    %v1046 = vsub.f32 %v1041, %v1045
    %v1047 = vadd.f32 %v1046, 0.5
    %v1048 = vmax.f32 %v1047, 0.0
    %v1049 = vsel %vm400, %v1048, 0.0
    %1050 = vadd.xlane.f32.xlu0 %v1049
    %v1051 = vpop.xlane.xlu0 %1050
    %v1052 = vrot.slane %v1051, 4
    %v1053 = vadd.f32 %v1051, %v1052
    %v1054 = vrot.slane %v1053, 2
    %v1055 = vadd.f32 %v1053, %v1054
    %v1056 = vrot.slane %v1055, 1
    %v1057 = vadd.f32 %v1055, %v1056
    %s1058 = vtos %v1057
    %s1059 = smul.f32 %s1058, 0.125
    %v1060 = vstv %s990
    %v1061 = vadd.f32 %v739, %v1060
    %v1062 = vstv %s1059
    %v1063 = vadd.f32 %v1061, %v1062
    %s1064 = scalar_lea.vmem [#allocation2], 24
    %v1065 = vld [vmem:[%s1064] sm:$0xff]
    %s1066 = scalar_lea.vmem [#allocation5], 24
    %v1067 = vld [vmem:[%s1066] sm:$0xff]
    %v1068 = vmul.f32 %v1065, %v1065
    %v1069 = vsel %vm95, %v1068, 0.0
    %1070 = vadd.xlane.f32.xlu0 %v1069
    %v1071 = vpop.xlane.xlu0 %1070
    %v1072 = vmul.f32 %v1067, %v1067
    %v1073 = vsel %vm95, %v1072, 0.0
    %1074 = vadd.xlane.f32.xlu0 %v1073
    %v1075 = vpop.xlane.xlu0 %1074
    %v1076 = vrsqrt.pop %v1071
    %v1077 = vrsqrt.pop %v1075
    %v1079 = vsel %vm95, %v1065, 0
    %v1082 = vsel %vm95, %v1067, 0
    %1084 = vmatprep.subr.mxu0 0.0
    %1085 = vmatpush1.xpose.msra.mxu0 0.0
    %1086 = vmatprep.subr.mxu0 0.0
    %1087 = vmatpush1.xpose.msra.mxu0 0.0
    %1088 = vmatprep.subr.mxu0 0.0
    %1089 = vmatpush1.xpose.msra.mxu0 0.0
    %1090 = vmatprep.subr.mxu0 0.0
    %1091 = vmatpush1.xpose.msra.mxu0 0.0
    %1092 = vmatprep.subr.mxu0 0.0
    %1093 = vmatpush1.xpose.msra.mxu0 0.0
    %1094 = vmatprep.subr.mxu0 0.0
    %1095 = vmatpush1.xpose.msra.mxu0 0.0
    %1096 = vmatprep.subr.mxu0 0.0
    %1097 = vmatpush1.xpose.msra.mxu0 0.0
    %1098 = vmatprep.subr.mxu0 0.0
    %1099 = vmatpush1.xpose.msra.mxu0 0.0
    %1100 = vmatprep.subr.mxu0 0.0
    %1101 = vmatpush1.xpose.msra.mxu0 0.0
    %1102 = vmatprep.subr.mxu0 0.0
    %1103 = vmatpush1.xpose.msra.mxu0 0.0
    %1104 = vmatprep.subr.mxu0 0.0
    %1105 = vmatpush1.xpose.msra.mxu0 0.0
    %1106 = vmatprep.subr.mxu0 0.0
    %1107 = vmatpush1.xpose.msra.mxu0 0.0
    %1108 = vmatprep.subr.mxu0 0.0
    %1109 = vmatpush1.xpose.msra.mxu0 0.0
    %1110 = vmatprep.subr.mxu0 0.0
    %1111 = vmatpush1.xpose.msra.mxu0 0.0
    %1112 = vmatprep.subr.mxu0 0.0
    %1113 = vmatpush1.xpose.msra.mxu0 0.0
    %1114 = vmatprep.subr.mxu0 0.0
    %1115 = vmatpush1.xpose.msra.mxu0 %v1082
    %1116 = vmatprep.subr.mxu0 0.0
    %1117 = vmatpush2.xpose.msra.mxu0 0.0
    %1118 = vmatprep.subr.mxu0 0.0
    %1119 = vmatpush2.xpose.msra.mxu0 0.0
    %1120 = vmatprep.subr.mxu0 0.0
    %1121 = vmatpush2.xpose.msra.mxu0 0.0
    %1122 = vmatprep.subr.mxu0 0.0
    %1123 = vmatpush2.xpose.msra.mxu0 0.0
    %1124 = vmatprep.subr.mxu0 0.0
    %1125 = vmatpush2.xpose.msra.mxu0 0.0
    %1126 = vmatprep.subr.mxu0 0.0
    %1127 = vmatpush2.xpose.msra.mxu0 0.0
    %1128 = vmatprep.subr.mxu0 0.0
    %1129 = vmatpush2.xpose.msra.mxu0 0.0
    %1130 = vmatprep.subr.mxu0 0.0
    %1131 = vmatpush2.xpose.msra.mxu0 0.0
    %1132 = vmatprep.subr.mxu0 0.0
    %1133 = vmatpush2.xpose.msra.mxu0 0.0
    %1134 = vmatprep.subr.mxu0 0.0
    %1135 = vmatpush2.xpose.msra.mxu0 0.0
    %1136 = vmatprep.subr.mxu0 0.0
    %1137 = vmatpush2.xpose.msra.mxu0 0.0
    %1138 = vmatprep.subr.mxu0 0.0
    %1139 = vmatpush2.xpose.msra.mxu0 0.0
    %1140 = vmatprep.subr.mxu0 0.0
    %1141 = vmatpush2.xpose.msra.mxu0 0.0
    %1142 = vmatprep.subr.mxu0 0.0
    %1143 = vmatpush2.xpose.msra.mxu0 0.0
    %1144 = vmatprep.subr.mxu0 0.0
    %1145 = vmatpush2.xpose.msra.mxu0 0.0
    %1146 = vmatprep.subr.mxu0 0.0
    %1147 = vmatpush2.xpose.msra.mxu0 0.0
    %1148 = vmatprep.mubr.f32.mxu0 0.0
    %1149 = vmatmul.mubr.f32.gmra.mxu0 %v1079
    %v1150 = vpop.f32.mrf.mxu0
    %v1151 = vadd.f32 0.0, %v1150
    %v1152 = vpop.f32.mrf.mxu0
    %1153 = vdwg.mxu0
    %1154 = vxpose.xlu0.b32.start [1/16] %v1077, 128
    %1155 = vxpose.xlu0.b32.cont [2/16] 0.0, 128
    %1156 = vxpose.xlu0.b32.cont [3/16] 0.0, 128
    %1157 = vxpose.xlu0.b32.cont [4/16] 0.0, 128
    %1158 = vxpose.xlu0.b32.cont [5/16] 0.0, 128
    %1159 = vxpose.xlu0.b32.cont [6/16] 0.0, 128
    %1160 = vxpose.xlu0.b32.cont [7/16] 0.0, 128
    %1161 = vxpose.xlu0.b32.cont [8/16] 0.0, 128
    %1162 = vxpose.xlu0.b32.cont [9/16] 0.0, 128
    %1163 = vxpose.xlu0.b32.cont [10/16] 0.0, 128
    %1164 = vxpose.xlu0.b32.cont [11/16] 0.0, 128
    %1165 = vxpose.xlu0.b32.cont [12/16] 0.0, 128
    %1166 = vxpose.xlu0.b32.cont [13/16] 0.0, 128
    %1167 = vxpose.xlu0.b32.cont [14/16] 0.0, 128
    %1168 = vxpose.xlu0.b32.cont [15/16] 0.0, 128
    %1169 = vxpose.xlu0.b32.end [16/16] 0.0, 128
    %v1170 = vpop.trf.xlu0
    %v1171 = vpop.trf.xlu0
    %v1172 = vpop.trf.xlu0
    %v1173 = vpop.trf.xlu0
    %v1174 = vpop.trf.xlu0
    %v1175 = vpop.trf.xlu0
    %v1176 = vpop.trf.xlu0
    %v1177 = vpop.trf.xlu0
    %v1178 = vpop.trf.xlu0
    %v1179 = vpop.trf.xlu0
    %v1180 = vpop.trf.xlu0
    %v1181 = vpop.trf.xlu0
    %v1182 = vpop.trf.xlu0
    %v1183 = vpop.trf.xlu0
    %v1184 = vpop.trf.xlu0
    %v1185 = vpop.trf.xlu0
    %v1186 = vlaneseq
    %v1187 = vshrl.u32 %v1186, 7
    %v1188 = vsub.s32 0, %v1187
    %v1189 = vrot.slane %v1170, %v1188
    %v1190 = vmul.f32 %v1151, %v1189
    %1191 = vxpose.xlu0.b32.start [1/16] %v1151, 128
    %1192 = vxpose.xlu0.b32.cont [2/16] 0.0, 128
    %1193 = vxpose.xlu0.b32.cont [3/16] 0.0, 128
    %1194 = vxpose.xlu0.b32.cont [4/16] 0.0, 128
    %1195 = vxpose.xlu0.b32.cont [5/16] 0.0, 128
    %1196 = vxpose.xlu0.b32.cont [6/16] 0.0, 128
    %1197 = vxpose.xlu0.b32.cont [7/16] 0.0, 128
    %1198 = vxpose.xlu0.b32.cont [8/16] 0.0, 128
    %1199 = vxpose.xlu0.b32.cont [9/16] 0.0, 128
    %1200 = vxpose.xlu0.b32.cont [10/16] 0.0, 128
    %1201 = vxpose.xlu0.b32.cont [11/16] 0.0, 128
    %1202 = vxpose.xlu0.b32.cont [12/16] 0.0, 128
    %1203 = vxpose.xlu0.b32.cont [13/16] 0.0, 128
    %1204 = vxpose.xlu0.b32.cont [14/16] 0.0, 128
    %1205 = vxpose.xlu0.b32.cont [15/16] 0.0, 128
    %1206 = vxpose.xlu0.b32.end [16/16] 0.0, 128
    %v1207 = vpop.trf.xlu0
    %v1208 = vpop.trf.xlu0
    %v1209 = vpop.trf.xlu0
    %v1210 = vpop.trf.xlu0
    %v1211 = vpop.trf.xlu0
    %v1212 = vpop.trf.xlu0
    %v1213 = vpop.trf.xlu0
    %v1214 = vpop.trf.xlu0
    %v1215 = vpop.trf.xlu0
    %v1216 = vpop.trf.xlu0
    %v1217 = vpop.trf.xlu0
    %v1218 = vpop.trf.xlu0
    %v1219 = vpop.trf.xlu0
    %v1220 = vpop.trf.xlu0
    %v1221 = vpop.trf.xlu0
    %v1222 = vpop.trf.xlu0
    %1223 = vxpose.xlu0.b32.start [1/16] %v1076, 128
    %1224 = vxpose.xlu0.b32.cont [2/16] 0.0, 128
    %1225 = vxpose.xlu0.b32.cont [3/16] 0.0, 128
    %1226 = vxpose.xlu0.b32.cont [4/16] 0.0, 128
    %1227 = vxpose.xlu0.b32.cont [5/16] 0.0, 128
    %1228 = vxpose.xlu0.b32.cont [6/16] 0.0, 128
    %1229 = vxpose.xlu0.b32.cont [7/16] 0.0, 128
    %1230 = vxpose.xlu0.b32.cont [8/16] 0.0, 128
    %1231 = vxpose.xlu0.b32.cont [9/16] 0.0, 128
    %1232 = vxpose.xlu0.b32.cont [10/16] 0.0, 128
    %1233 = vxpose.xlu0.b32.cont [11/16] 0.0, 128
    %1234 = vxpose.xlu0.b32.cont [12/16] 0.0, 128
    %1235 = vxpose.xlu0.b32.cont [13/16] 0.0, 128
    %1236 = vxpose.xlu0.b32.cont [14/16] 0.0, 128
    %1237 = vxpose.xlu0.b32.cont [15/16] 0.0, 128
    %1238 = vxpose.xlu0.b32.end [16/16] 0.0, 128
    %v1239 = vpop.trf.xlu0
    %v1240 = vpop.trf.xlu0
    %v1241 = vpop.trf.xlu0
    %v1242 = vpop.trf.xlu0
    %v1243 = vpop.trf.xlu0
    %v1244 = vpop.trf.xlu0
    %v1245 = vpop.trf.xlu0
    %v1246 = vpop.trf.xlu0
    %v1247 = vpop.trf.xlu0
    %v1248 = vpop.trf.xlu0
    %v1249 = vpop.trf.xlu0
    %v1250 = vpop.trf.xlu0
    %v1251 = vpop.trf.xlu0
    %v1252 = vpop.trf.xlu0
    %v1253 = vpop.trf.xlu0
    %v1254 = vpop.trf.xlu0
    %v1255 = vlaneseq
    %v1256 = vshrl.u32 %v1255, 7
    %v1257 = vsub.s32 0, %v1256
    %v1258 = vrot.slane %v1239, %v1257
    %v1259 = vmul.f32 %v1207, %v1258
    %v1260 = vsel %vm63, %v1190, -inf
    %1261 = vmax.xlane.f32.xlu0 %v1260
    %v1262 = vpop.xlane.xlu0 %1261
    %v1263 = vsub.f32 %v1190, %v1262
    %v1264 = vmul.f32 %v1263, 1.442695
    %v1265 = vpow.pop %v1264
    %v1266 = vsel %vm63, %v1265, 0.0
    %1267 = vadd.xlane.f32.xlu0 %v1266
    %v1268 = vpop.xlane.xlu0 %1267
    %v1269 = vrcp.pop %v1268
    %v1270 = vmul.f32 %v1265, %v1269
    %v1271 = vlog2.pop %v1268
    %v1272 = vmul.f32 %v1271, 0.6931472
    %v1273 = vsub.f32 %v1263, %v1272
    %v1274 = vsub.f32 %v1273, %v82
    %v1275 = vmul.f32 %v1270, %v1274
    %v1276 = vsel %vm63, %v1275, 0.0
    %1277 = vadd.xlane.f32.xlu0 %v1276
    %v1278 = vpop.xlane.xlu0 %1277
    %v1279 = vrot.slane %v1278, 4
    %v1280 = vadd.f32 %v1278, %v1279
    %v1281 = vrot.slane %v1280, 2
    %v1282 = vadd.f32 %v1280, %v1281
    %v1283 = vrot.slane %v1282, 1
    %v1284 = vadd.f32 %v1282, %v1283
    %s1285 = vtos %v1284
    %s1286 = smul.f32 %s1285, 0.125
    %v1287 = vsel %vm63, %v1259, -inf
    %1288 = vmax.xlane.f32.xlu0 %v1287
    %v1289 = vpop.xlane.xlu0 %1288
    %v1290 = vsub.f32 %v1259, %v1289
    %v1291 = vmul.f32 %v1290, 1.442695
    %v1292 = vpow.pop %v1291
    %v1293 = vsel %vm63, %v1292, 0.0
    %1294 = vadd.xlane.f32.xlu0 %v1293
    %v1295 = vpop.xlane.xlu0 %1294
    %v1296 = vrcp.pop %v1295
    %v1297 = vmul.f32 %v1292, %v1296
    %v1298 = vlog2.pop %v1295
    %v1299 = vmul.f32 %v1298, 0.6931472
    %v1300 = vsub.f32 %v1290, %v1299
    %v1301 = vsub.f32 %v1300, %v82
    %v1302 = vmul.f32 %v1297, %v1301
    %v1303 = vsel %vm63, %v1302, 0.0
    %1304 = vadd.xlane.f32.xlu0 %v1303
    %v1305 = vpop.xlane.xlu0 %1304
    %v1306 = vrot.slane %v1305, 4
    %v1307 = vadd.f32 %v1305, %v1306
    %v1308 = vrot.slane %v1307, 2
    %v1309 = vadd.f32 %v1307, %v1308
    %v1310 = vrot.slane %v1309, 1
    %v1311 = vadd.f32 %v1309, %v1310
    %s1312 = vtos %v1311
    %s1313 = smul.f32 %s1312, 0.125
    %s1314 = sadd.f32 %s1286, %s1313
    %1315 = vxpose.xlu0.b32.start [1/16] %v1075, 128
    %1316 = vxpose.xlu0.b32.cont [2/16] 0.0, 128
    %1317 = vxpose.xlu0.b32.cont [3/16] 0.0, 128
    %1318 = vxpose.xlu0.b32.cont [4/16] 0.0, 128
    %1319 = vxpose.xlu0.b32.cont [5/16] 0.0, 128
    %1320 = vxpose.xlu0.b32.cont [6/16] 0.0, 128
    %1321 = vxpose.xlu0.b32.cont [7/16] 0.0, 128
    %1322 = vxpose.xlu0.b32.cont [8/16] 0.0, 128
    %1323 = vxpose.xlu0.b32.cont [9/16] 0.0, 128
    %1324 = vxpose.xlu0.b32.cont [10/16] 0.0, 128
    %1325 = vxpose.xlu0.b32.cont [11/16] 0.0, 128
    %1326 = vxpose.xlu0.b32.cont [12/16] 0.0, 128
    %1327 = vxpose.xlu0.b32.cont [13/16] 0.0, 128
    %1328 = vxpose.xlu0.b32.cont [14/16] 0.0, 128
    %1329 = vxpose.xlu0.b32.cont [15/16] 0.0, 128
    %1330 = vxpose.xlu0.b32.end [16/16] 0.0, 128
    %v1331 = vpop.trf.xlu0
    %v1332 = vpop.trf.xlu0
    %v1333 = vpop.trf.xlu0
    %v1334 = vpop.trf.xlu0
    %v1335 = vpop.trf.xlu0
    %v1336 = vpop.trf.xlu0
    %v1337 = vpop.trf.xlu0
    %v1338 = vpop.trf.xlu0
    %v1339 = vpop.trf.xlu0
    %v1340 = vpop.trf.xlu0
    %v1341 = vpop.trf.xlu0
    %v1342 = vpop.trf.xlu0
    %v1343 = vpop.trf.xlu0
    %v1344 = vpop.trf.xlu0
    %v1345 = vpop.trf.xlu0
    %v1346 = vpop.trf.xlu0
    %v1347 = vlaneseq
    %v1348 = vshrl.u32 %v1347, 7
    %v1349 = vsub.s32 0, %v1348
    %v1350 = vrot.slane %v1331, %v1349
    %v1351 = vadd.f32 %v1071, %v1350
    %v1352 = vmul.f32 %v1151, 2.0
    %v1353 = vsub.f32 %v1351, %v1352
    %v1354 = vmax.f32 %v1353, 0.0
    %v1355 = vrsqrt.pop %v1354
    %v1356 = vmul.f32 %v1354, %v1355
    %vm1357 = vcmp.eq.f32.partialorder %v1354, inf
    %v1358 = vsel %vm1357, %v1354, %v1356
    %vm1359 = vcmp.eq.f32.partialorder %v1354, 0.0
    %v1360 = vand.u32 %v1354, 2147483648
    %v1361 = vsel %vm1359, %v1360, %v1358
    %v1362 = vmul.f32 %v1361, %v90
    %v1363 = vsel %vm63, %v1362, -inf
    %1364 = vmax.xlane.f32.xlu0 %v1363
    %v1365 = vpop.xlane.xlu0 %1364
    %v1366 = vadd.f32 %v1361, %v91
    %v1367 = vsel %vm63, %v1366, inf
    %1368 = vmin.xlane.f32.xlu0 %v1367
    %v1369 = vpop.xlane.xlu0 %1368
    %v1370 = vsub.f32 %v1365, %v1369
    %v1371 = vadd.f32 %v1370, 0.5
    %v1372 = vmax.f32 %v1371, 0.0
    %v1373 = vsel %vm400, %v1372, 0.0
    %1374 = vadd.xlane.f32.xlu0 %v1373
    %v1375 = vpop.xlane.xlu0 %1374
    %v1376 = vrot.slane %v1375, 4
    %v1377 = vadd.f32 %v1375, %v1376
    %v1378 = vrot.slane %v1377, 2
    %v1379 = vadd.f32 %v1377, %v1378
    %v1380 = vrot.slane %v1379, 1
    %v1381 = vadd.f32 %v1379, %v1380
    %s1382 = vtos %v1381
    %s1383 = smul.f32 %s1382, 0.125
    %v1384 = vstv %s1314
    %v1385 = vadd.f32 %v1063, %v1384
    %v1386 = vstv %s1383
    %v1387 = vadd.f32 %v1385, %v1386
    %s1388 = scalar_lea.vmem [#allocation2], 32
    %v1389 = vld [vmem:[%s1388] sm:$0xff]
    %s1390 = scalar_lea.vmem [#allocation5], 32
    %v1391 = vld [vmem:[%s1390] sm:$0xff]
    %v1392 = vmul.f32 %v1389, %v1389
    %v1393 = vsel %vm95, %v1392, 0.0
    %1394 = vadd.xlane.f32.xlu0 %v1393
    %v1395 = vpop.xlane.xlu0 %1394
    %v1396 = vmul.f32 %v1391, %v1391
    %v1397 = vsel %vm95, %v1396, 0.0
    %1398 = vadd.xlane.f32.xlu0 %v1397
    %v1399 = vpop.xlane.xlu0 %1398
    %v1400 = vrsqrt.pop %v1395
    %v1401 = vrsqrt.pop %v1399
    %v1403 = vsel %vm95, %v1389, 0
    %v1406 = vsel %vm95, %v1391, 0
    %1408 = vmatprep.subr.mxu0 0.0
    %1409 = vmatpush1.xpose.msra.mxu0 0.0
    %1410 = vmatprep.subr.mxu0 0.0
    %1411 = vmatpush1.xpose.msra.mxu0 0.0
    %1412 = vmatprep.subr.mxu0 0.0
    %1413 = vmatpush1.xpose.msra.mxu0 0.0
    %1414 = vmatprep.subr.mxu0 0.0
    %1415 = vmatpush1.xpose.msra.mxu0 0.0
    %1416 = vmatprep.subr.mxu0 0.0
    %1417 = vmatpush1.xpose.msra.mxu0 0.0
    %1418 = vmatprep.subr.mxu0 0.0
    %1419 = vmatpush1.xpose.msra.mxu0 0.0
    %1420 = vmatprep.subr.mxu0 0.0
    %1421 = vmatpush1.xpose.msra.mxu0 0.0
    %1422 = vmatprep.subr.mxu0 0.0
    %1423 = vmatpush1.xpose.msra.mxu0 0.0
    %1424 = vmatprep.subr.mxu0 0.0
    %1425 = vmatpush1.xpose.msra.mxu0 0.0
    %1426 = vmatprep.subr.mxu0 0.0
    %1427 = vmatpush1.xpose.msra.mxu0 0.0
    %1428 = vmatprep.subr.mxu0 0.0
    %1429 = vmatpush1.xpose.msra.mxu0 0.0
    %1430 = vmatprep.subr.mxu0 0.0
    %1431 = vmatpush1.xpose.msra.mxu0 0.0
    %1432 = vmatprep.subr.mxu0 0.0
    %1433 = vmatpush1.xpose.msra.mxu0 0.0
    %1434 = vmatprep.subr.mxu0 0.0
    %1435 = vmatpush1.xpose.msra.mxu0 0.0
    %1436 = vmatprep.subr.mxu0 0.0
    %1437 = vmatpush1.xpose.msra.mxu0 0.0
    %1438 = vmatprep.subr.mxu0 0.0
    %1439 = vmatpush1.xpose.msra.mxu0 %v1406
    %1440 = vmatprep.subr.mxu0 0.0
    %1441 = vmatpush2.xpose.msra.mxu0 0.0
    %1442 = vmatprep.subr.mxu0 0.0
    %1443 = vmatpush2.xpose.msra.mxu0 0.0
    %1444 = vmatprep.subr.mxu0 0.0
    %1445 = vmatpush2.xpose.msra.mxu0 0.0
    %1446 = vmatprep.subr.mxu0 0.0
    %1447 = vmatpush2.xpose.msra.mxu0 0.0
    %1448 = vmatprep.subr.mxu0 0.0
    %1449 = vmatpush2.xpose.msra.mxu0 0.0
    %1450 = vmatprep.subr.mxu0 0.0
    %1451 = vmatpush2.xpose.msra.mxu0 0.0
    %1452 = vmatprep.subr.mxu0 0.0
    %1453 = vmatpush2.xpose.msra.mxu0 0.0
    %1454 = vmatprep.subr.mxu0 0.0
    %1455 = vmatpush2.xpose.msra.mxu0 0.0
    %1456 = vmatprep.subr.mxu0 0.0
    %1457 = vmatpush2.xpose.msra.mxu0 0.0
    %1458 = vmatprep.subr.mxu0 0.0
    %1459 = vmatpush2.xpose.msra.mxu0 0.0
    %1460 = vmatprep.subr.mxu0 0.0
    %1461 = vmatpush2.xpose.msra.mxu0 0.0
    %1462 = vmatprep.subr.mxu0 0.0
    %1463 = vmatpush2.xpose.msra.mxu0 0.0
    %1464 = vmatprep.subr.mxu0 0.0
    %1465 = vmatpush2.xpose.msra.mxu0 0.0
    %1466 = vmatprep.subr.mxu0 0.0
    %1467 = vmatpush2.xpose.msra.mxu0 0.0
    %1468 = vmatprep.subr.mxu0 0.0
    %1469 = vmatpush2.xpose.msra.mxu0 0.0
    %1470 = vmatprep.subr.mxu0 0.0
    %1471 = vmatpush2.xpose.msra.mxu0 0.0
    %1472 = vmatprep.mubr.f32.mxu0 0.0
    %1473 = vmatmul.mubr.f32.gmra.mxu0 %v1403
    %v1474 = vpop.f32.mrf.mxu0
    %v1475 = vadd.f32 0.0, %v1474
    %v1476 = vpop.f32.mrf.mxu0
    %1477 = vdwg.mxu0
    %1478 = vxpose.xlu0.b32.start [1/16] %v1401, 128
    %1479 = vxpose.xlu0.b32.cont [2/16] 0.0, 128
    %1480 = vxpose.xlu0.b32.cont [3/16] 0.0, 128
    %1481 = vxpose.xlu0.b32.cont [4/16] 0.0, 128
    %1482 = vxpose.xlu0.b32.cont [5/16] 0.0, 128
    %1483 = vxpose.xlu0.b32.cont [6/16] 0.0, 128
    %1484 = vxpose.xlu0.b32.cont [7/16] 0.0, 128
    %1485 = vxpose.xlu0.b32.cont [8/16] 0.0, 128
    %1486 = vxpose.xlu0.b32.cont [9/16] 0.0, 128
    %1487 = vxpose.xlu0.b32.cont [10/16] 0.0, 128
    %1488 = vxpose.xlu0.b32.cont [11/16] 0.0, 128
    %1489 = vxpose.xlu0.b32.cont [12/16] 0.0, 128
    %1490 = vxpose.xlu0.b32.cont [13/16] 0.0, 128
    %1491 = vxpose.xlu0.b32.cont [14/16] 0.0, 128
    %1492 = vxpose.xlu0.b32.cont [15/16] 0.0, 128
    %1493 = vxpose.xlu0.b32.end [16/16] 0.0, 128
    %v1494 = vpop.trf.xlu0
    %v1495 = vpop.trf.xlu0
    %v1496 = vpop.trf.xlu0
    %v1497 = vpop.trf.xlu0
    %v1498 = vpop.trf.xlu0
    %v1499 = vpop.trf.xlu0
    %v1500 = vpop.trf.xlu0
    %v1501 = vpop.trf.xlu0
    %v1502 = vpop.trf.xlu0
    %v1503 = vpop.trf.xlu0
    %v1504 = vpop.trf.xlu0
    %v1505 = vpop.trf.xlu0
    %v1506 = vpop.trf.xlu0
    %v1507 = vpop.trf.xlu0
    %v1508 = vpop.trf.xlu0
    %v1509 = vpop.trf.xlu0
    %v1510 = vlaneseq
    %v1511 = vshrl.u32 %v1510, 7
    %v1512 = vsub.s32 0, %v1511
    %v1513 = vrot.slane %v1494, %v1512
    %v1514 = vmul.f32 %v1475, %v1513
    %1515 = vxpose.xlu0.b32.start [1/16] %v1475, 128
    %1516 = vxpose.xlu0.b32.cont [2/16] 0.0, 128
    %1517 = vxpose.xlu0.b32.cont [3/16] 0.0, 128
    %1518 = vxpose.xlu0.b32.cont [4/16] 0.0, 128
    %1519 = vxpose.xlu0.b32.cont [5/16] 0.0, 128
    %1520 = vxpose.xlu0.b32.cont [6/16] 0.0, 128
    %1521 = vxpose.xlu0.b32.cont [7/16] 0.0, 128
    %1522 = vxpose.xlu0.b32.cont [8/16] 0.0, 128
    %1523 = vxpose.xlu0.b32.cont [9/16] 0.0, 128
    %1524 = vxpose.xlu0.b32.cont [10/16] 0.0, 128
    %1525 = vxpose.xlu0.b32.cont [11/16] 0.0, 128
    %1526 = vxpose.xlu0.b32.cont [12/16] 0.0, 128
    %1527 = vxpose.xlu0.b32.cont [13/16] 0.0, 128
    %1528 = vxpose.xlu0.b32.cont [14/16] 0.0, 128
    %1529 = vxpose.xlu0.b32.cont [15/16] 0.0, 128
    %1530 = vxpose.xlu0.b32.end [16/16] 0.0, 128
    %v1531 = vpop.trf.xlu0
    %v1532 = vpop.trf.xlu0
    %v1533 = vpop.trf.xlu0
    %v1534 = vpop.trf.xlu0
    %v1535 = vpop.trf.xlu0
    %v1536 = vpop.trf.xlu0
    %v1537 = vpop.trf.xlu0
    %v1538 = vpop.trf.xlu0
    %v1539 = vpop.trf.xlu0
    %v1540 = vpop.trf.xlu0
    %v1541 = vpop.trf.xlu0
    %v1542 = vpop.trf.xlu0
    %v1543 = vpop.trf.xlu0
    %v1544 = vpop.trf.xlu0
    %v1545 = vpop.trf.xlu0
    %v1546 = vpop.trf.xlu0
    %1547 = vxpose.xlu0.b32.start [1/16] %v1400, 128
    %1548 = vxpose.xlu0.b32.cont [2/16] 0.0, 128
    %1549 = vxpose.xlu0.b32.cont [3/16] 0.0, 128
    %1550 = vxpose.xlu0.b32.cont [4/16] 0.0, 128
    %1551 = vxpose.xlu0.b32.cont [5/16] 0.0, 128
    %1552 = vxpose.xlu0.b32.cont [6/16] 0.0, 128
    %1553 = vxpose.xlu0.b32.cont [7/16] 0.0, 128
    %1554 = vxpose.xlu0.b32.cont [8/16] 0.0, 128
    %1555 = vxpose.xlu0.b32.cont [9/16] 0.0, 128
    %1556 = vxpose.xlu0.b32.cont [10/16] 0.0, 128
    %1557 = vxpose.xlu0.b32.cont [11/16] 0.0, 128
    %1558 = vxpose.xlu0.b32.cont [12/16] 0.0, 128
    %1559 = vxpose.xlu0.b32.cont [13/16] 0.0, 128
    %1560 = vxpose.xlu0.b32.cont [14/16] 0.0, 128
    %1561 = vxpose.xlu0.b32.cont [15/16] 0.0, 128
    %1562 = vxpose.xlu0.b32.end [16/16] 0.0, 128
    %v1563 = vpop.trf.xlu0
    %v1564 = vpop.trf.xlu0
    %v1565 = vpop.trf.xlu0
    %v1566 = vpop.trf.xlu0
    %v1567 = vpop.trf.xlu0
    %v1568 = vpop.trf.xlu0
    %v1569 = vpop.trf.xlu0
    %v1570 = vpop.trf.xlu0
    %v1571 = vpop.trf.xlu0
    %v1572 = vpop.trf.xlu0
    %v1573 = vpop.trf.xlu0
    %v1574 = vpop.trf.xlu0
    %v1575 = vpop.trf.xlu0
    %v1576 = vpop.trf.xlu0
    %v1577 = vpop.trf.xlu0
    %v1578 = vpop.trf.xlu0
    %v1579 = vlaneseq
    %v1580 = vshrl.u32 %v1579, 7
    %v1581 = vsub.s32 0, %v1580
    %v1582 = vrot.slane %v1563, %v1581
    %v1583 = vmul.f32 %v1531, %v1582
    %v1584 = vsel %vm63, %v1514, -inf
    %1585 = vmax.xlane.f32.xlu0 %v1584
    %v1586 = vpop.xlane.xlu0 %1585
    %v1587 = vsub.f32 %v1514, %v1586
    %v1588 = vmul.f32 %v1587, 1.442695
    %v1589 = vpow.pop %v1588
    %v1590 = vsel %vm63, %v1589, 0.0
    %1591 = vadd.xlane.f32.xlu0 %v1590
    %v1592 = vpop.xlane.xlu0 %1591
    %v1593 = vrcp.pop %v1592
    %v1594 = vmul.f32 %v1589, %v1593
    %v1595 = vlog2.pop %v1592
    %v1596 = vmul.f32 %v1595, 0.6931472
    %v1597 = vsub.f32 %v1587, %v1596
    %v1598 = vsub.f32 %v1597, %v82
    %v1599 = vmul.f32 %v1594, %v1598
    %v1600 = vsel %vm63, %v1599, 0.0
    %1601 = vadd.xlane.f32.xlu0 %v1600
    %v1602 = vpop.xlane.xlu0 %1601
    %v1603 = vrot.slane %v1602, 4
    %v1604 = vadd.f32 %v1602, %v1603
    %v1605 = vrot.slane %v1604, 2
    %v1606 = vadd.f32 %v1604, %v1605
    %v1607 = vrot.slane %v1606, 1
    %v1608 = vadd.f32 %v1606, %v1607
    %s1609 = vtos %v1608
    %s1610 = smul.f32 %s1609, 0.125
    %v1611 = vsel %vm63, %v1583, -inf
    %1612 = vmax.xlane.f32.xlu0 %v1611
    %v1613 = vpop.xlane.xlu0 %1612
    %v1614 = vsub.f32 %v1583, %v1613
    %v1615 = vmul.f32 %v1614, 1.442695
    %v1616 = vpow.pop %v1615
    %v1617 = vsel %vm63, %v1616, 0.0
    %1618 = vadd.xlane.f32.xlu0 %v1617
    %v1619 = vpop.xlane.xlu0 %1618
    %v1620 = vrcp.pop %v1619
    %v1621 = vmul.f32 %v1616, %v1620
    %v1622 = vlog2.pop %v1619
    %v1623 = vmul.f32 %v1622, 0.6931472
    %v1624 = vsub.f32 %v1614, %v1623
    %v1625 = vsub.f32 %v1624, %v82
    %v1626 = vmul.f32 %v1621, %v1625
    %v1627 = vsel %vm63, %v1626, 0.0
    %1628 = vadd.xlane.f32.xlu0 %v1627
    %v1629 = vpop.xlane.xlu0 %1628
    %v1630 = vrot.slane %v1629, 4
    %v1631 = vadd.f32 %v1629, %v1630
    %v1632 = vrot.slane %v1631, 2
    %v1633 = vadd.f32 %v1631, %v1632
    %v1634 = vrot.slane %v1633, 1
    %v1635 = vadd.f32 %v1633, %v1634
    %s1636 = vtos %v1635
    %s1637 = smul.f32 %s1636, 0.125
    %s1638 = sadd.f32 %s1610, %s1637
    %1639 = vxpose.xlu0.b32.start [1/16] %v1399, 128
    %1640 = vxpose.xlu0.b32.cont [2/16] 0.0, 128
    %1641 = vxpose.xlu0.b32.cont [3/16] 0.0, 128
    %1642 = vxpose.xlu0.b32.cont [4/16] 0.0, 128
    %1643 = vxpose.xlu0.b32.cont [5/16] 0.0, 128
    %1644 = vxpose.xlu0.b32.cont [6/16] 0.0, 128
    %1645 = vxpose.xlu0.b32.cont [7/16] 0.0, 128
    %1646 = vxpose.xlu0.b32.cont [8/16] 0.0, 128
    %1647 = vxpose.xlu0.b32.cont [9/16] 0.0, 128
    %1648 = vxpose.xlu0.b32.cont [10/16] 0.0, 128
    %1649 = vxpose.xlu0.b32.cont [11/16] 0.0, 128
    %1650 = vxpose.xlu0.b32.cont [12/16] 0.0, 128
    %1651 = vxpose.xlu0.b32.cont [13/16] 0.0, 128
    %1652 = vxpose.xlu0.b32.cont [14/16] 0.0, 128
    %1653 = vxpose.xlu0.b32.cont [15/16] 0.0, 128
    %1654 = vxpose.xlu0.b32.end [16/16] 0.0, 128
    %v1655 = vpop.trf.xlu0
    %v1656 = vpop.trf.xlu0
    %v1657 = vpop.trf.xlu0
    %v1658 = vpop.trf.xlu0
    %v1659 = vpop.trf.xlu0
    %v1660 = vpop.trf.xlu0
    %v1661 = vpop.trf.xlu0
    %v1662 = vpop.trf.xlu0
    %v1663 = vpop.trf.xlu0
    %v1664 = vpop.trf.xlu0
    %v1665 = vpop.trf.xlu0
    %v1666 = vpop.trf.xlu0
    %v1667 = vpop.trf.xlu0
    %v1668 = vpop.trf.xlu0
    %v1669 = vpop.trf.xlu0
    %v1670 = vpop.trf.xlu0
    %v1671 = vlaneseq
    %v1672 = vshrl.u32 %v1671, 7
    %v1673 = vsub.s32 0, %v1672
    %v1674 = vrot.slane %v1655, %v1673
    %v1675 = vadd.f32 %v1395, %v1674
    %v1676 = vmul.f32 %v1475, 2.0
    %v1677 = vsub.f32 %v1675, %v1676
    %v1678 = vmax.f32 %v1677, 0.0
    %v1679 = vrsqrt.pop %v1678
    %v1680 = vmul.f32 %v1678, %v1679
    %vm1681 = vcmp.eq.f32.partialorder %v1678, inf
    %v1682 = vsel %vm1681, %v1678, %v1680
    %vm1683 = vcmp.eq.f32.partialorder %v1678, 0.0
    %v1684 = vand.u32 %v1678, 2147483648
    %v1685 = vsel %vm1683, %v1684, %v1682
    %v1686 = vmul.f32 %v1685, %v90
    %v1687 = vsel %vm63, %v1686, -inf
    %1688 = vmax.xlane.f32.xlu0 %v1687
    %v1689 = vpop.xlane.xlu0 %1688
    %v1690 = vadd.f32 %v1685, %v91
    %v1691 = vsel %vm63, %v1690, inf
    %1692 = vmin.xlane.f32.xlu0 %v1691
    %v1693 = vpop.xlane.xlu0 %1692
    %v1694 = vsub.f32 %v1689, %v1693
    %v1695 = vadd.f32 %v1694, 0.5
    %v1696 = vmax.f32 %v1695, 0.0
    %v1697 = vsel %vm400, %v1696, 0.0
    %1698 = vadd.xlane.f32.xlu0 %v1697
    %v1699 = vpop.xlane.xlu0 %1698
    %v1700 = vrot.slane %v1699, 4
    %v1701 = vadd.f32 %v1699, %v1700
    %v1702 = vrot.slane %v1701, 2
    %v1703 = vadd.f32 %v1701, %v1702
    %v1704 = vrot.slane %v1703, 1
    %v1705 = vadd.f32 %v1703, %v1704
    %s1706 = vtos %v1705
    %s1707 = smul.f32 %s1706, 0.125
    %v1708 = vstv %s1638
    %v1709 = vadd.f32 %v1387, %v1708
    %v1710 = vstv %s1707
    %v1711 = vadd.f32 %v1709, %v1710
    %s1712 = scalar_lea.vmem [#allocation2], 40
    %v1713 = vld [vmem:[%s1712] sm:$0xff]
    %s1714 = scalar_lea.vmem [#allocation5], 40
    %v1715 = vld [vmem:[%s1714] sm:$0xff]
    %v1716 = vmul.f32 %v1713, %v1713
    %v1717 = vsel %vm95, %v1716, 0.0
    %1718 = vadd.xlane.f32.xlu0 %v1717
    %v1719 = vpop.xlane.xlu0 %1718
    %v1720 = vmul.f32 %v1715, %v1715
    %v1721 = vsel %vm95, %v1720, 0.0
    %1722 = vadd.xlane.f32.xlu0 %v1721
    %v1723 = vpop.xlane.xlu0 %1722
    %v1724 = vrsqrt.pop %v1719
    %v1725 = vrsqrt.pop %v1723
    %v1727 = vsel %vm95, %v1713, 0
    %v1730 = vsel %vm95, %v1715, 0
    %1732 = vmatprep.subr.mxu0 0.0
    %1733 = vmatpush1.xpose.msra.mxu0 0.0
    %1734 = vmatprep.subr.mxu0 0.0
    %1735 = vmatpush1.xpose.msra.mxu0 0.0
    %1736 = vmatprep.subr.mxu0 0.0
    %1737 = vmatpush1.xpose.msra.mxu0 0.0
    %1738 = vmatprep.subr.mxu0 0.0
    %1739 = vmatpush1.xpose.msra.mxu0 0.0
    %1740 = vmatprep.subr.mxu0 0.0
    %1741 = vmatpush1.xpose.msra.mxu0 0.0
    %1742 = vmatprep.subr.mxu0 0.0
    %1743 = vmatpush1.xpose.msra.mxu0 0.0
    %1744 = vmatprep.subr.mxu0 0.0
    %1745 = vmatpush1.xpose.msra.mxu0 0.0
    %1746 = vmatprep.subr.mxu0 0.0
    %1747 = vmatpush1.xpose.msra.mxu0 0.0
    %1748 = vmatprep.subr.mxu0 0.0
    %1749 = vmatpush1.xpose.msra.mxu0 0.0
    %1750 = vmatprep.subr.mxu0 0.0
    %1751 = vmatpush1.xpose.msra.mxu0 0.0
    %1752 = vmatprep.subr.mxu0 0.0
    %1753 = vmatpush1.xpose.msra.mxu0 0.0
    %1754 = vmatprep.subr.mxu0 0.0
    %1755 = vmatpush1.xpose.msra.mxu0 0.0
    %1756 = vmatprep.subr.mxu0 0.0
    %1757 = vmatpush1.xpose.msra.mxu0 0.0
    %1758 = vmatprep.subr.mxu0 0.0
    %1759 = vmatpush1.xpose.msra.mxu0 0.0
    %1760 = vmatprep.subr.mxu0 0.0
    %1761 = vmatpush1.xpose.msra.mxu0 0.0
    %1762 = vmatprep.subr.mxu0 0.0
    %1763 = vmatpush1.xpose.msra.mxu0 %v1730
    %1764 = vmatprep.subr.mxu0 0.0
    %1765 = vmatpush2.xpose.msra.mxu0 0.0
    %1766 = vmatprep.subr.mxu0 0.0
    %1767 = vmatpush2.xpose.msra.mxu0 0.0
    %1768 = vmatprep.subr.mxu0 0.0
    %1769 = vmatpush2.xpose.msra.mxu0 0.0
    %1770 = vmatprep.subr.mxu0 0.0
    %1771 = vmatpush2.xpose.msra.mxu0 0.0
    %1772 = vmatprep.subr.mxu0 0.0
    %1773 = vmatpush2.xpose.msra.mxu0 0.0
    %1774 = vmatprep.subr.mxu0 0.0
    %1775 = vmatpush2.xpose.msra.mxu0 0.0
    %1776 = vmatprep.subr.mxu0 0.0
    %1777 = vmatpush2.xpose.msra.mxu0 0.0
    %1778 = vmatprep.subr.mxu0 0.0
    %1779 = vmatpush2.xpose.msra.mxu0 0.0
    %1780 = vmatprep.subr.mxu0 0.0
    %1781 = vmatpush2.xpose.msra.mxu0 0.0
    %1782 = vmatprep.subr.mxu0 0.0
    %1783 = vmatpush2.xpose.msra.mxu0 0.0
    %1784 = vmatprep.subr.mxu0 0.0
    %1785 = vmatpush2.xpose.msra.mxu0 0.0
    %1786 = vmatprep.subr.mxu0 0.0
    %1787 = vmatpush2.xpose.msra.mxu0 0.0
    %1788 = vmatprep.subr.mxu0 0.0
    %1789 = vmatpush2.xpose.msra.mxu0 0.0
    %1790 = vmatprep.subr.mxu0 0.0
    %1791 = vmatpush2.xpose.msra.mxu0 0.0
    %1792 = vmatprep.subr.mxu0 0.0
    %1793 = vmatpush2.xpose.msra.mxu0 0.0
    %1794 = vmatprep.subr.mxu0 0.0
    %1795 = vmatpush2.xpose.msra.mxu0 0.0
    %1796 = vmatprep.mubr.f32.mxu0 0.0
    %1797 = vmatmul.mubr.f32.gmra.mxu0 %v1727
    %v1798 = vpop.f32.mrf.mxu0
    %v1799 = vadd.f32 0.0, %v1798
    %v1800 = vpop.f32.mrf.mxu0
    %1801 = vdwg.mxu0
    %1802 = vxpose.xlu0.b32.start [1/16] %v1725, 128
    %1803 = vxpose.xlu0.b32.cont [2/16] 0.0, 128
    %1804 = vxpose.xlu0.b32.cont [3/16] 0.0, 128
    %1805 = vxpose.xlu0.b32.cont [4/16] 0.0, 128
    %1806 = vxpose.xlu0.b32.cont [5/16] 0.0, 128
    %1807 = vxpose.xlu0.b32.cont [6/16] 0.0, 128
    %1808 = vxpose.xlu0.b32.cont [7/16] 0.0, 128
    %1809 = vxpose.xlu0.b32.cont [8/16] 0.0, 128
    %1810 = vxpose.xlu0.b32.cont [9/16] 0.0, 128
    %1811 = vxpose.xlu0.b32.cont [10/16] 0.0, 128
    %1812 = vxpose.xlu0.b32.cont [11/16] 0.0, 128
    %1813 = vxpose.xlu0.b32.cont [12/16] 0.0, 128
    %1814 = vxpose.xlu0.b32.cont [13/16] 0.0, 128
    %1815 = vxpose.xlu0.b32.cont [14/16] 0.0, 128
    %1816 = vxpose.xlu0.b32.cont [15/16] 0.0, 128
    %1817 = vxpose.xlu0.b32.end [16/16] 0.0, 128
    %v1818 = vpop.trf.xlu0
    %v1819 = vpop.trf.xlu0
    %v1820 = vpop.trf.xlu0
    %v1821 = vpop.trf.xlu0
    %v1822 = vpop.trf.xlu0
    %v1823 = vpop.trf.xlu0
    %v1824 = vpop.trf.xlu0
    %v1825 = vpop.trf.xlu0
    %v1826 = vpop.trf.xlu0
    %v1827 = vpop.trf.xlu0
    %v1828 = vpop.trf.xlu0
    %v1829 = vpop.trf.xlu0
    %v1830 = vpop.trf.xlu0
    %v1831 = vpop.trf.xlu0
    %v1832 = vpop.trf.xlu0
    %v1833 = vpop.trf.xlu0
    %v1834 = vlaneseq
    %v1835 = vshrl.u32 %v1834, 7
    %v1836 = vsub.s32 0, %v1835
    %v1837 = vrot.slane %v1818, %v1836
    %v1838 = vmul.f32 %v1799, %v1837
    %1839 = vxpose.xlu0.b32.start [1/16] %v1799, 128
    %1840 = vxpose.xlu0.b32.cont [2/16] 0.0, 128
    %1841 = vxpose.xlu0.b32.cont [3/16] 0.0, 128
    %1842 = vxpose.xlu0.b32.cont [4/16] 0.0, 128
    %1843 = vxpose.xlu0.b32.cont [5/16] 0.0, 128
    %1844 = vxpose.xlu0.b32.cont [6/16] 0.0, 128
    %1845 = vxpose.xlu0.b32.cont [7/16] 0.0, 128
    %1846 = vxpose.xlu0.b32.cont [8/16] 0.0, 128
    %1847 = vxpose.xlu0.b32.cont [9/16] 0.0, 128
    %1848 = vxpose.xlu0.b32.cont [10/16] 0.0, 128
    %1849 = vxpose.xlu0.b32.cont [11/16] 0.0, 128
    %1850 = vxpose.xlu0.b32.cont [12/16] 0.0, 128
    %1851 = vxpose.xlu0.b32.cont [13/16] 0.0, 128
    %1852 = vxpose.xlu0.b32.cont [14/16] 0.0, 128
    %1853 = vxpose.xlu0.b32.cont [15/16] 0.0, 128
    %1854 = vxpose.xlu0.b32.end [16/16] 0.0, 128
    %v1855 = vpop.trf.xlu0
    %v1856 = vpop.trf.xlu0
    %v1857 = vpop.trf.xlu0
    %v1858 = vpop.trf.xlu0
    %v1859 = vpop.trf.xlu0
    %v1860 = vpop.trf.xlu0
    %v1861 = vpop.trf.xlu0
    %v1862 = vpop.trf.xlu0
    %v1863 = vpop.trf.xlu0
    %v1864 = vpop.trf.xlu0
    %v1865 = vpop.trf.xlu0
    %v1866 = vpop.trf.xlu0
    %v1867 = vpop.trf.xlu0
    %v1868 = vpop.trf.xlu0
    %v1869 = vpop.trf.xlu0
    %v1870 = vpop.trf.xlu0
    %1871 = vxpose.xlu0.b32.start [1/16] %v1724, 128
    %1872 = vxpose.xlu0.b32.cont [2/16] 0.0, 128
    %1873 = vxpose.xlu0.b32.cont [3/16] 0.0, 128
    %1874 = vxpose.xlu0.b32.cont [4/16] 0.0, 128
    %1875 = vxpose.xlu0.b32.cont [5/16] 0.0, 128
    %1876 = vxpose.xlu0.b32.cont [6/16] 0.0, 128
    %1877 = vxpose.xlu0.b32.cont [7/16] 0.0, 128
    %1878 = vxpose.xlu0.b32.cont [8/16] 0.0, 128
    %1879 = vxpose.xlu0.b32.cont [9/16] 0.0, 128
    %1880 = vxpose.xlu0.b32.cont [10/16] 0.0, 128
    %1881 = vxpose.xlu0.b32.cont [11/16] 0.0, 128
    %1882 = vxpose.xlu0.b32.cont [12/16] 0.0, 128
    %1883 = vxpose.xlu0.b32.cont [13/16] 0.0, 128
    %1884 = vxpose.xlu0.b32.cont [14/16] 0.0, 128
    %1885 = vxpose.xlu0.b32.cont [15/16] 0.0, 128
    %1886 = vxpose.xlu0.b32.end [16/16] 0.0, 128
    %v1887 = vpop.trf.xlu0
    %v1888 = vpop.trf.xlu0
    %v1889 = vpop.trf.xlu0
    %v1890 = vpop.trf.xlu0
    %v1891 = vpop.trf.xlu0
    %v1892 = vpop.trf.xlu0
    %v1893 = vpop.trf.xlu0
    %v1894 = vpop.trf.xlu0
    %v1895 = vpop.trf.xlu0
    %v1896 = vpop.trf.xlu0
    %v1897 = vpop.trf.xlu0
    %v1898 = vpop.trf.xlu0
    %v1899 = vpop.trf.xlu0
    %v1900 = vpop.trf.xlu0
    %v1901 = vpop.trf.xlu0
    %v1902 = vpop.trf.xlu0
    %v1903 = vlaneseq
    %v1904 = vshrl.u32 %v1903, 7
    %v1905 = vsub.s32 0, %v1904
    %v1906 = vrot.slane %v1887, %v1905
    %v1907 = vmul.f32 %v1855, %v1906
    %v1908 = vsel %vm63, %v1838, -inf
    %1909 = vmax.xlane.f32.xlu0 %v1908
    %v1910 = vpop.xlane.xlu0 %1909
    %v1911 = vsub.f32 %v1838, %v1910
    %v1912 = vmul.f32 %v1911, 1.442695
    %v1913 = vpow.pop %v1912
    %v1914 = vsel %vm63, %v1913, 0.0
    %1915 = vadd.xlane.f32.xlu0 %v1914
    %v1916 = vpop.xlane.xlu0 %1915
    %v1917 = vrcp.pop %v1916
    %v1918 = vmul.f32 %v1913, %v1917
    %v1919 = vlog2.pop %v1916
    %v1920 = vmul.f32 %v1919, 0.6931472
    %v1921 = vsub.f32 %v1911, %v1920
    %v1922 = vsub.f32 %v1921, %v82
    %v1923 = vmul.f32 %v1918, %v1922
    %v1924 = vsel %vm63, %v1923, 0.0
    %1925 = vadd.xlane.f32.xlu0 %v1924
    %v1926 = vpop.xlane.xlu0 %1925
    %v1927 = vrot.slane %v1926, 4
    %v1928 = vadd.f32 %v1926, %v1927
    %v1929 = vrot.slane %v1928, 2
    %v1930 = vadd.f32 %v1928, %v1929
    %v1931 = vrot.slane %v1930, 1
    %v1932 = vadd.f32 %v1930, %v1931
    %s1933 = vtos %v1932
    %s1934 = smul.f32 %s1933, 0.125
    %v1935 = vsel %vm63, %v1907, -inf
    %1936 = vmax.xlane.f32.xlu0 %v1935
    %v1937 = vpop.xlane.xlu0 %1936
    %v1938 = vsub.f32 %v1907, %v1937
    %v1939 = vmul.f32 %v1938, 1.442695
    %v1940 = vpow.pop %v1939
    %v1941 = vsel %vm63, %v1940, 0.0
    %1942 = vadd.xlane.f32.xlu0 %v1941
    %v1943 = vpop.xlane.xlu0 %1942
    %v1944 = vrcp.pop %v1943
    %v1945 = vmul.f32 %v1940, %v1944
    %v1946 = vlog2.pop %v1943
    %v1947 = vmul.f32 %v1946, 0.6931472
    %v1948 = vsub.f32 %v1938, %v1947
    %v1949 = vsub.f32 %v1948, %v82
    %v1950 = vmul.f32 %v1945, %v1949
    %v1951 = vsel %vm63, %v1950, 0.0
    %1952 = vadd.xlane.f32.xlu0 %v1951
    %v1953 = vpop.xlane.xlu0 %1952
    %v1954 = vrot.slane %v1953, 4
    %v1955 = vadd.f32 %v1953, %v1954
    %v1956 = vrot.slane %v1955, 2
    %v1957 = vadd.f32 %v1955, %v1956
    %v1958 = vrot.slane %v1957, 1
    %v1959 = vadd.f32 %v1957, %v1958
    %s1960 = vtos %v1959
    %s1961 = smul.f32 %s1960, 0.125
    %s1962 = sadd.f32 %s1934, %s1961
    %1963 = vxpose.xlu0.b32.start [1/16] %v1723, 128
    %1964 = vxpose.xlu0.b32.cont [2/16] 0.0, 128
    %1965 = vxpose.xlu0.b32.cont [3/16] 0.0, 128
    %1966 = vxpose.xlu0.b32.cont [4/16] 0.0, 128
    %1967 = vxpose.xlu0.b32.cont [5/16] 0.0, 128
    %1968 = vxpose.xlu0.b32.cont [6/16] 0.0, 128
    %1969 = vxpose.xlu0.b32.cont [7/16] 0.0, 128
    %1970 = vxpose.xlu0.b32.cont [8/16] 0.0, 128
    %1971 = vxpose.xlu0.b32.cont [9/16] 0.0, 128
    %1972 = vxpose.xlu0.b32.cont [10/16] 0.0, 128
    %1973 = vxpose.xlu0.b32.cont [11/16] 0.0, 128
    %1974 = vxpose.xlu0.b32.cont [12/16] 0.0, 128
    %1975 = vxpose.xlu0.b32.cont [13/16] 0.0, 128
    %1976 = vxpose.xlu0.b32.cont [14/16] 0.0, 128
    %1977 = vxpose.xlu0.b32.cont [15/16] 0.0, 128
    %1978 = vxpose.xlu0.b32.end [16/16] 0.0, 128
    %v1979 = vpop.trf.xlu0
    %v1980 = vpop.trf.xlu0
    %v1981 = vpop.trf.xlu0
    %v1982 = vpop.trf.xlu0
    %v1983 = vpop.trf.xlu0
    %v1984 = vpop.trf.xlu0
    %v1985 = vpop.trf.xlu0
    %v1986 = vpop.trf.xlu0
    %v1987 = vpop.trf.xlu0
    %v1988 = vpop.trf.xlu0
    %v1989 = vpop.trf.xlu0
    %v1990 = vpop.trf.xlu0
    %v1991 = vpop.trf.xlu0
    %v1992 = vpop.trf.xlu0
    %v1993 = vpop.trf.xlu0
    %v1994 = vpop.trf.xlu0
    %v1995 = vlaneseq
    %v1996 = vshrl.u32 %v1995, 7
    %v1997 = vsub.s32 0, %v1996
    %v1998 = vrot.slane %v1979, %v1997
    %v1999 = vadd.f32 %v1719, %v1998
    %v2000 = vmul.f32 %v1799, 2.0
    %v2001 = vsub.f32 %v1999, %v2000
    %v2002 = vmax.f32 %v2001, 0.0
    %v2003 = vrsqrt.pop %v2002
    %v2004 = vmul.f32 %v2002, %v2003
    %vm2005 = vcmp.eq.f32.partialorder %v2002, inf
    %v2006 = vsel %vm2005, %v2002, %v2004
    %vm2007 = vcmp.eq.f32.partialorder %v2002, 0.0
    %v2008 = vand.u32 %v2002, 2147483648
    %v2009 = vsel %vm2007, %v2008, %v2006
    %v2010 = vmul.f32 %v2009, %v90
    %v2011 = vsel %vm63, %v2010, -inf
    %2012 = vmax.xlane.f32.xlu0 %v2011
    %v2013 = vpop.xlane.xlu0 %2012
    %v2014 = vadd.f32 %v2009, %v91
    %v2015 = vsel %vm63, %v2014, inf
    %2016 = vmin.xlane.f32.xlu0 %v2015
    %v2017 = vpop.xlane.xlu0 %2016
    %v2018 = vsub.f32 %v2013, %v2017
    %v2019 = vadd.f32 %v2018, 0.5
    %v2020 = vmax.f32 %v2019, 0.0
    %v2021 = vsel %vm400, %v2020, 0.0
    %2022 = vadd.xlane.f32.xlu0 %v2021
    %v2023 = vpop.xlane.xlu0 %2022
    %v2024 = vrot.slane %v2023, 4
    %v2025 = vadd.f32 %v2023, %v2024
    %v2026 = vrot.slane %v2025, 2
    %v2027 = vadd.f32 %v2025, %v2026
    %v2028 = vrot.slane %v2027, 1
    %v2029 = vadd.f32 %v2027, %v2028
    %s2030 = vtos %v2029
    %s2031 = smul.f32 %s2030, 0.125
    %v2032 = vstv %s1962
    %v2033 = vadd.f32 %v1711, %v2032
    %v2034 = vstv %s2031
    %v2035 = vadd.f32 %v2033, %v2034
    %s2036 = scalar_lea.vmem [#allocation2], 48
    %v2037 = vld [vmem:[%s2036] sm:$0xff]
    %s2038 = scalar_lea.vmem [#allocation5], 48
    %v2039 = vld [vmem:[%s2038] sm:$0xff]
    %v2040 = vmul.f32 %v2037, %v2037
    %v2041 = vsel %vm95, %v2040, 0.0
    %2042 = vadd.xlane.f32.xlu0 %v2041
    %v2043 = vpop.xlane.xlu0 %2042
    %v2044 = vmul.f32 %v2039, %v2039
    %v2045 = vsel %vm95, %v2044, 0.0
    %2046 = vadd.xlane.f32.xlu0 %v2045
    %v2047 = vpop.xlane.xlu0 %2046
    %v2048 = vrsqrt.pop %v2043
    %v2049 = vrsqrt.pop %v2047
    %v2051 = vsel %vm95, %v2037, 0
    %v2054 = vsel %vm95, %v2039, 0
    %2056 = vmatprep.subr.mxu0 0.0
    %2057 = vmatpush1.xpose.msra.mxu0 0.0
    %2058 = vmatprep.subr.mxu0 0.0
    %2059 = vmatpush1.xpose.msra.mxu0 0.0
    %2060 = vmatprep.subr.mxu0 0.0
    %2061 = vmatpush1.xpose.msra.mxu0 0.0
    %2062 = vmatprep.subr.mxu0 0.0
    %2063 = vmatpush1.xpose.msra.mxu0 0.0
    %2064 = vmatprep.subr.mxu0 0.0
    %2065 = vmatpush1.xpose.msra.mxu0 0.0
    %2066 = vmatprep.subr.mxu0 0.0
    %2067 = vmatpush1.xpose.msra.mxu0 0.0
    %2068 = vmatprep.subr.mxu0 0.0
    %2069 = vmatpush1.xpose.msra.mxu0 0.0
    %2070 = vmatprep.subr.mxu0 0.0
    %2071 = vmatpush1.xpose.msra.mxu0 0.0
    %2072 = vmatprep.subr.mxu0 0.0
    %2073 = vmatpush1.xpose.msra.mxu0 0.0
    %2074 = vmatprep.subr.mxu0 0.0
    %2075 = vmatpush1.xpose.msra.mxu0 0.0
    %2076 = vmatprep.subr.mxu0 0.0
    %2077 = vmatpush1.xpose.msra.mxu0 0.0
    %2078 = vmatprep.subr.mxu0 0.0
    %2079 = vmatpush1.xpose.msra.mxu0 0.0
    %2080 = vmatprep.subr.mxu0 0.0
    %2081 = vmatpush1.xpose.msra.mxu0 0.0
    %2082 = vmatprep.subr.mxu0 0.0
    %2083 = vmatpush1.xpose.msra.mxu0 0.0
    %2084 = vmatprep.subr.mxu0 0.0
    %2085 = vmatpush1.xpose.msra.mxu0 0.0
    %2086 = vmatprep.subr.mxu0 0.0
    %2087 = vmatpush1.xpose.msra.mxu0 %v2054
    %2088 = vmatprep.subr.mxu0 0.0
    %2089 = vmatpush2.xpose.msra.mxu0 0.0
    %2090 = vmatprep.subr.mxu0 0.0
    %2091 = vmatpush2.xpose.msra.mxu0 0.0
    %2092 = vmatprep.subr.mxu0 0.0
    %2093 = vmatpush2.xpose.msra.mxu0 0.0
    %2094 = vmatprep.subr.mxu0 0.0
    %2095 = vmatpush2.xpose.msra.mxu0 0.0
    %2096 = vmatprep.subr.mxu0 0.0
    %2097 = vmatpush2.xpose.msra.mxu0 0.0
    %2098 = vmatprep.subr.mxu0 0.0
    %2099 = vmatpush2.xpose.msra.mxu0 0.0
    %2100 = vmatprep.subr.mxu0 0.0
    %2101 = vmatpush2.xpose.msra.mxu0 0.0
    %2102 = vmatprep.subr.mxu0 0.0
    %2103 = vmatpush2.xpose.msra.mxu0 0.0
    %2104 = vmatprep.subr.mxu0 0.0
    %2105 = vmatpush2.xpose.msra.mxu0 0.0
    %2106 = vmatprep.subr.mxu0 0.0
    %2107 = vmatpush2.xpose.msra.mxu0 0.0
    %2108 = vmatprep.subr.mxu0 0.0
    %2109 = vmatpush2.xpose.msra.mxu0 0.0
    %2110 = vmatprep.subr.mxu0 0.0
    %2111 = vmatpush2.xpose.msra.mxu0 0.0
    %2112 = vmatprep.subr.mxu0 0.0
    %2113 = vmatpush2.xpose.msra.mxu0 0.0
    %2114 = vmatprep.subr.mxu0 0.0
    %2115 = vmatpush2.xpose.msra.mxu0 0.0
    %2116 = vmatprep.subr.mxu0 0.0
    %2117 = vmatpush2.xpose.msra.mxu0 0.0
    %2118 = vmatprep.subr.mxu0 0.0
    %2119 = vmatpush2.xpose.msra.mxu0 0.0
    %2120 = vmatprep.mubr.f32.mxu0 0.0
    %2121 = vmatmul.mubr.f32.gmra.mxu0 %v2051
    %v2122 = vpop.f32.mrf.mxu0
    %v2123 = vadd.f32 0.0, %v2122
    %v2124 = vpop.f32.mrf.mxu0
    %2125 = vdwg.mxu0
    %2126 = vxpose.xlu0.b32.start [1/16] %v2049, 128
    %2127 = vxpose.xlu0.b32.cont [2/16] 0.0, 128
    %2128 = vxpose.xlu0.b32.cont [3/16] 0.0, 128
    %2129 = vxpose.xlu0.b32.cont [4/16] 0.0, 128
    %2130 = vxpose.xlu0.b32.cont [5/16] 0.0, 128
    %2131 = vxpose.xlu0.b32.cont [6/16] 0.0, 128
    %2132 = vxpose.xlu0.b32.cont [7/16] 0.0, 128
    %2133 = vxpose.xlu0.b32.cont [8/16] 0.0, 128
    %2134 = vxpose.xlu0.b32.cont [9/16] 0.0, 128
    %2135 = vxpose.xlu0.b32.cont [10/16] 0.0, 128
    %2136 = vxpose.xlu0.b32.cont [11/16] 0.0, 128
    %2137 = vxpose.xlu0.b32.cont [12/16] 0.0, 128
    %2138 = vxpose.xlu0.b32.cont [13/16] 0.0, 128
    %2139 = vxpose.xlu0.b32.cont [14/16] 0.0, 128
    %2140 = vxpose.xlu0.b32.cont [15/16] 0.0, 128
    %2141 = vxpose.xlu0.b32.end [16/16] 0.0, 128
    %v2142 = vpop.trf.xlu0
    %v2143 = vpop.trf.xlu0
    %v2144 = vpop.trf.xlu0
    %v2145 = vpop.trf.xlu0
    %v2146 = vpop.trf.xlu0
    %v2147 = vpop.trf.xlu0
    %v2148 = vpop.trf.xlu0
    %v2149 = vpop.trf.xlu0
    %v2150 = vpop.trf.xlu0
    %v2151 = vpop.trf.xlu0
    %v2152 = vpop.trf.xlu0
    %v2153 = vpop.trf.xlu0
    %v2154 = vpop.trf.xlu0
    %v2155 = vpop.trf.xlu0
    %v2156 = vpop.trf.xlu0
    %v2157 = vpop.trf.xlu0
    %v2158 = vlaneseq
    %v2159 = vshrl.u32 %v2158, 7
    %v2160 = vsub.s32 0, %v2159
    %v2161 = vrot.slane %v2142, %v2160
    %v2162 = vmul.f32 %v2123, %v2161
    %2163 = vxpose.xlu0.b32.start [1/16] %v2123, 128
    %2164 = vxpose.xlu0.b32.cont [2/16] 0.0, 128
    %2165 = vxpose.xlu0.b32.cont [3/16] 0.0, 128
    %2166 = vxpose.xlu0.b32.cont [4/16] 0.0, 128
    %2167 = vxpose.xlu0.b32.cont [5/16] 0.0, 128
    %2168 = vxpose.xlu0.b32.cont [6/16] 0.0, 128
    %2169 = vxpose.xlu0.b32.cont [7/16] 0.0, 128
    %2170 = vxpose.xlu0.b32.cont [8/16] 0.0, 128
    %2171 = vxpose.xlu0.b32.cont [9/16] 0.0, 128
    %2172 = vxpose.xlu0.b32.cont [10/16] 0.0, 128
    %2173 = vxpose.xlu0.b32.cont [11/16] 0.0, 128
    %2174 = vxpose.xlu0.b32.cont [12/16] 0.0, 128
    %2175 = vxpose.xlu0.b32.cont [13/16] 0.0, 128
    %2176 = vxpose.xlu0.b32.cont [14/16] 0.0, 128
    %2177 = vxpose.xlu0.b32.cont [15/16] 0.0, 128
    %2178 = vxpose.xlu0.b32.end [16/16] 0.0, 128
    %v2179 = vpop.trf.xlu0
    %v2180 = vpop.trf.xlu0
    %v2181 = vpop.trf.xlu0
    %v2182 = vpop.trf.xlu0
    %v2183 = vpop.trf.xlu0
    %v2184 = vpop.trf.xlu0
    %v2185 = vpop.trf.xlu0
    %v2186 = vpop.trf.xlu0
    %v2187 = vpop.trf.xlu0
    %v2188 = vpop.trf.xlu0
    %v2189 = vpop.trf.xlu0
    %v2190 = vpop.trf.xlu0
    %v2191 = vpop.trf.xlu0
    %v2192 = vpop.trf.xlu0
    %v2193 = vpop.trf.xlu0
    %v2194 = vpop.trf.xlu0
    %2195 = vxpose.xlu0.b32.start [1/16] %v2048, 128
    %2196 = vxpose.xlu0.b32.cont [2/16] 0.0, 128
    %2197 = vxpose.xlu0.b32.cont [3/16] 0.0, 128
    %2198 = vxpose.xlu0.b32.cont [4/16] 0.0, 128
    %2199 = vxpose.xlu0.b32.cont [5/16] 0.0, 128
    %2200 = vxpose.xlu0.b32.cont [6/16] 0.0, 128
    %2201 = vxpose.xlu0.b32.cont [7/16] 0.0, 128
    %2202 = vxpose.xlu0.b32.cont [8/16] 0.0, 128
    %2203 = vxpose.xlu0.b32.cont [9/16] 0.0, 128
    %2204 = vxpose.xlu0.b32.cont [10/16] 0.0, 128
    %2205 = vxpose.xlu0.b32.cont [11/16] 0.0, 128
    %2206 = vxpose.xlu0.b32.cont [12/16] 0.0, 128
    %2207 = vxpose.xlu0.b32.cont [13/16] 0.0, 128
    %2208 = vxpose.xlu0.b32.cont [14/16] 0.0, 128
    %2209 = vxpose.xlu0.b32.cont [15/16] 0.0, 128
    %2210 = vxpose.xlu0.b32.end [16/16] 0.0, 128
    %v2211 = vpop.trf.xlu0
    %v2212 = vpop.trf.xlu0
    %v2213 = vpop.trf.xlu0
    %v2214 = vpop.trf.xlu0
    %v2215 = vpop.trf.xlu0
    %v2216 = vpop.trf.xlu0
    %v2217 = vpop.trf.xlu0
    %v2218 = vpop.trf.xlu0
    %v2219 = vpop.trf.xlu0
    %v2220 = vpop.trf.xlu0
    %v2221 = vpop.trf.xlu0
    %v2222 = vpop.trf.xlu0
    %v2223 = vpop.trf.xlu0
    %v2224 = vpop.trf.xlu0
    %v2225 = vpop.trf.xlu0
    %v2226 = vpop.trf.xlu0
    %v2227 = vlaneseq
    %v2228 = vshrl.u32 %v2227, 7
    %v2229 = vsub.s32 0, %v2228
    %v2230 = vrot.slane %v2211, %v2229
    %v2231 = vmul.f32 %v2179, %v2230
    %v2232 = vsel %vm63, %v2162, -inf
    %2233 = vmax.xlane.f32.xlu0 %v2232
    %v2234 = vpop.xlane.xlu0 %2233
    %v2235 = vsub.f32 %v2162, %v2234
    %v2236 = vmul.f32 %v2235, 1.442695
    %v2237 = vpow.pop %v2236
    %v2238 = vsel %vm63, %v2237, 0.0
    %2239 = vadd.xlane.f32.xlu0 %v2238
    %v2240 = vpop.xlane.xlu0 %2239
    %v2241 = vrcp.pop %v2240
    %v2242 = vmul.f32 %v2237, %v2241
    %v2243 = vlog2.pop %v2240
    %v2244 = vmul.f32 %v2243, 0.6931472
    %v2245 = vsub.f32 %v2235, %v2244
    %v2246 = vsub.f32 %v2245, %v82
    %v2247 = vmul.f32 %v2242, %v2246
    %v2248 = vsel %vm63, %v2247, 0.0
    %2249 = vadd.xlane.f32.xlu0 %v2248
    %v2250 = vpop.xlane.xlu0 %2249
    %v2251 = vrot.slane %v2250, 4
    %v2252 = vadd.f32 %v2250, %v2251
    %v2253 = vrot.slane %v2252, 2
    %v2254 = vadd.f32 %v2252, %v2253
    %v2255 = vrot.slane %v2254, 1
    %v2256 = vadd.f32 %v2254, %v2255
    %s2257 = vtos %v2256
    %s2258 = smul.f32 %s2257, 0.125
    %v2259 = vsel %vm63, %v2231, -inf
    %2260 = vmax.xlane.f32.xlu0 %v2259
    %v2261 = vpop.xlane.xlu0 %2260
    %v2262 = vsub.f32 %v2231, %v2261
    %v2263 = vmul.f32 %v2262, 1.442695
    %v2264 = vpow.pop %v2263
    %v2265 = vsel %vm63, %v2264, 0.0
    %2266 = vadd.xlane.f32.xlu0 %v2265
    %v2267 = vpop.xlane.xlu0 %2266
    %v2268 = vrcp.pop %v2267
    %v2269 = vmul.f32 %v2264, %v2268
    %v2270 = vlog2.pop %v2267
    %v2271 = vmul.f32 %v2270, 0.6931472
    %v2272 = vsub.f32 %v2262, %v2271
    %v2273 = vsub.f32 %v2272, %v82
    %v2274 = vmul.f32 %v2269, %v2273
    %v2275 = vsel %vm63, %v2274, 0.0
    %2276 = vadd.xlane.f32.xlu0 %v2275
    %v2277 = vpop.xlane.xlu0 %2276
    %v2278 = vrot.slane %v2277, 4
    %v2279 = vadd.f32 %v2277, %v2278
    %v2280 = vrot.slane %v2279, 2
    %v2281 = vadd.f32 %v2279, %v2280
    %v2282 = vrot.slane %v2281, 1
    %v2283 = vadd.f32 %v2281, %v2282
    %s2284 = vtos %v2283
    %s2285 = smul.f32 %s2284, 0.125
    %s2286 = sadd.f32 %s2258, %s2285
    %2287 = vxpose.xlu0.b32.start [1/16] %v2047, 128
    %2288 = vxpose.xlu0.b32.cont [2/16] 0.0, 128
    %2289 = vxpose.xlu0.b32.cont [3/16] 0.0, 128
    %2290 = vxpose.xlu0.b32.cont [4/16] 0.0, 128
    %2291 = vxpose.xlu0.b32.cont [5/16] 0.0, 128
    %2292 = vxpose.xlu0.b32.cont [6/16] 0.0, 128
    %2293 = vxpose.xlu0.b32.cont [7/16] 0.0, 128
    %2294 = vxpose.xlu0.b32.cont [8/16] 0.0, 128
    %2295 = vxpose.xlu0.b32.cont [9/16] 0.0, 128
    %2296 = vxpose.xlu0.b32.cont [10/16] 0.0, 128
    %2297 = vxpose.xlu0.b32.cont [11/16] 0.0, 128
    %2298 = vxpose.xlu0.b32.cont [12/16] 0.0, 128
    %2299 = vxpose.xlu0.b32.cont [13/16] 0.0, 128
    %2300 = vxpose.xlu0.b32.cont [14/16] 0.0, 128
    %2301 = vxpose.xlu0.b32.cont [15/16] 0.0, 128
    %2302 = vxpose.xlu0.b32.end [16/16] 0.0, 128
    %v2303 = vpop.trf.xlu0
    %v2304 = vpop.trf.xlu0
    %v2305 = vpop.trf.xlu0
    %v2306 = vpop.trf.xlu0
    %v2307 = vpop.trf.xlu0
    %v2308 = vpop.trf.xlu0
    %v2309 = vpop.trf.xlu0
    %v2310 = vpop.trf.xlu0
    %v2311 = vpop.trf.xlu0
    %v2312 = vpop.trf.xlu0
    %v2313 = vpop.trf.xlu0
    %v2314 = vpop.trf.xlu0
    %v2315 = vpop.trf.xlu0
    %v2316 = vpop.trf.xlu0
    %v2317 = vpop.trf.xlu0
    %v2318 = vpop.trf.xlu0
    %v2319 = vlaneseq
    %v2320 = vshrl.u32 %v2319, 7
    %v2321 = vsub.s32 0, %v2320
    %v2322 = vrot.slane %v2303, %v2321
    %v2323 = vadd.f32 %v2043, %v2322
    %v2324 = vmul.f32 %v2123, 2.0
    %v2325 = vsub.f32 %v2323, %v2324
    %v2326 = vmax.f32 %v2325, 0.0
    %v2327 = vrsqrt.pop %v2326
    %v2328 = vmul.f32 %v2326, %v2327
    %vm2329 = vcmp.eq.f32.partialorder %v2326, inf
    %v2330 = vsel %vm2329, %v2326, %v2328
    %vm2331 = vcmp.eq.f32.partialorder %v2326, 0.0
    %v2332 = vand.u32 %v2326, 2147483648
    %v2333 = vsel %vm2331, %v2332, %v2330
    %v2334 = vmul.f32 %v2333, %v90
    %v2335 = vsel %vm63, %v2334, -inf
    %2336 = vmax.xlane.f32.xlu0 %v2335
    %v2337 = vpop.xlane.xlu0 %2336
    %v2338 = vadd.f32 %v2333, %v91
    %v2339 = vsel %vm63, %v2338, inf
    %2340 = vmin.xlane.f32.xlu0 %v2339
    %v2341 = vpop.xlane.xlu0 %2340
    %v2342 = vsub.f32 %v2337, %v2341
    %v2343 = vadd.f32 %v2342, 0.5
    %v2344 = vmax.f32 %v2343, 0.0
    %v2345 = vsel %vm400, %v2344, 0.0
    %2346 = vadd.xlane.f32.xlu0 %v2345
    %v2347 = vpop.xlane.xlu0 %2346
    %v2348 = vrot.slane %v2347, 4
    %v2349 = vadd.f32 %v2347, %v2348
    %v2350 = vrot.slane %v2349, 2
    %v2351 = vadd.f32 %v2349, %v2350
    %v2352 = vrot.slane %v2351, 1
    %v2353 = vadd.f32 %v2351, %v2352
    %s2354 = vtos %v2353
    %s2355 = smul.f32 %s2354, 0.125
    %v2356 = vstv %s2286
    %v2357 = vadd.f32 %v2035, %v2356
    %v2358 = vstv %s2355
    %v2359 = vadd.f32 %v2357, %v2358
    %s2360 = scalar_lea.vmem [#allocation2], 56
    %v2361 = vld [vmem:[%s2360] sm:$0xff]
    %s2362 = scalar_lea.vmem [#allocation5], 56
    %v2363 = vld [vmem:[%s2362] sm:$0xff]
    %v2364 = vmul.f32 %v2361, %v2361
    %v2365 = vsel %vm95, %v2364, 0.0
    %2366 = vadd.xlane.f32.xlu0 %v2365
    %v2367 = vpop.xlane.xlu0 %2366
    %v2368 = vmul.f32 %v2363, %v2363
    %v2369 = vsel %vm95, %v2368, 0.0
    %2370 = vadd.xlane.f32.xlu0 %v2369
    %v2371 = vpop.xlane.xlu0 %2370
    %v2372 = vrsqrt.pop %v2367
    %v2373 = vrsqrt.pop %v2371
    %v2375 = vsel %vm95, %v2361, 0
    %v2378 = vsel %vm95, %v2363, 0
    %2380 = vmatprep.subr.mxu0 0.0
    %2381 = vmatpush1.xpose.msra.mxu0 0.0
    %2382 = vmatprep.subr.mxu0 0.0
    %2383 = vmatpush1.xpose.msra.mxu0 0.0
    %2384 = vmatprep.subr.mxu0 0.0
    %2385 = vmatpush1.xpose.msra.mxu0 0.0
    %2386 = vmatprep.subr.mxu0 0.0
    %2387 = vmatpush1.xpose.msra.mxu0 0.0
    %2388 = vmatprep.subr.mxu0 0.0
    %2389 = vmatpush1.xpose.msra.mxu0 0.0
    %2390 = vmatprep.subr.mxu0 0.0
    %2391 = vmatpush1.xpose.msra.mxu0 0.0
    %2392 = vmatprep.subr.mxu0 0.0
    %2393 = vmatpush1.xpose.msra.mxu0 0.0
    %2394 = vmatprep.subr.mxu0 0.0
    %2395 = vmatpush1.xpose.msra.mxu0 0.0
    %2396 = vmatprep.subr.mxu0 0.0
    %2397 = vmatpush1.xpose.msra.mxu0 0.0
    %2398 = vmatprep.subr.mxu0 0.0
    %2399 = vmatpush1.xpose.msra.mxu0 0.0
    %2400 = vmatprep.subr.mxu0 0.0
    %2401 = vmatpush1.xpose.msra.mxu0 0.0
    %2402 = vmatprep.subr.mxu0 0.0
    %2403 = vmatpush1.xpose.msra.mxu0 0.0
    %2404 = vmatprep.subr.mxu0 0.0
    %2405 = vmatpush1.xpose.msra.mxu0 0.0
    %2406 = vmatprep.subr.mxu0 0.0
    %2407 = vmatpush1.xpose.msra.mxu0 0.0
    %2408 = vmatprep.subr.mxu0 0.0
    %2409 = vmatpush1.xpose.msra.mxu0 0.0
    %2410 = vmatprep.subr.mxu0 0.0
    %2411 = vmatpush1.xpose.msra.mxu0 %v2378
    %2412 = vmatprep.subr.mxu0 0.0
    %2413 = vmatpush2.xpose.msra.mxu0 0.0
    %2414 = vmatprep.subr.mxu0 0.0
    %2415 = vmatpush2.xpose.msra.mxu0 0.0
    %2416 = vmatprep.subr.mxu0 0.0
    %2417 = vmatpush2.xpose.msra.mxu0 0.0
    %2418 = vmatprep.subr.mxu0 0.0
    %2419 = vmatpush2.xpose.msra.mxu0 0.0
    %2420 = vmatprep.subr.mxu0 0.0
    %2421 = vmatpush2.xpose.msra.mxu0 0.0
    %2422 = vmatprep.subr.mxu0 0.0
    %2423 = vmatpush2.xpose.msra.mxu0 0.0
    %2424 = vmatprep.subr.mxu0 0.0
    %2425 = vmatpush2.xpose.msra.mxu0 0.0
    %2426 = vmatprep.subr.mxu0 0.0
    %2427 = vmatpush2.xpose.msra.mxu0 0.0
    %2428 = vmatprep.subr.mxu0 0.0
    %2429 = vmatpush2.xpose.msra.mxu0 0.0
    %2430 = vmatprep.subr.mxu0 0.0
    %2431 = vmatpush2.xpose.msra.mxu0 0.0
    %2432 = vmatprep.subr.mxu0 0.0
    %2433 = vmatpush2.xpose.msra.mxu0 0.0
    %2434 = vmatprep.subr.mxu0 0.0
    %2435 = vmatpush2.xpose.msra.mxu0 0.0
    %2436 = vmatprep.subr.mxu0 0.0
    %2437 = vmatpush2.xpose.msra.mxu0 0.0
    %2438 = vmatprep.subr.mxu0 0.0
    %2439 = vmatpush2.xpose.msra.mxu0 0.0
    %2440 = vmatprep.subr.mxu0 0.0
    %2441 = vmatpush2.xpose.msra.mxu0 0.0
    %2442 = vmatprep.subr.mxu0 0.0
    %2443 = vmatpush2.xpose.msra.mxu0 0.0
    %2444 = vmatprep.mubr.f32.mxu0 0.0
    %2445 = vmatmul.mubr.f32.gmra.mxu0 %v2375
    %v2446 = vpop.f32.mrf.mxu0
    %v2447 = vadd.f32 0.0, %v2446
    %v2448 = vpop.f32.mrf.mxu0
    %2449 = vdwg.mxu0
    %2450 = vxpose.xlu0.b32.start [1/16] %v2373, 128
    %2451 = vxpose.xlu0.b32.cont [2/16] 0.0, 128
    %2452 = vxpose.xlu0.b32.cont [3/16] 0.0, 128
    %2453 = vxpose.xlu0.b32.cont [4/16] 0.0, 128
    %2454 = vxpose.xlu0.b32.cont [5/16] 0.0, 128
    %2455 = vxpose.xlu0.b32.cont [6/16] 0.0, 128
    %2456 = vxpose.xlu0.b32.cont [7/16] 0.0, 128
    %2457 = vxpose.xlu0.b32.cont [8/16] 0.0, 128
    %2458 = vxpose.xlu0.b32.cont [9/16] 0.0, 128
    %2459 = vxpose.xlu0.b32.cont [10/16] 0.0, 128
    %2460 = vxpose.xlu0.b32.cont [11/16] 0.0, 128
    %2461 = vxpose.xlu0.b32.cont [12/16] 0.0, 128
    %2462 = vxpose.xlu0.b32.cont [13/16] 0.0, 128
    %2463 = vxpose.xlu0.b32.cont [14/16] 0.0, 128
    %2464 = vxpose.xlu0.b32.cont [15/16] 0.0, 128
    %2465 = vxpose.xlu0.b32.end [16/16] 0.0, 128
    %v2466 = vpop.trf.xlu0
    %v2467 = vpop.trf.xlu0
    %v2468 = vpop.trf.xlu0
    %v2469 = vpop.trf.xlu0
    %v2470 = vpop.trf.xlu0
    %v2471 = vpop.trf.xlu0
    %v2472 = vpop.trf.xlu0
    %v2473 = vpop.trf.xlu0
    %v2474 = vpop.trf.xlu0
    %v2475 = vpop.trf.xlu0
    %v2476 = vpop.trf.xlu0
    %v2477 = vpop.trf.xlu0
    %v2478 = vpop.trf.xlu0
    %v2479 = vpop.trf.xlu0
    %v2480 = vpop.trf.xlu0
    %v2481 = vpop.trf.xlu0
    %v2482 = vlaneseq
    %v2483 = vshrl.u32 %v2482, 7
    %v2484 = vsub.s32 0, %v2483
    %v2485 = vrot.slane %v2466, %v2484
    %v2486 = vmul.f32 %v2447, %v2485
    %2487 = vxpose.xlu0.b32.start [1/16] %v2447, 128
    %2488 = vxpose.xlu0.b32.cont [2/16] 0.0, 128
    %2489 = vxpose.xlu0.b32.cont [3/16] 0.0, 128
    %2490 = vxpose.xlu0.b32.cont [4/16] 0.0, 128
    %2491 = vxpose.xlu0.b32.cont [5/16] 0.0, 128
    %2492 = vxpose.xlu0.b32.cont [6/16] 0.0, 128
    %2493 = vxpose.xlu0.b32.cont [7/16] 0.0, 128
    %2494 = vxpose.xlu0.b32.cont [8/16] 0.0, 128
    %2495 = vxpose.xlu0.b32.cont [9/16] 0.0, 128
    %2496 = vxpose.xlu0.b32.cont [10/16] 0.0, 128
    %2497 = vxpose.xlu0.b32.cont [11/16] 0.0, 128
    %2498 = vxpose.xlu0.b32.cont [12/16] 0.0, 128
    %2499 = vxpose.xlu0.b32.cont [13/16] 0.0, 128
    %2500 = vxpose.xlu0.b32.cont [14/16] 0.0, 128
    %2501 = vxpose.xlu0.b32.cont [15/16] 0.0, 128
    %2502 = vxpose.xlu0.b32.end [16/16] 0.0, 128
    %v2503 = vpop.trf.xlu0
    %v2504 = vpop.trf.xlu0
    %v2505 = vpop.trf.xlu0
    %v2506 = vpop.trf.xlu0
    %v2507 = vpop.trf.xlu0
    %v2508 = vpop.trf.xlu0
    %v2509 = vpop.trf.xlu0
    %v2510 = vpop.trf.xlu0
    %v2511 = vpop.trf.xlu0
    %v2512 = vpop.trf.xlu0
    %v2513 = vpop.trf.xlu0
    %v2514 = vpop.trf.xlu0
    %v2515 = vpop.trf.xlu0
    %v2516 = vpop.trf.xlu0
    %v2517 = vpop.trf.xlu0
    %v2518 = vpop.trf.xlu0
    %2519 = vxpose.xlu0.b32.start [1/16] %v2372, 128
    %2520 = vxpose.xlu0.b32.cont [2/16] 0.0, 128
    %2521 = vxpose.xlu0.b32.cont [3/16] 0.0, 128
    %2522 = vxpose.xlu0.b32.cont [4/16] 0.0, 128
    %2523 = vxpose.xlu0.b32.cont [5/16] 0.0, 128
    %2524 = vxpose.xlu0.b32.cont [6/16] 0.0, 128
    %2525 = vxpose.xlu0.b32.cont [7/16] 0.0, 128
    %2526 = vxpose.xlu0.b32.cont [8/16] 0.0, 128
    %2527 = vxpose.xlu0.b32.cont [9/16] 0.0, 128
    %2528 = vxpose.xlu0.b32.cont [10/16] 0.0, 128
    %2529 = vxpose.xlu0.b32.cont [11/16] 0.0, 128
    %2530 = vxpose.xlu0.b32.cont [12/16] 0.0, 128
    %2531 = vxpose.xlu0.b32.cont [13/16] 0.0, 128
    %2532 = vxpose.xlu0.b32.cont [14/16] 0.0, 128
    %2533 = vxpose.xlu0.b32.cont [15/16] 0.0, 128
    %2534 = vxpose.xlu0.b32.end [16/16] 0.0, 128
    %v2535 = vpop.trf.xlu0
    %v2536 = vpop.trf.xlu0
    %v2537 = vpop.trf.xlu0
    %v2538 = vpop.trf.xlu0
    %v2539 = vpop.trf.xlu0
    %v2540 = vpop.trf.xlu0
    %v2541 = vpop.trf.xlu0
    %v2542 = vpop.trf.xlu0
    %v2543 = vpop.trf.xlu0
    %v2544 = vpop.trf.xlu0
    %v2545 = vpop.trf.xlu0
    %v2546 = vpop.trf.xlu0
    %v2547 = vpop.trf.xlu0
    %v2548 = vpop.trf.xlu0
    %v2549 = vpop.trf.xlu0
    %v2550 = vpop.trf.xlu0
    %v2551 = vlaneseq
    %v2552 = vshrl.u32 %v2551, 7
    %v2553 = vsub.s32 0, %v2552
    %v2554 = vrot.slane %v2535, %v2553
    %v2555 = vmul.f32 %v2503, %v2554
    %v2556 = vsel %vm63, %v2486, -inf
    %2557 = vmax.xlane.f32.xlu0 %v2556
    %v2558 = vpop.xlane.xlu0 %2557
    %v2559 = vsub.f32 %v2486, %v2558
    %v2560 = vmul.f32 %v2559, 1.442695
    %v2561 = vpow.pop %v2560
    %v2562 = vsel %vm63, %v2561, 0.0
    %2563 = vadd.xlane.f32.xlu0 %v2562
    %v2564 = vpop.xlane.xlu0 %2563
    %v2565 = vrcp.pop %v2564
    %v2566 = vmul.f32 %v2561, %v2565
    %v2567 = vlog2.pop %v2564
    %v2568 = vmul.f32 %v2567, 0.6931472
    %v2569 = vsub.f32 %v2559, %v2568
    %v2570 = vsub.f32 %v2569, %v82
    %v2571 = vmul.f32 %v2566, %v2570
    %v2572 = vsel %vm63, %v2571, 0.0
    %2573 = vadd.xlane.f32.xlu0 %v2572
    %v2574 = vpop.xlane.xlu0 %2573
    %v2575 = vrot.slane %v2574, 4
    %v2576 = vadd.f32 %v2574, %v2575
    %v2577 = vrot.slane %v2576, 2
    %v2578 = vadd.f32 %v2576, %v2577
    %v2579 = vrot.slane %v2578, 1
    %v2580 = vadd.f32 %v2578, %v2579
    %s2581 = vtos %v2580
    %s2582 = smul.f32 %s2581, 0.125
    %v2583 = vsel %vm63, %v2555, -inf
    %2584 = vmax.xlane.f32.xlu0 %v2583
    %v2585 = vpop.xlane.xlu0 %2584
    %v2586 = vsub.f32 %v2555, %v2585
    %v2587 = vmul.f32 %v2586, 1.442695
    %v2588 = vpow.pop %v2587
    %v2589 = vsel %vm63, %v2588, 0.0
    %2590 = vadd.xlane.f32.xlu0 %v2589
    %v2591 = vpop.xlane.xlu0 %2590
    %v2592 = vrcp.pop %v2591
    %v2593 = vmul.f32 %v2588, %v2592
    %v2594 = vlog2.pop %v2591
    %v2595 = vmul.f32 %v2594, 0.6931472
    %v2596 = vsub.f32 %v2586, %v2595
    %v2597 = vsub.f32 %v2596, %v82
    %v2598 = vmul.f32 %v2593, %v2597
    %v2599 = vsel %vm63, %v2598, 0.0
    %2600 = vadd.xlane.f32.xlu0 %v2599
    %v2601 = vpop.xlane.xlu0 %2600
    %v2602 = vrot.slane %v2601, 4
    %v2603 = vadd.f32 %v2601, %v2602
    %v2604 = vrot.slane %v2603, 2
    %v2605 = vadd.f32 %v2603, %v2604
    %v2606 = vrot.slane %v2605, 1
    %v2607 = vadd.f32 %v2605, %v2606
    %s2608 = vtos %v2607
    %s2609 = smul.f32 %s2608, 0.125
    %s2610 = sadd.f32 %s2582, %s2609
    %2611 = vxpose.xlu0.b32.start [1/16] %v2371, 128
    %2612 = vxpose.xlu0.b32.cont [2/16] 0.0, 128
    %2613 = vxpose.xlu0.b32.cont [3/16] 0.0, 128
    %2614 = vxpose.xlu0.b32.cont [4/16] 0.0, 128
    %2615 = vxpose.xlu0.b32.cont [5/16] 0.0, 128
    %2616 = vxpose.xlu0.b32.cont [6/16] 0.0, 128
    %2617 = vxpose.xlu0.b32.cont [7/16] 0.0, 128
    %2618 = vxpose.xlu0.b32.cont [8/16] 0.0, 128
    %2619 = vxpose.xlu0.b32.cont [9/16] 0.0, 128
    %2620 = vxpose.xlu0.b32.cont [10/16] 0.0, 128
    %2621 = vxpose.xlu0.b32.cont [11/16] 0.0, 128
    %2622 = vxpose.xlu0.b32.cont [12/16] 0.0, 128
    %2623 = vxpose.xlu0.b32.cont [13/16] 0.0, 128
    %2624 = vxpose.xlu0.b32.cont [14/16] 0.0, 128
    %2625 = vxpose.xlu0.b32.cont [15/16] 0.0, 128
    %2626 = vxpose.xlu0.b32.end [16/16] 0.0, 128
    %v2627 = vpop.trf.xlu0
    %v2628 = vpop.trf.xlu0
    %v2629 = vpop.trf.xlu0
    %v2630 = vpop.trf.xlu0
    %v2631 = vpop.trf.xlu0
    %v2632 = vpop.trf.xlu0
    %v2633 = vpop.trf.xlu0
    %v2634 = vpop.trf.xlu0
    %v2635 = vpop.trf.xlu0
    %v2636 = vpop.trf.xlu0
    %v2637 = vpop.trf.xlu0
    %v2638 = vpop.trf.xlu0
    %v2639 = vpop.trf.xlu0
    %v2640 = vpop.trf.xlu0
    %v2641 = vpop.trf.xlu0
    %v2642 = vpop.trf.xlu0
    %v2643 = vlaneseq
    %v2644 = vshrl.u32 %v2643, 7
    %v2645 = vsub.s32 0, %v2644
    %v2646 = vrot.slane %v2627, %v2645
    %v2647 = vadd.f32 %v2367, %v2646
    %v2648 = vmul.f32 %v2447, 2.0
    %v2649 = vsub.f32 %v2647, %v2648
    %v2650 = vmax.f32 %v2649, 0.0
    %v2651 = vrsqrt.pop %v2650
    %v2652 = vmul.f32 %v2650, %v2651
    %vm2653 = vcmp.eq.f32.partialorder %v2650, inf
    %v2654 = vsel %vm2653, %v2650, %v2652
    %vm2655 = vcmp.eq.f32.partialorder %v2650, 0.0
    %v2656 = vand.u32 %v2650, 2147483648
    %v2657 = vsel %vm2655, %v2656, %v2654
    %v2658 = vmul.f32 %v2657, %v90
    %v2659 = vsel %vm63, %v2658, -inf
    %2660 = vmax.xlane.f32.xlu0 %v2659
    %v2661 = vpop.xlane.xlu0 %2660
    %v2662 = vadd.f32 %v2657, %v91
    %v2663 = vsel %vm63, %v2662, inf
    %2664 = vmin.xlane.f32.xlu0 %v2663
    %v2665 = vpop.xlane.xlu0 %2664
    %v2666 = vsub.f32 %v2661, %v2665
    %v2667 = vadd.f32 %v2666, 0.5
    %v2668 = vmax.f32 %v2667, 0.0
    %v2669 = vsel %vm400, %v2668, 0.0
    %2670 = vadd.xlane.f32.xlu0 %v2669
    %v2671 = vpop.xlane.xlu0 %2670
    %v2672 = vrot.slane %v2671, 4
    %v2673 = vadd.f32 %v2671, %v2672
    %v2674 = vrot.slane %v2673, 2
    %v2675 = vadd.f32 %v2673, %v2674
    %v2676 = vrot.slane %v2675, 1
    %v2677 = vadd.f32 %v2675, %v2676
    %s2678 = vtos %v2677
    %s2679 = smul.f32 %s2678, 0.125
    %v2680 = vstv %s2610
    %v2681 = vadd.f32 %v2359, %v2680
    %v2682 = vstv %s2679
    %v2683 = vadd.f32 %v2681, %v2682
    %vm2684 = vcmask 0
    %2685 = vst.msk [vmem:[#allocation7] sm:$0x1] %vm2684, %v2683
    // Predicated region
    $region26: #{tpu_custom_call.1} parent=1 // pred_check
      _
    $region27: #{tpu_custom_call.1} parent=1 // pred_check_branch
      %2687 = sbr.rel (0) target = $region29
    $region28: #{tpu_custom_call.1} parent=1 // pred_region
      %s2689 = ssub.s32 16, 16
      %2690 = vsyncadd [#allocation4], %s2689
      %s2692 = sshll.u32 [#allocation7], 4
      %s2693 = int_to_ptr.vmem [resolvable:$true] %s2692
      %2695 = dma.vmem_to_hbm [thread:$0]  %s2693, 16, %s4, [#allocation4]
    $region29: #{tpu_custom_call.1} parent=1 // pred_fallthru
      _
    // Predicated region
    $region30: #{tpu_custom_call.1} parent=1 // pred_check
      _
    $region31: #{tpu_custom_call.1} parent=1 // pred_check_branch
      %2697 = sbr.rel (0) target = $region33
    $region32: #{tpu_custom_call.1} parent=1 // pred_region
      %2698 = dma.done [#allocation4], 16
    $region33: #{tpu_custom_call.1} parent=1 // pred_fallthru
      _
    %2699 = vsyncpa [#allocation3], 1
    %2700 = vsyncpa [#allocation6], 1
    %2701 = vsyncpa [#allocation4], 1

</llo_original>
